<compile_context>
chip_gen: v5e
topology: v5e:2x2
jax: 0.10.0
libtpu: 0.0.40
codegen_flags: <defaults>
</compile_context>

<pallas_src>
import math

import jax
import jax.numpy as jnp
from jax.experimental import pallas as pl
from jax.experimental.pallas import tpu as pltpu

_EPS = 1e-5                      # PyTorch BatchNorm2d default eps
_MXU_DTYPE = jnp.float32         # set to jnp.bfloat16 for 2x MXU throughput


# ----------------------------------------------------------------------------
# Parameter construction (deterministic, synthetic)
# ----------------------------------------------------------------------------
def _conv_params(key, cin, cout, k):
    k1, k2 = jax.random.split(key)
    fan_in = cin * k * k
    bound = 1.0 / math.sqrt(fan_in)
    w = jax.random.uniform(k1, (cout, cin, k, k), jnp.float32, -bound, bound)
    b = jax.random.uniform(k2, (cout,), jnp.float32, -bound, bound)
    return {"w": w, "b": b}


def _bn_params(key, c):
    k1, k2, k3, k4 = jax.random.split(key, 4)
    return {
        "gamma": jax.random.uniform(k1, (c,), jnp.float32, 0.5, 1.5),
        "beta": jax.random.uniform(k2, (c,), jnp.float32, -0.5, 0.5),
        "mean": jax.random.uniform(k3, (c,), jnp.float32, -0.5, 0.5),
        "var": jax.random.uniform(k4, (c,), jnp.float32, 0.5, 1.5),
    }


def make_resblock_params(key, cin, cout):
    mid = cout // 2
    ks = jax.random.split(key, 7)
    return {
        "bn1": _bn_params(ks[0], cin),
        "conv1": _conv_params(ks[1], cin, mid, 1),
        "bn2": _bn_params(ks[2], mid),
        "conv2": _conv_params(ks[3], mid, mid, 3),
        "bn3": _bn_params(ks[4], mid),
        "conv3": _conv_params(ks[5], mid, cout, 1),
        "skip": _conv_params(ks[6], cin, cout, 1) if cin != cout else None,
    }


def make_hourglass_params(key, n, f, increase=0):
    nf = f + increase
    k_up1, k_low1, k_low2, k_low3 = jax.random.split(key, 4)
    p = {
        "n": n,
        "up1": make_resblock_params(k_up1, f, f),
        "low1": make_resblock_params(k_low1, f, nf),
        "low3": make_resblock_params(k_low3, nf, f),
    }
    if n > 1:
        p["low2"] = make_hourglass_params(k_low2, n - 1, nf, increase)
    else:
        p["low2"] = make_resblock_params(k_low2, nf, nf)
    return p


def _fold_bn(bn):
    """Inference-mode BN folded to per-channel scale/shift, shaped (C, 1)."""
    scale = bn["gamma"] / jnp.sqrt(bn["var"] + _EPS)
    shift = bn["beta"] - bn["mean"] * scale
    return scale[:, None], shift[:, None]


def _pad_axis(a, size, axis):
    pad = size - a.shape[axis]
    if pad == 0:
        return a
    widths = [(0, 0)] * a.ndim
    widths[axis] = (0, pad)
    return jnp.pad(a, widths)


def _dot32(a, b):
    """MXU matmul with f32 accumulation (operands optionally cast to bf16)."""
    return jnp.dot(a.astype(_MXU_DTYPE), b.astype(_MXU_DTYPE),
                   preferred_element_type=jnp.float32)


# ----------------------------------------------------------------------------
# Fused ResBlock kernel
# ----------------------------------------------------------------------------
def _make_resblock_kernel(has_skip, W):
    def kernel(*refs):
        if has_skip:
            (x_ref, cm_ref, s1_ref, t1_ref, w1_ref, b1_ref,
             w2_ref, b2_ref, w3_ref, b3_ref, wsk_ref, bsk_ref, o_ref) = refs
        else:
            (x_ref, cm_ref, s1_ref, t1_ref, w1_ref, b1_ref,
             w2_ref, b2_ref, w3_ref, b3_ref, o_ref) = refs

        x = x_ref[0]                                        # (Cin, R)

        # Residual path (1x1 skip conv on the raw input when Cin != Cout).
        if has_skip:
            res = _dot32(wsk_ref[...], x) + bsk_ref[...]
        else:
            res = x

        # relu(bn1(x))
        xa = jnp.maximum(x * s1_ref[...] + t1_ref[...], 0.0)

        # relu(bn2(conv1(xa)))  -- bn2 folded into w1/b1
        h1 = jnp.maximum(_dot32(w1_ref[...], xa) + b1_ref[...], 0.0)   # (Cmid_p, R)
        c_mid_p, R = h1.shape
        P = W + 1

        # relu(bn3(conv2(h1)))  -- 3x3 conv (padding=1), bn3 folded into w2/b2.
        # The 9 taps are flat lane shifts of h1: a zero-padded copy handles the
        # top/bottom image edges, and two column masks kill the row-wrap at the
        # left/right edges.  All taps are stacked along the contraction axis so
        # the whole 3x3 conv is ONE deep MXU matmul (no R x R shift matrices).
        zp = jnp.zeros((c_mid_p, P), jnp.float32)
        h1p = jnp.concatenate([zp, h1, zp], axis=1)         # (Cmid_p, R + 2P)
        cm = cm_ref[...]                                    # (2, R) f32 masks
        not_first_col = cm[0:1, :]                          # 0 where w == 0
        not_last_col = cm[1:2, :]                           # 0 where w == W-1
        taps = []
        for dy in (-1, 0, 1):
            for dx in (-1, 0, 1):
                if dy == 0 and dx == 0:
                    taps.append(h1)                         # center tap: identity
                    continue
                s = dy * W + dx
                sh = h1p[:, P + s:P + s + R]                # output[r] = h1[r + s]
                if dx == -1:
                    sh = sh * not_first_col
                elif dx == 1:
                    sh = sh * not_last_col
                taps.append(sh)
        stack = jnp.concatenate(taps, axis=0)               # (9*Cmid_p, R)
        h2 = jnp.maximum(_dot32(w2_ref[...], stack) + b2_ref[...], 0.0)

        # conv3 + residual (no activation, matching the reference block)
        y = _dot32(w3_ref[...], h2) + b3_ref[...] + res
        o_ref[0] = y.astype(o_ref.dtype)

    return kernel


def resblock_apply(rp, x, H, W):
    """Apply one ResBlock.  x: (N, Cin, R) with R = H*W.  Returns (N, Cout, R)."""
    N, Cin, R = x.shape
    assert R == H * W
    Cmid = rp["conv1"]["w"].shape[0]
    Cout = rp["conv3"]["w"].shape[0]
    Cmid_p = ((Cmid + 7) // 8) * 8        # pad mid channels to a sublane multiple
    has_skip = rp["skip"] is not None

    s1, t1 = _fold_bn(rp["bn1"])
    s2, t2 = _fold_bn(rp["bn2"])
    s3, t3 = _fold_bn(rp["bn3"])

    # Fold bn2 into conv1, bn3 into conv2 (conv -> BN order in the reference).
    w1 = _pad_axis(rp["conv1"]["w"][:, :, 0, 0] * s2, Cmid_p, 0)       # (Cmid_p, Cin)
    b1 = _pad_axis(rp["conv1"]["b"][:, None] * s2 + t2, Cmid_p, 0)     # (Cmid_p, 1)
    w2 = jnp.concatenate(                                              # (Cmid_p, 9*Cmid_p)
        [_pad_axis(_pad_axis(rp["conv2"]["w"][:, :, dy + 1, dx + 1] * s3,
                             Cmid_p, 0), Cmid_p, 1)
         for dy in (-1, 0, 1) for dx in (-1, 0, 1)], axis=1)
    b2 = _pad_axis(rp["conv2"]["b"][:, None] * s3 + t3, Cmid_p, 0)     # (Cmid_p, 1)
    w3 = _pad_axis(rp["conv3"]["w"][:, :, 0, 0], Cmid_p, 1)            # (Cout, Cmid_p)
    b3 = rp["conv3"]["b"][:, None]                                     # (Cout, 1)

    col = jnp.arange(R, dtype=jnp.int32) % W
    colmask = jnp.stack([col > 0, col < W - 1]).astype(jnp.float32)    # (2, R)

    inputs = [x, colmask, s1, t1, w1, b1, w2, b2, w3, b3]
    in_specs = [
        pl.BlockSpec((1, Cin, R), lambda n: (n, 0, 0)),
        pl.BlockSpec((2, R), lambda n: (0, 0)),
        pl.BlockSpec((Cin, 1), lambda n: (0, 0)),
        pl.BlockSpec((Cin, 1), lambda n: (0, 0)),
        pl.BlockSpec((Cmid_p, Cin), lambda n: (0, 0)),
        pl.BlockSpec((Cmid_p, 1), lambda n: (0, 0)),
        pl.BlockSpec((Cmid_p, 9 * Cmid_p), lambda n: (0, 0)),
        pl.BlockSpec((Cmid_p, 1), lambda n: (0, 0)),
        pl.BlockSpec((Cout, Cmid_p), lambda n: (0, 0)),
        pl.BlockSpec((Cout, 1), lambda n: (0, 0)),
    ]
    if has_skip:
        inputs += [rp["skip"]["w"][:, :, 0, 0], rp["skip"]["b"][:, None]]
        in_specs += [pl.BlockSpec((Cout, Cin), lambda n: (0, 0)),
                     pl.BlockSpec((Cout, 1), lambda n: (0, 0))]

    return pl.pallas_call(
        _make_resblock_kernel(has_skip, W),
        out_shape=jax.ShapeDtypeStruct((N, Cout, R), jnp.float32),
        grid=(N,),
        in_specs=in_specs,
        out_specs=pl.BlockSpec((1, Cout, R), lambda n: (n, 0, 0)),
        compiler_params=pltpu.CompilerParams(dimension_semantics=("parallel",)),
    )(*inputs)


# ----------------------------------------------------------------------------
# Pure data-movement glue (single-pass, memory-bound; no matmuls, no constants)
# ----------------------------------------------------------------------------
def _maxpool2x2(x, H, W):
    """2x2/stride-2 max pool in flat-lane layout.  (N,C,H*W) -> (N,C,(H/2)*(W/2)).
    One fused XLA reshape+reduce: reads R, writes R/4 (no 4-sub-grid gather)."""
    N, C, _ = x.shape
    Hq, Wq = H // 2, W // 2
    return jnp.max(x.reshape(N, C, Hq, 2, Wq, 2), axis=(3, 5)).reshape(N, C, Hq * Wq)


def _upsample_add(up1, low3, H, W):
    """up1 + nearest-2x-upsample(low3), flat-lane layout.  Pure broadcast-add
    (no replication matrix, no MXU work); XLA fuses it into one pass."""
    N, F, R = up1.shape
    Hq, Wq = H // 2, W // 2
    up2 = jnp.broadcast_to(low3.reshape(N, F, Hq, 1, Wq, 1),
                           (N, F, Hq, 2, Wq, 2)).reshape(N, F, R)
    return up1 + up2
    # TODO(synk): could be fused into the low3 ResBlock kernel epilogue once an
    # efficient in-kernel Rq->R lane interleave is available.


# ----------------------------------------------------------------------------
# Hourglass forward
# ----------------------------------------------------------------------------
def hourglass_apply(p, x, H, W):
    up1 = resblock_apply(p["up1"], x, H, W)
    pooled = _maxpool2x2(x, H, W)
    Hp, Wp = H // 2, W // 2
    low1 = resblock_apply(p["low1"], pooled, Hp, Wp)
    if p["n"] > 1:
        low2 = hourglass_apply(p["low2"], low1, Hp, Wp)
    else:
        low2 = resblock_apply(p["low2"], low1, Hp, Wp)
    low3 = resblock_apply(p["low3"], low2, Hp, Wp)
    return _upsample_add(up1, low3, H, W)


def hourglass_forward(params, x_nchw):
    N, C, H, W = x_nchw.shape
    x = x_nchw.reshape(N, C, H * W).astype(jnp.float32)   # NCHW flattens directly
    y = hourglass_apply(params, x, H, W)
    return y.reshape(N, -1, H, W)


# ----------------------------------------------------------------------------
# Demo
# ----------------------------------------------------------------------------
if __name__ == "__main__":
    key = jax.random.PRNGKey(0)
    k_params, k_x = jax.random.split(key)

    n, f, increase = 2, 8, 4            # Hourglass(n=2, f=8, increase=4)
    N, H, W = 2, 16, 16
    params = make_hourglass_params(k_params, n=n, f=f, increase=increase)
    x = jax.random.normal(k_x, (N, f, H, W), dtype=jnp.float32)   # NCHW like PyTorch

    fwd = jax.jit(lambda inp: hourglass_forward(params, inp))
    out = jax.block_until_ready(fwd(x))

    assert out.shape == (N, f, H, W), out.shape
    assert out.dtype == jnp.float32
    assert bool(jnp.all(jnp.isfinite(out)))
    print("KERNEL_OK")
</pallas_src>

<mosaic_0001>
module attributes {stable_mosaic.version = 11 : i64} {
  func.func @kernel(%arg0: i32, %arg1: memref<1x8x64xf32, #tpu.memory_space<vmem>>, %arg2: memref<2x64xf32, #tpu.memory_space<vmem>>, %arg3: memref<8x1xf32, #tpu.memory_space<vmem>>, %arg4: memref<8x1xf32, #tpu.memory_space<vmem>>, %arg5: memref<8x8xf32, #tpu.memory_space<vmem>>, %arg6: memref<8x1xf32, #tpu.memory_space<vmem>>, %arg7: memref<8x72xf32, #tpu.memory_space<vmem>>, %arg8: memref<8x1xf32, #tpu.memory_space<vmem>>, %arg9: memref<12x8xf32, #tpu.memory_space<vmem>>, %arg10: memref<12x1xf32, #tpu.memory_space<vmem>>, %arg11: memref<12x8xf32, #tpu.memory_space<vmem>>, %arg12: memref<12x1xf32, #tpu.memory_space<vmem>>, %arg13: memref<1x12x64xf32, #tpu.memory_space<vmem>>) attributes {dimension_semantics = [#tpu.dimension_semantics<parallel>], iteration_bounds = array<i64: 2>, scalar_prefetch = 0 : i64, scratch_operands = 0 : i64, tpu.core_type = #tpu.core_type<tc>, window_params = [{transform_indices = @transform_0, window_bounds = array<i64: 1, 8, 64>}, {pipeline_mode = #tpu.pipeline_mode<synchronous>, transform_indices = @transform_1, window_bounds = array<i64: 2, 64>}, {pipeline_mode = #tpu.pipeline_mode<synchronous>, transform_indices = @transform_2, window_bounds = array<i64: 8, 1>}, {pipeline_mode = #tpu.pipeline_mode<synchronous>, transform_indices = @transform_3, window_bounds = array<i64: 8, 1>}, {pipeline_mode = #tpu.pipeline_mode<synchronous>, transform_indices = @transform_4, window_bounds = array<i64: 8, 8>}, {pipeline_mode = #tpu.pipeline_mode<synchronous>, transform_indices = @transform_5, window_bounds = array<i64: 8, 1>}, {pipeline_mode = #tpu.pipeline_mode<synchronous>, transform_indices = @transform_6, window_bounds = array<i64: 8, 72>}, {pipeline_mode = #tpu.pipeline_mode<synchronous>, transform_indices = @transform_7, window_bounds = array<i64: 8, 1>}, {pipeline_mode = #tpu.pipeline_mode<synchronous>, transform_indices = @transform_8, window_bounds = array<i64: 12, 8>}, {pipeline_mode = #tpu.pipeline_mode<synchronous>, transform_indices = @transform_9, window_bounds = array<i64: 12, 1>}, {pipeline_mode = #tpu.pipeline_mode<synchronous>, transform_indices = @transform_10, window_bounds = array<i64: 12, 8>}, {pipeline_mode = #tpu.pipeline_mode<synchronous>, transform_indices = @transform_11, window_bounds = array<i64: 12, 1>}, {transform_indices = @transform_12, window_bounds = array<i64: 1, 12, 64>}]} {
    %c0 = arith.constant 0 : index
    %c0_0 = arith.constant 0 : index
    %c0_1 = arith.constant 0 : index
    %0 = vector.load %arg1[%c0, %c0_0, %c0_1] : memref<1x8x64xf32, #tpu.memory_space<vmem>>, vector<1x8x64xf32>
    %1 = vector.shape_cast %0 : vector<1x8x64xf32> to vector<8x64xf32>
    %c0_2 = arith.constant 0 : index
    %c0_3 = arith.constant 0 : index
    %2 = vector.load %arg11[%c0_2, %c0_3] : memref<12x8xf32, #tpu.memory_space<vmem>>, vector<12x8xf32>
    %cst = arith.constant dense<0.000000e+00> : vector<12x64xf32>
    %3 = tpu.matmul %2, %1, %cst {dimension_numbers = #tpu.dot_dimension_numbers<[1], [0], [0], [1], [0, 0, 1, 1], [], []>} : vector<12x8xf32>, vector<8x64xf32>, vector<12x64xf32> -> vector<12x64xf32>
    %c0_4 = arith.constant 0 : index
    %c0_5 = arith.constant 0 : index
    %4 = vector.load %arg12[%c0_4, %c0_5] : memref<12x1xf32, #tpu.memory_space<vmem>>, vector<12x1xf32>
    %5 = vector.broadcast %4 : vector<12x1xf32> to vector<12x64xf32>
    %6 = arith.addf %3, %5 : vector<12x64xf32>
    %c0_6 = arith.constant 0 : index
    %c0_7 = arith.constant 0 : index
    %7 = vector.load %arg3[%c0_6, %c0_7] : memref<8x1xf32, #tpu.memory_space<vmem>>, vector<8x1xf32>
    %8 = vector.broadcast %7 : vector<8x1xf32> to vector<8x64xf32>
    %9 = arith.mulf %1, %8 : vector<8x64xf32>
    %c0_8 = arith.constant 0 : index
    %c0_9 = arith.constant 0 : index
    %10 = vector.load %arg4[%c0_8, %c0_9] : memref<8x1xf32, #tpu.memory_space<vmem>>, vector<8x1xf32>
    %11 = vector.broadcast %10 : vector<8x1xf32> to vector<8x64xf32>
    %12 = arith.addf %9, %11 : vector<8x64xf32>
    %cst_10 = arith.constant 0.000000e+00 : f32
    %13 = vector.broadcast %cst_10 : f32 to vector<8x64xf32>
    %14 = arith.maximumf %12, %13 : vector<8x64xf32>
    %c0_11 = arith.constant 0 : index
    %c0_12 = arith.constant 0 : index
    %15 = vector.load %arg5[%c0_11, %c0_12] : memref<8x8xf32, #tpu.memory_space<vmem>>, vector<8x8xf32>
    %cst_13 = arith.constant dense<0.000000e+00> : vector<8x64xf32>
    %16 = tpu.matmul %15, %14, %cst_13 {dimension_numbers = #tpu.dot_dimension_numbers<[1], [0], [0], [1], [0, 0, 1, 1], [], []>} : vector<8x8xf32>, vector<8x64xf32>, vector<8x64xf32> -> vector<8x64xf32>
    %c0_14 = arith.constant 0 : index
    %c0_15 = arith.constant 0 : index
    %17 = vector.load %arg6[%c0_14, %c0_15] : memref<8x1xf32, #tpu.memory_space<vmem>>, vector<8x1xf32>
    %18 = vector.broadcast %17 : vector<8x1xf32> to vector<8x64xf32>
    %19 = arith.addf %16, %18 : vector<8x64xf32>
    %cst_16 = arith.constant 0.000000e+00 : f32
    %20 = vector.broadcast %cst_16 : f32 to vector<8x64xf32>
    %21 = arith.maximumf %19, %20 : vector<8x64xf32>
    %cst_17 = arith.constant 0.000000e+00 : f32
    %22 = vector.broadcast %cst_17 : f32 to vector<8x9xf32>
    %23 = tpu.concatenate %22, %21, %22 in 1 : vector<8x9xf32>, vector<8x64xf32>, vector<8x9xf32> -> vector<8x82xf32>
    %c0_18 = arith.constant 0 : index
    %c0_19 = arith.constant 0 : index
    %24 = vector.load %arg2[%c0_18, %c0_19] : memref<2x64xf32, #tpu.memory_space<vmem>>, vector<2x64xf32>
    %25 = vector.extract_strided_slice %24 {offsets = [0, 0], sizes = [1, 64], strides = [1, 1]} : vector<2x64xf32> to vector<1x64xf32>
    %26 = vector.extract_strided_slice %24 {offsets = [1, 0], sizes = [1, 64], strides = [1, 1]} : vector<2x64xf32> to vector<1x64xf32>
    %27 = vector.extract_strided_slice %23 {offsets = [0, 0], sizes = [8, 64], strides = [1, 1]} : vector<8x82xf32> to vector<8x64xf32>
    %28 = vector.broadcast %25 : vector<1x64xf32> to vector<8x64xf32>
    %29 = arith.mulf %27, %28 : vector<8x64xf32>
    %30 = vector.extract_strided_slice %23 {offsets = [0, 1], sizes = [8, 64], strides = [1, 1]} : vector<8x82xf32> to vector<8x64xf32>
    %31 = vector.extract_strided_slice %23 {offsets = [0, 2], sizes = [8, 64], strides = [1, 1]} : vector<8x82xf32> to vector<8x64xf32>
    %32 = vector.broadcast %26 : vector<1x64xf32> to vector<8x64xf32>
    %33 = arith.mulf %31, %32 : vector<8x64xf32>
    %34 = vector.extract_strided_slice %23 {offsets = [0, 8], sizes = [8, 64], strides = [1, 1]} : vector<8x82xf32> to vector<8x64xf32>
    %35 = vector.broadcast %25 : vector<1x64xf32> to vector<8x64xf32>
    %36 = arith.mulf %34, %35 : vector<8x64xf32>
    %37 = vector.extract_strided_slice %23 {offsets = [0, 10], sizes = [8, 64], strides = [1, 1]} : vector<8x82xf32> to vector<8x64xf32>
    %38 = vector.broadcast %26 : vector<1x64xf32> to vector<8x64xf32>
    %39 = arith.mulf %37, %38 : vector<8x64xf32>
    %40 = vector.extract_strided_slice %23 {offsets = [0, 16], sizes = [8, 64], strides = [1, 1]} : vector<8x82xf32> to vector<8x64xf32>
    %41 = vector.broadcast %25 : vector<1x64xf32> to vector<8x64xf32>
    %42 = arith.mulf %40, %41 : vector<8x64xf32>
    %43 = vector.extract_strided_slice %23 {offsets = [0, 17], sizes = [8, 64], strides = [1, 1]} : vector<8x82xf32> to vector<8x64xf32>
    %44 = vector.extract_strided_slice %23 {offsets = [0, 18], sizes = [8, 64], strides = [1, 1]} : vector<8x82xf32> to vector<8x64xf32>
    %45 = vector.broadcast %26 : vector<1x64xf32> to vector<8x64xf32>
    %46 = arith.mulf %44, %45 : vector<8x64xf32>
    %47 = tpu.concatenate %29, %30, %33, %36, %21, %39, %42, %43, %46 in 0 : vector<8x64xf32>, vector<8x64xf32>, vector<8x64xf32>, vector<8x64xf32>, vector<8x64xf32>, vector<8x64xf32>, vector<8x64xf32>, vector<8x64xf32>, vector<8x64xf32> -> vector<72x64xf32>
    %c0_20 = arith.constant 0 : index
    %c0_21 = arith.constant 0 : index
    %48 = vector.load %arg7[%c0_20, %c0_21] : memref<8x72xf32, #tpu.memory_space<vmem>>, vector<8x72xf32>
    %cst_22 = arith.constant dense<0.000000e+00> : vector<8x64xf32>
    %49 = tpu.matmul %48, %47, %cst_22 {dimension_numbers = #tpu.dot_dimension_numbers<[1], [0], [0], [1], [0, 0, 1, 1], [], []>} : vector<8x72xf32>, vector<72x64xf32>, vector<8x64xf32> -> vector<8x64xf32>
    %c0_23 = arith.constant 0 : index
    %c0_24 = arith.constant 0 : index
    %50 = vector.load %arg8[%c0_23, %c0_24] : memref<8x1xf32, #tpu.memory_space<vmem>>, vector<8x1xf32>
    %51 = vector.broadcast %50 : vector<8x1xf32> to vector<8x64xf32>
    %52 = arith.addf %49, %51 : vector<8x64xf32>
    %cst_25 = arith.constant 0.000000e+00 : f32
    %53 = vector.broadcast %cst_25 : f32 to vector<8x64xf32>
    %54 = arith.maximumf %52, %53 : vector<8x64xf32>
    %c0_26 = arith.constant 0 : index
    %c0_27 = arith.constant 0 : index
    %55 = vector.load %arg9[%c0_26, %c0_27] : memref<12x8xf32, #tpu.memory_space<vmem>>, vector<12x8xf32>
    %cst_28 = arith.constant dense<0.000000e+00> : vector<12x64xf32>
    %56 = tpu.matmul %55, %54, %cst_28 {dimension_numbers = #tpu.dot_dimension_numbers<[1], [0], [0], [1], [0, 0, 1, 1], [], []>} : vector<12x8xf32>, vector<8x64xf32>, vector<12x64xf32> -> vector<12x64xf32>
    %c0_29 = arith.constant 0 : index
    %c0_30 = arith.constant 0 : index
    %57 = vector.load %arg10[%c0_29, %c0_30] : memref<12x1xf32, #tpu.memory_space<vmem>>, vector<12x1xf32>
    %58 = vector.broadcast %57 : vector<12x1xf32> to vector<12x64xf32>
    %59 = arith.addf %56, %58 : vector<12x64xf32>
    %60 = arith.addf %59, %6 : vector<12x64xf32>
    %c0_31 = arith.constant 0 : index
    %c0_32 = arith.constant 0 : index
    %c0_33 = arith.constant 0 : index
    %61 = vector.load %arg13[%c0_31, %c0_32, %c0_33] : memref<1x12x64xf32, #tpu.memory_space<vmem>>, vector<1x12x64xf32>
    %62 = vector.shape_cast %61 : vector<1x12x64xf32> to vector<12x64xf32>
    %63 = vector.shape_cast %60 : vector<12x64xf32> to vector<1x12x64xf32>
    tpu.vector_store %arg13[%c0_31, %c0_32, %c0_33], %63 {strides = array<i32>} : memref<1x12x64xf32, #tpu.memory_space<vmem>>, vector<1x12x64xf32>,
    return
  }
  func.func @transform_0(%arg0: i32) -> (i32, i32, i32) {
    %c0_i32 = arith.constant 0 : i32
    %c0_i32_0 = arith.constant 0 : i32
    %c0_i32_1 = arith.constant 0 : i32
    return %arg0, %c0_i32, %c0_i32_0 : i32, i32, i32
  }
  func.func @transform_1(%arg0: i32) -> (i32, i32) {
    %c0_i32 = arith.constant 0 : i32
    %c0_i32_0 = arith.constant 0 : i32
    %c0_i32_1 = arith.constant 0 : i32
    return %c0_i32, %c0_i32_0 : i32, i32
  }
  func.func @transform_2(%arg0: i32) -> (i32, i32) {
    %c0_i32 = arith.constant 0 : i32
    %c0_i32_0 = arith.constant 0 : i32
    %c0_i32_1 = arith.constant 0 : i32
    return %c0_i32, %c0_i32_0 : i32, i32
  }
  func.func @transform_3(%arg0: i32) -> (i32, i32) {
    %c0_i32 = arith.constant 0 : i32
    %c0_i32_0 = arith.constant 0 : i32
    %c0_i32_1 = arith.constant 0 : i32
    return %c0_i32, %c0_i32_0 : i32, i32
  }
  func.func @transform_4(%arg0: i32) -> (i32, i32) {
    %c0_i32 = arith.constant 0 : i32
    %c0_i32_0 = arith.constant 0 : i32
    %c0_i32_1 = arith.constant 0 : i32
    return %c0_i32, %c0_i32_0 : i32, i32
  }
  func.func @transform_5(%arg0: i32) -> (i32, i32) {
    %c0_i32 = arith.constant 0 : i32
    %c0_i32_0 = arith.constant 0 : i32
    %c0_i32_1 = arith.constant 0 : i32
    return %c0_i32, %c0_i32_0 : i32, i32
  }
  func.func @transform_6(%arg0: i32) -> (i32, i32) {
    %c0_i32 = arith.constant 0 : i32
    %c0_i32_0 = arith.constant 0 : i32
    %c0_i32_1 = arith.constant 0 : i32
    return %c0_i32, %c0_i32_0 : i32, i32
  }
  func.func @transform_7(%arg0: i32) -> (i32, i32) {
    %c0_i32 = arith.constant 0 : i32
    %c0_i32_0 = arith.constant 0 : i32
    %c0_i32_1 = arith.constant 0 : i32
    return %c0_i32, %c0_i32_0 : i32, i32
  }
  func.func @transform_8(%arg0: i32) -> (i32, i32) {
    %c0_i32 = arith.constant 0 : i32
    %c0_i32_0 = arith.constant 0 : i32
    %c0_i32_1 = arith.constant 0 : i32
    return %c0_i32, %c0_i32_0 : i32, i32
  }
  func.func @transform_9(%arg0: i32) -> (i32, i32) {
    %c0_i32 = arith.constant 0 : i32
    %c0_i32_0 = arith.constant 0 : i32
    %c0_i32_1 = arith.constant 0 : i32
    return %c0_i32, %c0_i32_0 : i32, i32
  }
  func.func @transform_10(%arg0: i32) -> (i32, i32) {
    %c0_i32 = arith.constant 0 : i32
    %c0_i32_0 = arith.constant 0 : i32
    %c0_i32_1 = arith.constant 0 : i32
    return %c0_i32, %c0_i32_0 : i32, i32
  }
  func.func @transform_11(%arg0: i32) -> (i32, i32) {
    %c0_i32 = arith.constant 0 : i32
    %c0_i32_0 = arith.constant 0 : i32
    %c0_i32_1 = arith.constant 0 : i32
    return %c0_i32, %c0_i32_0 : i32, i32
  }
  func.func @transform_12(%arg0: i32) -> (i32, i32, i32) {
    %c0_i32 = arith.constant 0 : i32
    %c0_i32_0 = arith.constant 0 : i32
    %c0_i32_1 = arith.constant 0 : i32
    return %arg0, %c0_i32, %c0_i32_0 : i32, i32, i32
  }
}

module attributes {stable_mosaic.version = 11 : i64} {
  func.func @kernel(%arg0: i32, %arg1: memref<1x12x16xf32, #tpu.memory_space<vmem>>, %arg2: memref<2x16xf32, #tpu.memory_space<vmem>>, %arg3: memref<12x1xf32, #tpu.memory_space<vmem>>, %arg4: memref<12x1xf32, #tpu.memory_space<vmem>>, %arg5: memref<8x12xf32, #tpu.memory_space<vmem>>, %arg6: memref<8x1xf32, #tpu.memory_space<vmem>>, %arg7: memref<8x72xf32, #tpu.memory_space<vmem>>, %arg8: memref<8x1xf32, #tpu.memory_space<vmem>>, %arg9: memref<16x8xf32, #tpu.memory_space<vmem>>, %arg10: memref<16x1xf32, #tpu.memory_space<vmem>>, %arg11: memref<16x12xf32, #tpu.memory_space<vmem>>, %arg12: memref<16x1xf32, #tpu.memory_space<vmem>>, %arg13: memref<1x16x16xf32, #tpu.memory_space<vmem>>) attributes {dimension_semantics = [#tpu.dimension_semantics<parallel>], iteration_bounds = array<i64: 2>, scalar_prefetch = 0 : i64, scratch_operands = 0 : i64, tpu.core_type = #tpu.core_type<tc>, window_params = [{transform_indices = @transform_0, window_bounds = array<i64: 1, 12, 16>}, {pipeline_mode = #tpu.pipeline_mode<synchronous>, transform_indices = @transform_1, window_bounds = array<i64: 2, 16>}, {pipeline_mode = #tpu.pipeline_mode<synchronous>, transform_indices = @transform_2, window_bounds = array<i64: 12, 1>}, {pipeline_mode = #tpu.pipeline_mode<synchronous>, transform_indices = @transform_3, window_bounds = array<i64: 12, 1>}, {pipeline_mode = #tpu.pipeline_mode<synchronous>, transform_indices = @transform_4, window_bounds = array<i64: 8, 12>}, {pipeline_mode = #tpu.pipeline_mode<synchronous>, transform_indices = @transform_5, window_bounds = array<i64: 8, 1>}, {pipeline_mode = #tpu.pipeline_mode<synchronous>, transform_indices = @transform_6, window_bounds = array<i64: 8, 72>}, {pipeline_mode = #tpu.pipeline_mode<synchronous>, transform_indices = @transform_7, window_bounds = array<i64: 8, 1>}, {pipeline_mode = #tpu.pipeline_mode<synchronous>, transform_indices = @transform_8, window_bounds = array<i64: 16, 8>}, {pipeline_mode = #tpu.pipeline_mode<synchronous>, transform_indices = @transform_9, window_bounds = array<i64: 16, 1>}, {pipeline_mode = #tpu.pipeline_mode<synchronous>, transform_indices = @transform_10, window_bounds = array<i64: 16, 12>}, {pipeline_mode = #tpu.pipeline_mode<synchronous>, transform_indices = @transform_11, window_bounds = array<i64: 16, 1>}, {transform_indices = @transform_12, window_bounds = array<i64: 1, 16, 16>}]} {
    %c0 = arith.constant 0 : index
    %c0_0 = arith.constant 0 : index
    %c0_1 = arith.constant 0 : index
    %0 = vector.load %arg1[%c0, %c0_0, %c0_1] : memref<1x12x16xf32, #tpu.memory_space<vmem>>, vector<1x12x16xf32>
    %1 = vector.shape_cast %0 : vector<1x12x16xf32> to vector<12x16xf32>
    %c0_2 = arith.constant 0 : index
    %c0_3 = arith.constant 0 : index
    %2 = vector.load %arg11[%c0_2, %c0_3] : memref<16x12xf32, #tpu.memory_space<vmem>>, vector<16x12xf32>
    %cst = arith.constant dense<0.000000e+00> : vector<16x16xf32>
    %3 = tpu.matmul %2, %1, %cst {dimension_numbers = #tpu.dot_dimension_numbers<[1], [0], [0], [1], [0, 0, 1, 1], [], []>} : vector<16x12xf32>, vector<12x16xf32>, vector<16x16xf32> -> vector<16x16xf32>
    %c0_4 = arith.constant 0 : index
    %c0_5 = arith.constant 0 : index
    %4 = vector.load %arg12[%c0_4, %c0_5] : memref<16x1xf32, #tpu.memory_space<vmem>>, vector<16x1xf32>
    %5 = vector.broadcast %4 : vector<16x1xf32> to vector<16x16xf32>
    %6 = arith.addf %3, %5 : vector<16x16xf32>
    %c0_6 = arith.constant 0 : index
    %c0_7 = arith.constant 0 : index
    %7 = vector.load %arg3[%c0_6, %c0_7] : memref<12x1xf32, #tpu.memory_space<vmem>>, vector<12x1xf32>
    %8 = vector.broadcast %7 : vector<12x1xf32> to vector<12x16xf32>
    %9 = arith.mulf %1, %8 : vector<12x16xf32>
    %c0_8 = arith.constant 0 : index
    %c0_9 = arith.constant 0 : index
    %10 = vector.load %arg4[%c0_8, %c0_9] : memref<12x1xf32, #tpu.memory_space<vmem>>, vector<12x1xf32>
    %11 = vector.broadcast %10 : vector<12x1xf32> to vector<12x16xf32>
    %12 = arith.addf %9, %11 : vector<12x16xf32>
    %cst_10 = arith.constant 0.000000e+00 : f32
    %13 = vector.broadcast %cst_10 : f32 to vector<12x16xf32>
    %14 = arith.maximumf %12, %13 : vector<12x16xf32>
    %c0_11 = arith.constant 0 : index
    %c0_12 = arith.constant 0 : index
    %15 = vector.load %arg5[%c0_11, %c0_12] : memref<8x12xf32, #tpu.memory_space<vmem>>, vector<8x12xf32>
    %cst_13 = arith.constant dense<0.000000e+00> : vector<8x16xf32>
    %16 = tpu.matmul %15, %14, %cst_13 {dimension_numbers = #tpu.dot_dimension_numbers<[1], [0], [0], [1], [0, 0, 1, 1], [], []>} : vector<8x12xf32>, vector<12x16xf32>, vector<8x16xf32> -> vector<8x16xf32>
    %c0_14 = arith.constant 0 : index
    %c0_15 = arith.constant 0 : index
    %17 = vector.load %arg6[%c0_14, %c0_15] : memref<8x1xf32, #tpu.memory_space<vmem>>, vector<8x1xf32>
    %18 = vector.broadcast %17 : vector<8x1xf32> to vector<8x16xf32>
    %19 = arith.addf %16, %18 : vector<8x16xf32>
    %cst_16 = arith.constant 0.000000e+00 : f32
    %20 = vector.broadcast %cst_16 : f32 to vector<8x16xf32>
    %21 = arith.maximumf %19, %20 : vector<8x16xf32>
    %cst_17 = arith.constant 0.000000e+00 : f32
    %22 = vector.broadcast %cst_17 : f32 to vector<8x5xf32>
    %23 = tpu.concatenate %22, %21, %22 in 1 : vector<8x5xf32>, vector<8x16xf32>, vector<8x5xf32> -> vector<8x26xf32>
    %c0_18 = arith.constant 0 : index
    %c0_19 = arith.constant 0 : index
    %24 = vector.load %arg2[%c0_18, %c0_19] : memref<2x16xf32, #tpu.memory_space<vmem>>, vector<2x16xf32>
    %25 = vector.extract_strided_slice %24 {offsets = [0, 0], sizes = [1, 16], strides = [1, 1]} : vector<2x16xf32> to vector<1x16xf32>
    %26 = vector.extract_strided_slice %24 {offsets = [1, 0], sizes = [1, 16], strides = [1, 1]} : vector<2x16xf32> to vector<1x16xf32>
    %27 = vector.extract_strided_slice %23 {offsets = [0, 0], sizes = [8, 16], strides = [1, 1]} : vector<8x26xf32> to vector<8x16xf32>
    %28 = vector.broadcast %25 : vector<1x16xf32> to vector<8x16xf32>
    %29 = arith.mulf %27, %28 : vector<8x16xf32>
    %30 = vector.extract_strided_slice %23 {offsets = [0, 1], sizes = [8, 16], strides = [1, 1]} : vector<8x26xf32> to vector<8x16xf32>
    %31 = vector.extract_strided_slice %23 {offsets = [0, 2], sizes = [8, 16], strides = [1, 1]} : vector<8x26xf32> to vector<8x16xf32>
    %32 = vector.broadcast %26 : vector<1x16xf32> to vector<8x16xf32>
    %33 = arith.mulf %31, %32 : vector<8x16xf32>
    %34 = vector.extract_strided_slice %23 {offsets = [0, 4], sizes = [8, 16], strides = [1, 1]} : vector<8x26xf32> to vector<8x16xf32>
    %35 = vector.broadcast %25 : vector<1x16xf32> to vector<8x16xf32>
    %36 = arith.mulf %34, %35 : vector<8x16xf32>
    %37 = vector.extract_strided_slice %23 {offsets = [0, 6], sizes = [8, 16], strides = [1, 1]} : vector<8x26xf32> to vector<8x16xf32>
    %38 = vector.broadcast %26 : vector<1x16xf32> to vector<8x16xf32>
    %39 = arith.mulf %37, %38 : vector<8x16xf32>
    %40 = vector.extract_strided_slice %23 {offsets = [0, 8], sizes = [8, 16], strides = [1, 1]} : vector<8x26xf32> to vector<8x16xf32>
    %41 = vector.broadcast %25 : vector<1x16xf32> to vector<8x16xf32>
    %42 = arith.mulf %40, %41 : vector<8x16xf32>
    %43 = vector.extract_strided_slice %23 {offsets = [0, 9], sizes = [8, 16], strides = [1, 1]} : vector<8x26xf32> to vector<8x16xf32>
    %44 = vector.extract_strided_slice %23 {offsets = [0, 10], sizes = [8, 16], strides = [1, 1]} : vector<8x26xf32> to vector<8x16xf32>
    %45 = vector.broadcast %26 : vector<1x16xf32> to vector<8x16xf32>
    %46 = arith.mulf %44, %45 : vector<8x16xf32>
    %47 = tpu.concatenate %29, %30, %33, %36, %21, %39, %42, %43, %46 in 0 : vector<8x16xf32>, vector<8x16xf32>, vector<8x16xf32>, vector<8x16xf32>, vector<8x16xf32>, vector<8x16xf32>, vector<8x16xf32>, vector<8x16xf32>, vector<8x16xf32> -> vector<72x16xf32>
    %c0_20 = arith.constant 0 : index
    %c0_21 = arith.constant 0 : index
    %48 = vector.load %arg7[%c0_20, %c0_21] : memref<8x72xf32, #tpu.memory_space<vmem>>, vector<8x72xf32>
    %cst_22 = arith.constant dense<0.000000e+00> : vector<8x16xf32>
    %49 = tpu.matmul %48, %47, %cst_22 {dimension_numbers = #tpu.dot_dimension_numbers<[1], [0], [0], [1], [0, 0, 1, 1], [], []>} : vector<8x72xf32>, vector<72x16xf32>, vector<8x16xf32> -> vector<8x16xf32>
    %c0_23 = arith.constant 0 : index
    %c0_24 = arith.constant 0 : index
    %50 = vector.load %arg8[%c0_23, %c0_24] : memref<8x1xf32, #tpu.memory_space<vmem>>, vector<8x1xf32>
    %51 = vector.broadcast %50 : vector<8x1xf32> to vector<8x16xf32>
    %52 = arith.addf %49, %51 : vector<8x16xf32>
    %cst_25 = arith.constant 0.000000e+00 : f32
    %53 = vector.broadcast %cst_25 : f32 to vector<8x16xf32>
    %54 = arith.maximumf %52, %53 : vector<8x16xf32>
    %c0_26 = arith.constant 0 : index
    %c0_27 = arith.constant 0 : index
    %55 = vector.load %arg9[%c0_26, %c0_27] : memref<16x8xf32, #tpu.memory_space<vmem>>, vector<16x8xf32>
    %cst_28 = arith.constant dense<0.000000e+00> : vector<16x16xf32>
    %56 = tpu.matmul %55, %54, %cst_28 {dimension_numbers = #tpu.dot_dimension_numbers<[1], [0], [0], [1], [0, 0, 1, 1], [], []>} : vector<16x8xf32>, vector<8x16xf32>, vector<16x16xf32> -> vector<16x16xf32>
    %c0_29 = arith.constant 0 : index
    %c0_30 = arith.constant 0 : index
    %57 = vector.load %arg10[%c0_29, %c0_30] : memref<16x1xf32, #tpu.memory_space<vmem>>, vector<16x1xf32>
    %58 = vector.broadcast %57 : vector<16x1xf32> to vector<16x16xf32>
    %59 = arith.addf %56, %58 : vector<16x16xf32>
    %60 = arith.addf %59, %6 : vector<16x16xf32>
    %c0_31 = arith.constant 0 : index
    %c0_32 = arith.constant 0 : index
    %c0_33 = arith.constant 0 : index
    %61 = vector.load %arg13[%c0_31, %c0_32, %c0_33] : memref<1x16x16xf32, #tpu.memory_space<vmem>>, vector<1x16x16xf32>
    %62 = vector.shape_cast %61 : vector<1x16x16xf32> to vector<16x16xf32>
    %63 = vector.shape_cast %60 : vector<16x16xf32> to vector<1x16x16xf32>
    tpu.vector_store %arg13[%c0_31, %c0_32, %c0_33], %63 {strides = array<i32>} : memref<1x16x16xf32, #tpu.memory_space<vmem>>, vector<1x16x16xf32>,
    return
  }
  func.func @transform_0(%arg0: i32) -> (i32, i32, i32) {
    %c0_i32 = arith.constant 0 : i32
    %c0_i32_0 = arith.constant 0 : i32
    %c0_i32_1 = arith.constant 0 : i32
    return %arg0, %c0_i32, %c0_i32_0 : i32, i32, i32
  }
  func.func @transform_1(%arg0: i32) -> (i32, i32) {
    %c0_i32 = arith.constant 0 : i32
    %c0_i32_0 = arith.constant 0 : i32
    %c0_i32_1 = arith.constant 0 : i32
    return %c0_i32, %c0_i32_0 : i32, i32
  }
  func.func @transform_2(%arg0: i32) -> (i32, i32) {
    %c0_i32 = arith.constant 0 : i32
    %c0_i32_0 = arith.constant 0 : i32
    %c0_i32_1 = arith.constant 0 : i32
    return %c0_i32, %c0_i32_0 : i32, i32
  }
  func.func @transform_3(%arg0: i32) -> (i32, i32) {
    %c0_i32 = arith.constant 0 : i32
    %c0_i32_0 = arith.constant 0 : i32
    %c0_i32_1 = arith.constant 0 : i32
    return %c0_i32, %c0_i32_0 : i32, i32
  }
  func.func @transform_4(%arg0: i32) -> (i32, i32) {
    %c0_i32 = arith.constant 0 : i32
    %c0_i32_0 = arith.constant 0 : i32
    %c0_i32_1 = arith.constant 0 : i32
    return %c0_i32, %c0_i32_0 : i32, i32
  }
  func.func @transform_5(%arg0: i32) -> (i32, i32) {
    %c0_i32 = arith.constant 0 : i32
    %c0_i32_0 = arith.constant 0 : i32
    %c0_i32_1 = arith.constant 0 : i32
    return %c0_i32, %c0_i32_0 : i32, i32
  }
  func.func @transform_6(%arg0: i32) -> (i32, i32) {
    %c0_i32 = arith.constant 0 : i32
    %c0_i32_0 = arith.constant 0 : i32
    %c0_i32_1 = arith.constant 0 : i32
    return %c0_i32, %c0_i32_0 : i32, i32
  }
  func.func @transform_7(%arg0: i32) -> (i32, i32) {
    %c0_i32 = arith.constant 0 : i32
    %c0_i32_0 = arith.constant 0 : i32
    %c0_i32_1 = arith.constant 0 : i32
    return %c0_i32, %c0_i32_0 : i32, i32
  }
  func.func @transform_8(%arg0: i32) -> (i32, i32) {
    %c0_i32 = arith.constant 0 : i32
    %c0_i32_0 = arith.constant 0 : i32
    %c0_i32_1 = arith.constant 0 : i32
    return %c0_i32, %c0_i32_0 : i32, i32
  }
  func.func @transform_9(%arg0: i32) -> (i32, i32) {
    %c0_i32 = arith.constant 0 : i32
    %c0_i32_0 = arith.constant 0 : i32
    %c0_i32_1 = arith.constant 0 : i32
    return %c0_i32, %c0_i32_0 : i32, i32
  }
  func.func @transform_10(%arg0: i32) -> (i32, i32) {
    %c0_i32 = arith.constant 0 : i32
    %c0_i32_0 = arith.constant 0 : i32
    %c0_i32_1 = arith.constant 0 : i32
    return %c0_i32, %c0_i32_0 : i32, i32
  }
  func.func @transform_11(%arg0: i32) -> (i32, i32) {
    %c0_i32 = arith.constant 0 : i32
    %c0_i32_0 = arith.constant 0 : i32
    %c0_i32_1 = arith.constant 0 : i32
    return %c0_i32, %c0_i32_0 : i32, i32
  }
  func.func @transform_12(%arg0: i32) -> (i32, i32, i32) {
    %c0_i32 = arith.constant 0 : i32
    %c0_i32_0 = arith.constant 0 : i32
    %c0_i32_1 = arith.constant 0 : i32
    return %arg0, %c0_i32, %c0_i32_0 : i32, i32, i32
  }
}

module attributes {stable_mosaic.version = 11 : i64} {
  func.func @kernel(%arg0: i32, %arg1: memref<1x16x16xf32, #tpu.memory_space<vmem>>, %arg2: memref<2x16xf32, #tpu.memory_space<vmem>>, %arg3: memref<16x1xf32, #tpu.memory_space<vmem>>, %arg4: memref<16x1xf32, #tpu.memory_space<vmem>>, %arg5: memref<8x16xf32, #tpu.memory_space<vmem>>, %arg6: memref<8x1xf32, #tpu.memory_space<vmem>>, %arg7: memref<8x72xf32, #tpu.memory_space<vmem>>, %arg8: memref<8x1xf32, #tpu.memory_space<vmem>>, %arg9: memref<16x8xf32, #tpu.memory_space<vmem>>, %arg10: memref<16x1xf32, #tpu.memory_space<vmem>>, %arg11: memref<1x16x16xf32, #tpu.memory_space<vmem>>) attributes {dimension_semantics = [#tpu.dimension_semantics<parallel>], iteration_bounds = array<i64: 2>, scalar_prefetch = 0 : i64, scratch_operands = 0 : i64, tpu.core_type = #tpu.core_type<tc>, window_params = [{transform_indices = @transform_0, window_bounds = array<i64: 1, 16, 16>}, {pipeline_mode = #tpu.pipeline_mode<synchronous>, transform_indices = @transform_1, window_bounds = array<i64: 2, 16>}, {pipeline_mode = #tpu.pipeline_mode<synchronous>, transform_indices = @transform_2, window_bounds = array<i64: 16, 1>}, {pipeline_mode = #tpu.pipeline_mode<synchronous>, transform_indices = @transform_3, window_bounds = array<i64: 16, 1>}, {pipeline_mode = #tpu.pipeline_mode<synchronous>, transform_indices = @transform_4, window_bounds = array<i64: 8, 16>}, {pipeline_mode = #tpu.pipeline_mode<synchronous>, transform_indices = @transform_5, window_bounds = array<i64: 8, 1>}, {pipeline_mode = #tpu.pipeline_mode<synchronous>, transform_indices = @transform_6, window_bounds = array<i64: 8, 72>}, {pipeline_mode = #tpu.pipeline_mode<synchronous>, transform_indices = @transform_7, window_bounds = array<i64: 8, 1>}, {pipeline_mode = #tpu.pipeline_mode<synchronous>, transform_indices = @transform_8, window_bounds = array<i64: 16, 8>}, {pipeline_mode = #tpu.pipeline_mode<synchronous>, transform_indices = @transform_9, window_bounds = array<i64: 16, 1>}, {transform_indices = @transform_10, window_bounds = array<i64: 1, 16, 16>}]} {
    %c0 = arith.constant 0 : index
    %c0_0 = arith.constant 0 : index
    %c0_1 = arith.constant 0 : index
    %0 = vector.load %arg1[%c0, %c0_0, %c0_1] : memref<1x16x16xf32, #tpu.memory_space<vmem>>, vector<1x16x16xf32>
    %1 = vector.shape_cast %0 : vector<1x16x16xf32> to vector<16x16xf32>
    %c0_2 = arith.constant 0 : index
    %c0_3 = arith.constant 0 : index
    %2 = vector.load %arg3[%c0_2, %c0_3] : memref<16x1xf32, #tpu.memory_space<vmem>>, vector<16x1xf32>
    %3 = vector.broadcast %2 : vector<16x1xf32> to vector<16x16xf32>
    %4 = arith.mulf %1, %3 : vector<16x16xf32>
    %c0_4 = arith.constant 0 : index
    %c0_5 = arith.constant 0 : index
    %5 = vector.load %arg4[%c0_4, %c0_5] : memref<16x1xf32, #tpu.memory_space<vmem>>, vector<16x1xf32>
    %6 = vector.broadcast %5 : vector<16x1xf32> to vector<16x16xf32>
    %7 = arith.addf %4, %6 : vector<16x16xf32>
    %cst = arith.constant 0.000000e+00 : f32
    %8 = vector.broadcast %cst : f32 to vector<16x16xf32>
    %9 = arith.maximumf %7, %8 : vector<16x16xf32>
    %c0_6 = arith.constant 0 : index
    %c0_7 = arith.constant 0 : index
    %10 = vector.load %arg5[%c0_6, %c0_7] : memref<8x16xf32, #tpu.memory_space<vmem>>, vector<8x16xf32>
    %cst_8 = arith.constant dense<0.000000e+00> : vector<8x16xf32>
    %11 = tpu.matmul %10, %9, %cst_8 {dimension_numbers = #tpu.dot_dimension_numbers<[1], [0], [0], [1], [0, 0, 1, 1], [], []>} : vector<8x16xf32>, vector<16x16xf32>, vector<8x16xf32> -> vector<8x16xf32>
    %c0_9 = arith.constant 0 : index
    %c0_10 = arith.constant 0 : index
    %12 = vector.load %arg6[%c0_9, %c0_10] : memref<8x1xf32, #tpu.memory_space<vmem>>, vector<8x1xf32>
    %13 = vector.broadcast %12 : vector<8x1xf32> to vector<8x16xf32>
    %14 = arith.addf %11, %13 : vector<8x16xf32>
    %cst_11 = arith.constant 0.000000e+00 : f32
    %15 = vector.broadcast %cst_11 : f32 to vector<8x16xf32>
    %16 = arith.maximumf %14, %15 : vector<8x16xf32>
    %cst_12 = arith.constant 0.000000e+00 : f32
    %17 = vector.broadcast %cst_12 : f32 to vector<8x5xf32>
    %18 = tpu.concatenate %17, %16, %17 in 1 : vector<8x5xf32>, vector<8x16xf32>, vector<8x5xf32> -> vector<8x26xf32>
    %c0_13 = arith.constant 0 : index
    %c0_14 = arith.constant 0 : index
    %19 = vector.load %arg2[%c0_13, %c0_14] : memref<2x16xf32, #tpu.memory_space<vmem>>, vector<2x16xf32>
    %20 = vector.extract_strided_slice %19 {offsets = [0, 0], sizes = [1, 16], strides = [1, 1]} : vector<2x16xf32> to vector<1x16xf32>
    %21 = vector.extract_strided_slice %19 {offsets = [1, 0], sizes = [1, 16], strides = [1, 1]} : vector<2x16xf32> to vector<1x16xf32>
    %22 = vector.extract_strided_slice %18 {offsets = [0, 0], sizes = [8, 16], strides = [1, 1]} : vector<8x26xf32> to vector<8x16xf32>
    %23 = vector.broadcast %20 : vector<1x16xf32> to vector<8x16xf32>
    %24 = arith.mulf %22, %23 : vector<8x16xf32>
    %25 = vector.extract_strided_slice %18 {offsets = [0, 1], sizes = [8, 16], strides = [1, 1]} : vector<8x26xf32> to vector<8x16xf32>
    %26 = vector.extract_strided_slice %18 {offsets = [0, 2], sizes = [8, 16], strides = [1, 1]} : vector<8x26xf32> to vector<8x16xf32>
    %27 = vector.broadcast %21 : vector<1x16xf32> to vector<8x16xf32>
    %28 = arith.mulf %26, %27 : vector<8x16xf32>
    %29 = vector.extract_strided_slice %18 {offsets = [0, 4], sizes = [8, 16], strides = [1, 1]} : vector<8x26xf32> to vector<8x16xf32>
    %30 = vector.broadcast %20 : vector<1x16xf32> to vector<8x16xf32>
    %31 = arith.mulf %29, %30 : vector<8x16xf32>
    %32 = vector.extract_strided_slice %18 {offsets = [0, 6], sizes = [8, 16], strides = [1, 1]} : vector<8x26xf32> to vector<8x16xf32>
    %33 = vector.broadcast %21 : vector<1x16xf32> to vector<8x16xf32>
    %34 = arith.mulf %32, %33 : vector<8x16xf32>
    %35 = vector.extract_strided_slice %18 {offsets = [0, 8], sizes = [8, 16], strides = [1, 1]} : vector<8x26xf32> to vector<8x16xf32>
    %36 = vector.broadcast %20 : vector<1x16xf32> to vector<8x16xf32>
    %37 = arith.mulf %35, %36 : vector<8x16xf32>
    %38 = vector.extract_strided_slice %18 {offsets = [0, 9], sizes = [8, 16], strides = [1, 1]} : vector<8x26xf32> to vector<8x16xf32>
    %39 = vector.extract_strided_slice %18 {offsets = [0, 10], sizes = [8, 16], strides = [1, 1]} : vector<8x26xf32> to vector<8x16xf32>
    %40 = vector.broadcast %21 : vector<1x16xf32> to vector<8x16xf32>
    %41 = arith.mulf %39, %40 : vector<8x16xf32>
    %42 = tpu.concatenate %24, %25, %28, %31, %16, %34, %37, %38, %41 in 0 : vector<8x16xf32>, vector<8x16xf32>, vector<8x16xf32>, vector<8x16xf32>, vector<8x16xf32>, vector<8x16xf32>, vector<8x16xf32>, vector<8x16xf32>, vector<8x16xf32> -> vector<72x16xf32>
    %c0_15 = arith.constant 0 : index
    %c0_16 = arith.constant 0 : index
    %43 = vector.load %arg7[%c0_15, %c0_16] : memref<8x72xf32, #tpu.memory_space<vmem>>, vector<8x72xf32>
    %cst_17 = arith.constant dense<0.000000e+00> : vector<8x16xf32>
    %44 = tpu.matmul %43, %42, %cst_17 {dimension_numbers = #tpu.dot_dimension_numbers<[1], [0], [0], [1], [0, 0, 1, 1], [], []>} : vector<8x72xf32>, vector<72x16xf32>, vector<8x16xf32> -> vector<8x16xf32>
    %c0_18 = arith.constant 0 : index
    %c0_19 = arith.constant 0 : index
    %45 = vector.load %arg8[%c0_18, %c0_19] : memref<8x1xf32, #tpu.memory_space<vmem>>, vector<8x1xf32>
    %46 = vector.broadcast %45 : vector<8x1xf32> to vector<8x16xf32>
    %47 = arith.addf %44, %46 : vector<8x16xf32>
    %cst_20 = arith.constant 0.000000e+00 : f32
    %48 = vector.broadcast %cst_20 : f32 to vector<8x16xf32>
    %49 = arith.maximumf %47, %48 : vector<8x16xf32>
    %c0_21 = arith.constant 0 : index
    %c0_22 = arith.constant 0 : index
    %50 = vector.load %arg9[%c0_21, %c0_22] : memref<16x8xf32, #tpu.memory_space<vmem>>, vector<16x8xf32>
    %cst_23 = arith.constant dense<0.000000e+00> : vector<16x16xf32>
    %51 = tpu.matmul %50, %49, %cst_23 {dimension_numbers = #tpu.dot_dimension_numbers<[1], [0], [0], [1], [0, 0, 1, 1], [], []>} : vector<16x8xf32>, vector<8x16xf32>, vector<16x16xf32> -> vector<16x16xf32>
    %c0_24 = arith.constant 0 : index
    %c0_25 = arith.constant 0 : index
    %52 = vector.load %arg10[%c0_24, %c0_25] : memref<16x1xf32, #tpu.memory_space<vmem>>, vector<16x1xf32>
    %53 = vector.broadcast %52 : vector<16x1xf32> to vector<16x16xf32>
    %54 = arith.addf %51, %53 : vector<16x16xf32>
    %55 = arith.addf %54, %1 : vector<16x16xf32>
    %c0_26 = arith.constant 0 : index
    %c0_27 = arith.constant 0 : index
    %c0_28 = arith.constant 0 : index
    %56 = vector.load %arg11[%c0_26, %c0_27, %c0_28] : memref<1x16x16xf32, #tpu.memory_space<vmem>>, vector<1x16x16xf32>
    %57 = vector.shape_cast %56 : vector<1x16x16xf32> to vector<16x16xf32>
    %58 = vector.shape_cast %55 : vector<16x16xf32> to vector<1x16x16xf32>
    tpu.vector_store %arg11[%c0_26, %c0_27, %c0_28], %58 {strides = array<i32>} : memref<1x16x16xf32, #tpu.memory_space<vmem>>, vector<1x16x16xf32>,
    return
  }
  func.func @transform_0(%arg0: i32) -> (i32, i32, i32) {
    %c0_i32 = arith.constant 0 : i32
    %c0_i32_0 = arith.constant 0 : i32
    %c0_i32_1 = arith.constant 0 : i32
    return %arg0, %c0_i32, %c0_i32_0 : i32, i32, i32
  }
  func.func @transform_1(%arg0: i32) -> (i32, i32) {
    %c0_i32 = arith.constant 0 : i32
    %c0_i32_0 = arith.constant 0 : i32
    %c0_i32_1 = arith.constant 0 : i32
    return %c0_i32, %c0_i32_0 : i32, i32
  }
  func.func @transform_2(%arg0: i32) -> (i32, i32) {
    %c0_i32 = arith.constant 0 : i32
    %c0_i32_0 = arith.constant 0 : i32
    %c0_i32_1 = arith.constant 0 : i32
    return %c0_i32, %c0_i32_0 : i32, i32
  }
  func.func @transform_3(%arg0: i32) -> (i32, i32) {
    %c0_i32 = arith.constant 0 : i32
    %c0_i32_0 = arith.constant 0 : i32
    %c0_i32_1 = arith.constant 0 : i32
    return %c0_i32, %c0_i32_0 : i32, i32
  }
  func.func @transform_4(%arg0: i32) -> (i32, i32) {
    %c0_i32 = arith.constant 0 : i32
    %c0_i32_0 = arith.constant 0 : i32
    %c0_i32_1 = arith.constant 0 : i32
    return %c0_i32, %c0_i32_0 : i32, i32
  }
  func.func @transform_5(%arg0: i32) -> (i32, i32) {
    %c0_i32 = arith.constant 0 : i32
    %c0_i32_0 = arith.constant 0 : i32
    %c0_i32_1 = arith.constant 0 : i32
    return %c0_i32, %c0_i32_0 : i32, i32
  }
  func.func @transform_6(%arg0: i32) -> (i32, i32) {
    %c0_i32 = arith.constant 0 : i32
    %c0_i32_0 = arith.constant 0 : i32
    %c0_i32_1 = arith.constant 0 : i32
    return %c0_i32, %c0_i32_0 : i32, i32
  }
  func.func @transform_7(%arg0: i32) -> (i32, i32) {
    %c0_i32 = arith.constant 0 : i32
    %c0_i32_0 = arith.constant 0 : i32
    %c0_i32_1 = arith.constant 0 : i32
    return %c0_i32, %c0_i32_0 : i32, i32
  }
  func.func @transform_8(%arg0: i32) -> (i32, i32) {
    %c0_i32 = arith.constant 0 : i32
    %c0_i32_0 = arith.constant 0 : i32
    %c0_i32_1 = arith.constant 0 : i32
    return %c0_i32, %c0_i32_0 : i32, i32
  }
  func.func @transform_9(%arg0: i32) -> (i32, i32) {
    %c0_i32 = arith.constant 0 : i32
    %c0_i32_0 = arith.constant 0 : i32
    %c0_i32_1 = arith.constant 0 : i32
    return %c0_i32, %c0_i32_0 : i32, i32
  }
  func.func @transform_10(%arg0: i32) -> (i32, i32, i32) {
    %c0_i32 = arith.constant 0 : i32
    %c0_i32_0 = arith.constant 0 : i32
    %c0_i32_1 = arith.constant 0 : i32
    return %arg0, %c0_i32, %c0_i32_0 : i32, i32, i32
  }
}

module attributes {stable_mosaic.version = 11 : i64} {
  func.func @kernel(%arg0: i32, %arg1: memref<1x16x16xf32, #tpu.memory_space<vmem>>, %arg2: memref<2x16xf32, #tpu.memory_space<vmem>>, %arg3: memref<16x1xf32, #tpu.memory_space<vmem>>, %arg4: memref<16x1xf32, #tpu.memory_space<vmem>>, %arg5: memref<8x16xf32, #tpu.memory_space<vmem>>, %arg6: memref<8x1xf32, #tpu.memory_space<vmem>>, %arg7: memref<8x72xf32, #tpu.memory_space<vmem>>, %arg8: memref<8x1xf32, #tpu.memory_space<vmem>>, %arg9: memref<12x8xf32, #tpu.memory_space<vmem>>, %arg10: memref<12x1xf32, #tpu.memory_space<vmem>>, %arg11: memref<12x16xf32, #tpu.memory_space<vmem>>, %arg12: memref<12x1xf32, #tpu.memory_space<vmem>>, %arg13: memref<1x12x16xf32, #tpu.memory_space<vmem>>) attributes {dimension_semantics = [#tpu.dimension_semantics<parallel>], iteration_bounds = array<i64: 2>, scalar_prefetch = 0 : i64, scratch_operands = 0 : i64, tpu.core_type = #tpu.core_type<tc>, window_params = [{transform_indices = @transform_0, window_bounds = array<i64: 1, 16, 16>}, {pipeline_mode = #tpu.pipeline_mode<synchronous>, transform_indices = @transform_1, window_bounds = array<i64: 2, 16>}, {pipeline_mode = #tpu.pipeline_mode<synchronous>, transform_indices = @transform_2, window_bounds = array<i64: 16, 1>}, {pipeline_mode = #tpu.pipeline_mode<synchronous>, transform_indices = @transform_3, window_bounds = array<i64: 16, 1>}, {pipeline_mode = #tpu.pipeline_mode<synchronous>, transform_indices = @transform_4, window_bounds = array<i64: 8, 16>}, {pipeline_mode = #tpu.pipeline_mode<synchronous>, transform_indices = @transform_5, window_bounds = array<i64: 8, 1>}, {pipeline_mode = #tpu.pipeline_mode<synchronous>, transform_indices = @transform_6, window_bounds = array<i64: 8, 72>}, {pipeline_mode = #tpu.pipeline_mode<synchronous>, transform_indices = @transform_7, window_bounds = array<i64: 8, 1>}, {pipeline_mode = #tpu.pipeline_mode<synchronous>, transform_indices = @transform_8, window_bounds = array<i64: 12, 8>}, {pipeline_mode = #tpu.pipeline_mode<synchronous>, transform_indices = @transform_9, window_bounds = array<i64: 12, 1>}, {pipeline_mode = #tpu.pipeline_mode<synchronous>, transform_indices = @transform_10, window_bounds = array<i64: 12, 16>}, {pipeline_mode = #tpu.pipeline_mode<synchronous>, transform_indices = @transform_11, window_bounds = array<i64: 12, 1>}, {transform_indices = @transform_12, window_bounds = array<i64: 1, 12, 16>}]} {
    %c0 = arith.constant 0 : index
    %c0_0 = arith.constant 0 : index
    %c0_1 = arith.constant 0 : index
    %0 = vector.load %arg1[%c0, %c0_0, %c0_1] : memref<1x16x16xf32, #tpu.memory_space<vmem>>, vector<1x16x16xf32>
    %1 = vector.shape_cast %0 : vector<1x16x16xf32> to vector<16x16xf32>
    %c0_2 = arith.constant 0 : index
    %c0_3 = arith.constant 0 : index
    %2 = vector.load %arg11[%c0_2, %c0_3] : memref<12x16xf32, #tpu.memory_space<vmem>>, vector<12x16xf32>
    %cst = arith.constant dense<0.000000e+00> : vector<12x16xf32>
    %3 = tpu.matmul %2, %1, %cst {dimension_numbers = #tpu.dot_dimension_numbers<[1], [0], [0], [1], [0, 0, 1, 1], [], []>} : vector<12x16xf32>, vector<16x16xf32>, vector<12x16xf32> -> vector<12x16xf32>
    %c0_4 = arith.constant 0 : index
    %c0_5 = arith.constant 0 : index
    %4 = vector.load %arg12[%c0_4, %c0_5] : memref<12x1xf32, #tpu.memory_space<vmem>>, vector<12x1xf32>
    %5 = vector.broadcast %4 : vector<12x1xf32> to vector<12x16xf32>
    %6 = arith.addf %3, %5 : vector<12x16xf32>
    %c0_6 = arith.constant 0 : index
    %c0_7 = arith.constant 0 : index
    %7 = vector.load %arg3[%c0_6, %c0_7] : memref<16x1xf32, #tpu.memory_space<vmem>>, vector<16x1xf32>
    %8 = vector.broadcast %7 : vector<16x1xf32> to vector<16x16xf32>
    %9 = arith.mulf %1, %8 : vector<16x16xf32>
    %c0_8 = arith.constant 0 : index
    %c0_9 = arith.constant 0 : index
    %10 = vector.load %arg4[%c0_8, %c0_9] : memref<16x1xf32, #tpu.memory_space<vmem>>, vector<16x1xf32>
    %11 = vector.broadcast %10 : vector<16x1xf32> to vector<16x16xf32>
    %12 = arith.addf %9, %11 : vector<16x16xf32>
    %cst_10 = arith.constant 0.000000e+00 : f32
    %13 = vector.broadcast %cst_10 : f32 to vector<16x16xf32>
    %14 = arith.maximumf %12, %13 : vector<16x16xf32>
    %c0_11 = arith.constant 0 : index
    %c0_12 = arith.constant 0 : index
    %15 = vector.load %arg5[%c0_11, %c0_12] : memref<8x16xf32, #tpu.memory_space<vmem>>, vector<8x16xf32>
    %cst_13 = arith.constant dense<0.000000e+00> : vector<8x16xf32>
    %16 = tpu.matmul %15, %14, %cst_13 {dimension_numbers = #tpu.dot_dimension_numbers<[1], [0], [0], [1], [0, 0, 1, 1], [], []>} : vector<8x16xf32>, vector<16x16xf32>, vector<8x16xf32> -> vector<8x16xf32>
    %c0_14 = arith.constant 0 : index
    %c0_15 = arith.constant 0 : index
    %17 = vector.load %arg6[%c0_14, %c0_15] : memref<8x1xf32, #tpu.memory_space<vmem>>, vector<8x1xf32>
    %18 = vector.broadcast %17 : vector<8x1xf32> to vector<8x16xf32>
    %19 = arith.addf %16, %18 : vector<8x16xf32>
    %cst_16 = arith.constant 0.000000e+00 : f32
    %20 = vector.broadcast %cst_16 : f32 to vector<8x16xf32>
    %21 = arith.maximumf %19, %20 : vector<8x16xf32>
    %cst_17 = arith.constant 0.000000e+00 : f32
    %22 = vector.broadcast %cst_17 : f32 to vector<8x5xf32>
    %23 = tpu.concatenate %22, %21, %22 in 1 : vector<8x5xf32>, vector<8x16xf32>, vector<8x5xf32> -> vector<8x26xf32>
    %c0_18 = arith.constant 0 : index
    %c0_19 = arith.constant 0 : index
    %24 = vector.load %arg2[%c0_18, %c0_19] : memref<2x16xf32, #tpu.memory_space<vmem>>, vector<2x16xf32>
    %25 = vector.extract_strided_slice %24 {offsets = [0, 0], sizes = [1, 16], strides = [1, 1]} : vector<2x16xf32> to vector<1x16xf32>
    %26 = vector.extract_strided_slice %24 {offsets = [1, 0], sizes = [1, 16], strides = [1, 1]} : vector<2x16xf32> to vector<1x16xf32>
    %27 = vector.extract_strided_slice %23 {offsets = [0, 0], sizes = [8, 16], strides = [1, 1]} : vector<8x26xf32> to vector<8x16xf32>
    %28 = vector.broadcast %25 : vector<1x16xf32> to vector<8x16xf32>
    %29 = arith.mulf %27, %28 : vector<8x16xf32>
    %30 = vector.extract_strided_slice %23 {offsets = [0, 1], sizes = [8, 16], strides = [1, 1]} : vector<8x26xf32> to vector<8x16xf32>
    %31 = vector.extract_strided_slice %23 {offsets = [0, 2], sizes = [8, 16], strides = [1, 1]} : vector<8x26xf32> to vector<8x16xf32>
    %32 = vector.broadcast %26 : vector<1x16xf32> to vector<8x16xf32>
    %33 = arith.mulf %31, %32 : vector<8x16xf32>
    %34 = vector.extract_strided_slice %23 {offsets = [0, 4], sizes = [8, 16], strides = [1, 1]} : vector<8x26xf32> to vector<8x16xf32>
    %35 = vector.broadcast %25 : vector<1x16xf32> to vector<8x16xf32>
    %36 = arith.mulf %34, %35 : vector<8x16xf32>
    %37 = vector.extract_strided_slice %23 {offsets = [0, 6], sizes = [8, 16], strides = [1, 1]} : vector<8x26xf32> to vector<8x16xf32>
    %38 = vector.broadcast %26 : vector<1x16xf32> to vector<8x16xf32>
    %39 = arith.mulf %37, %38 : vector<8x16xf32>
    %40 = vector.extract_strided_slice %23 {offsets = [0, 8], sizes = [8, 16], strides = [1, 1]} : vector<8x26xf32> to vector<8x16xf32>
    %41 = vector.broadcast %25 : vector<1x16xf32> to vector<8x16xf32>
    %42 = arith.mulf %40, %41 : vector<8x16xf32>
    %43 = vector.extract_strided_slice %23 {offsets = [0, 9], sizes = [8, 16], strides = [1, 1]} : vector<8x26xf32> to vector<8x16xf32>
    %44 = vector.extract_strided_slice %23 {offsets = [0, 10], sizes = [8, 16], strides = [1, 1]} : vector<8x26xf32> to vector<8x16xf32>
    %45 = vector.broadcast %26 : vector<1x16xf32> to vector<8x16xf32>
    %46 = arith.mulf %44, %45 : vector<8x16xf32>
    %47 = tpu.concatenate %29, %30, %33, %36, %21, %39, %42, %43, %46 in 0 : vector<8x16xf32>, vector<8x16xf32>, vector<8x16xf32>, vector<8x16xf32>, vector<8x16xf32>, vector<8x16xf32>, vector<8x16xf32>, vector<8x16xf32>, vector<8x16xf32> -> vector<72x16xf32>
    %c0_20 = arith.constant 0 : index
    %c0_21 = arith.constant 0 : index
    %48 = vector.load %arg7[%c0_20, %c0_21] : memref<8x72xf32, #tpu.memory_space<vmem>>, vector<8x72xf32>
    %cst_22 = arith.constant dense<0.000000e+00> : vector<8x16xf32>
    %49 = tpu.matmul %48, %47, %cst_22 {dimension_numbers = #tpu.dot_dimension_numbers<[1], [0], [0], [1], [0, 0, 1, 1], [], []>} : vector<8x72xf32>, vector<72x16xf32>, vector<8x16xf32> -> vector<8x16xf32>
    %c0_23 = arith.constant 0 : index
    %c0_24 = arith.constant 0 : index
    %50 = vector.load %arg8[%c0_23, %c0_24] : memref<8x1xf32, #tpu.memory_space<vmem>>, vector<8x1xf32>
    %51 = vector.broadcast %50 : vector<8x1xf32> to vector<8x16xf32>
    %52 = arith.addf %49, %51 : vector<8x16xf32>
    %cst_25 = arith.constant 0.000000e+00 : f32
    %53 = vector.broadcast %cst_25 : f32 to vector<8x16xf32>
    %54 = arith.maximumf %52, %53 : vector<8x16xf32>
    %c0_26 = arith.constant 0 : index
    %c0_27 = arith.constant 0 : index
    %55 = vector.load %arg9[%c0_26, %c0_27] : memref<12x8xf32, #tpu.memory_space<vmem>>, vector<12x8xf32>
    %cst_28 = arith.constant dense<0.000000e+00> : vector<12x16xf32>
    %56 = tpu.matmul %55, %54, %cst_28 {dimension_numbers = #tpu.dot_dimension_numbers<[1], [0], [0], [1], [0, 0, 1, 1], [], []>} : vector<12x8xf32>, vector<8x16xf32>, vector<12x16xf32> -> vector<12x16xf32>
    %c0_29 = arith.constant 0 : index
    %c0_30 = arith.constant 0 : index
    %57 = vector.load %arg10[%c0_29, %c0_30] : memref<12x1xf32, #tpu.memory_space<vmem>>, vector<12x1xf32>
    %58 = vector.broadcast %57 : vector<12x1xf32> to vector<12x16xf32>
    %59 = arith.addf %56, %58 : vector<12x16xf32>
    %60 = arith.addf %59, %6 : vector<12x16xf32>
    %c0_31 = arith.constant 0 : index
    %c0_32 = arith.constant 0 : index
    %c0_33 = arith.constant 0 : index
    %61 = vector.load %arg13[%c0_31, %c0_32, %c0_33] : memref<1x12x16xf32, #tpu.memory_space<vmem>>, vector<1x12x16xf32>
    %62 = vector.shape_cast %61 : vector<1x12x16xf32> to vector<12x16xf32>
    %63 = vector.shape_cast %60 : vector<12x16xf32> to vector<1x12x16xf32>
    tpu.vector_store %arg13[%c0_31, %c0_32, %c0_33], %63 {strides = array<i32>} : memref<1x12x16xf32, #tpu.memory_space<vmem>>, vector<1x12x16xf32>,
    return
  }
  func.func @transform_0(%arg0: i32) -> (i32, i32, i32) {
    %c0_i32 = arith.constant 0 : i32
    %c0_i32_0 = arith.constant 0 : i32
    %c0_i32_1 = arith.constant 0 : i32
    return %arg0, %c0_i32, %c0_i32_0 : i32, i32, i32
  }
  func.func @transform_1(%arg0: i32) -> (i32, i32) {
    %c0_i32 = arith.constant 0 : i32
    %c0_i32_0 = arith.constant 0 : i32
    %c0_i32_1 = arith.constant 0 : i32
    return %c0_i32, %c0_i32_0 : i32, i32
  }
  func.func @transform_2(%arg0: i32) -> (i32, i32) {
    %c0_i32 = arith.constant 0 : i32
    %c0_i32_0 = arith.constant 0 : i32
    %c0_i32_1 = arith.constant 0 : i32
    return %c0_i32, %c0_i32_0 : i32, i32
  }
  func.func @transform_3(%arg0: i32) -> (i32, i32) {
    %c0_i32 = arith.constant 0 : i32
    %c0_i32_0 = arith.constant 0 : i32
    %c0_i32_1 = arith.constant 0 : i32
    return %c0_i32, %c0_i32_0 : i32, i32
  }
  func.func @transform_4(%arg0: i32) -> (i32, i32) {
    %c0_i32 = arith.constant 0 : i32
    %c0_i32_0 = arith.constant 0 : i32
    %c0_i32_1 = arith.constant 0 : i32
    return %c0_i32, %c0_i32_0 : i32, i32
  }
  func.func @transform_5(%arg0: i32) -> (i32, i32) {
    %c0_i32 = arith.constant 0 : i32
    %c0_i32_0 = arith.constant 0 : i32
    %c0_i32_1 = arith.constant 0 : i32
    return %c0_i32, %c0_i32_0 : i32, i32
  }
  func.func @transform_6(%arg0: i32) -> (i32, i32) {
    %c0_i32 = arith.constant 0 : i32
    %c0_i32_0 = arith.constant 0 : i32
    %c0_i32_1 = arith.constant 0 : i32
    return %c0_i32, %c0_i32_0 : i32, i32
  }
  func.func @transform_7(%arg0: i32) -> (i32, i32) {
    %c0_i32 = arith.constant 0 : i32
    %c0_i32_0 = arith.constant 0 : i32
    %c0_i32_1 = arith.constant 0 : i32
    return %c0_i32, %c0_i32_0 : i32, i32
  }
  func.func @transform_8(%arg0: i32) -> (i32, i32) {
    %c0_i32 = arith.constant 0 : i32
    %c0_i32_0 = arith.constant 0 : i32
    %c0_i32_1 = arith.constant 0 : i32
    return %c0_i32, %c0_i32_0 : i32, i32
  }
  func.func @transform_9(%arg0: i32) -> (i32, i32) {
    %c0_i32 = arith.constant 0 : i32
    %c0_i32_0 = arith.constant 0 : i32
    %c0_i32_1 = arith.constant 0 : i32
    return %c0_i32, %c0_i32_0 : i32, i32
  }
  func.func @transform_10(%arg0: i32) -> (i32, i32) {
    %c0_i32 = arith.constant 0 : i32
    %c0_i32_0 = arith.constant 0 : i32
    %c0_i32_1 = arith.constant 0 : i32
    return %c0_i32, %c0_i32_0 : i32, i32
  }
  func.func @transform_11(%arg0: i32) -> (i32, i32) {
    %c0_i32 = arith.constant 0 : i32
    %c0_i32_0 = arith.constant 0 : i32
    %c0_i32_1 = arith.constant 0 : i32
    return %c0_i32, %c0_i32_0 : i32, i32
  }
  func.func @transform_12(%arg0: i32) -> (i32, i32, i32) {
    %c0_i32 = arith.constant 0 : i32
    %c0_i32_0 = arith.constant 0 : i32
    %c0_i32_1 = arith.constant 0 : i32
    return %arg0, %c0_i32, %c0_i32_0 : i32, i32, i32
  }
}

module attributes {stable_mosaic.version = 11 : i64} {
  func.func @kernel(%arg0: i32, %arg1: memref<1x12x64xf32, #tpu.memory_space<vmem>>, %arg2: memref<2x64xf32, #tpu.memory_space<vmem>>, %arg3: memref<12x1xf32, #tpu.memory_space<vmem>>, %arg4: memref<12x1xf32, #tpu.memory_space<vmem>>, %arg5: memref<8x12xf32, #tpu.memory_space<vmem>>, %arg6: memref<8x1xf32, #tpu.memory_space<vmem>>, %arg7: memref<8x72xf32, #tpu.memory_space<vmem>>, %arg8: memref<8x1xf32, #tpu.memory_space<vmem>>, %arg9: memref<12x8xf32, #tpu.memory_space<vmem>>, %arg10: memref<12x1xf32, #tpu.memory_space<vmem>>, %arg11: memref<1x12x64xf32, #tpu.memory_space<vmem>>) attributes {dimension_semantics = [#tpu.dimension_semantics<parallel>], iteration_bounds = array<i64: 2>, scalar_prefetch = 0 : i64, scratch_operands = 0 : i64, tpu.core_type = #tpu.core_type<tc>, window_params = [{transform_indices = @transform_0, window_bounds = array<i64: 1, 12, 64>}, {pipeline_mode = #tpu.pipeline_mode<synchronous>, transform_indices = @transform_1, window_bounds = array<i64: 2, 64>}, {pipeline_mode = #tpu.pipeline_mode<synchronous>, transform_indices = @transform_2, window_bounds = array<i64: 12, 1>}, {pipeline_mode = #tpu.pipeline_mode<synchronous>, transform_indices = @transform_3, window_bounds = array<i64: 12, 1>}, {pipeline_mode = #tpu.pipeline_mode<synchronous>, transform_indices = @transform_4, window_bounds = array<i64: 8, 12>}, {pipeline_mode = #tpu.pipeline_mode<synchronous>, transform_indices = @transform_5, window_bounds = array<i64: 8, 1>}, {pipeline_mode = #tpu.pipeline_mode<synchronous>, transform_indices = @transform_6, window_bounds = array<i64: 8, 72>}, {pipeline_mode = #tpu.pipeline_mode<synchronous>, transform_indices = @transform_7, window_bounds = array<i64: 8, 1>}, {pipeline_mode = #tpu.pipeline_mode<synchronous>, transform_indices = @transform_8, window_bounds = array<i64: 12, 8>}, {pipeline_mode = #tpu.pipeline_mode<synchronous>, transform_indices = @transform_9, window_bounds = array<i64: 12, 1>}, {transform_indices = @transform_10, window_bounds = array<i64: 1, 12, 64>}]} {
    %c0 = arith.constant 0 : index
    %c0_0 = arith.constant 0 : index
    %c0_1 = arith.constant 0 : index
    %0 = vector.load %arg1[%c0, %c0_0, %c0_1] : memref<1x12x64xf32, #tpu.memory_space<vmem>>, vector<1x12x64xf32>
    %1 = vector.shape_cast %0 : vector<1x12x64xf32> to vector<12x64xf32>
    %c0_2 = arith.constant 0 : index
    %c0_3 = arith.constant 0 : index
    %2 = vector.load %arg3[%c0_2, %c0_3] : memref<12x1xf32, #tpu.memory_space<vmem>>, vector<12x1xf32>
    %3 = vector.broadcast %2 : vector<12x1xf32> to vector<12x64xf32>
    %4 = arith.mulf %1, %3 : vector<12x64xf32>
    %c0_4 = arith.constant 0 : index
    %c0_5 = arith.constant 0 : index
    %5 = vector.load %arg4[%c0_4, %c0_5] : memref<12x1xf32, #tpu.memory_space<vmem>>, vector<12x1xf32>
    %6 = vector.broadcast %5 : vector<12x1xf32> to vector<12x64xf32>
    %7 = arith.addf %4, %6 : vector<12x64xf32>
    %cst = arith.constant 0.000000e+00 : f32
    %8 = vector.broadcast %cst : f32 to vector<12x64xf32>
    %9 = arith.maximumf %7, %8 : vector<12x64xf32>
    %c0_6 = arith.constant 0 : index
    %c0_7 = arith.constant 0 : index
    %10 = vector.load %arg5[%c0_6, %c0_7] : memref<8x12xf32, #tpu.memory_space<vmem>>, vector<8x12xf32>
    %cst_8 = arith.constant dense<0.000000e+00> : vector<8x64xf32>
    %11 = tpu.matmul %10, %9, %cst_8 {dimension_numbers = #tpu.dot_dimension_numbers<[1], [0], [0], [1], [0, 0, 1, 1], [], []>} : vector<8x12xf32>, vector<12x64xf32>, vector<8x64xf32> -> vector<8x64xf32>
    %c0_9 = arith.constant 0 : index
    %c0_10 = arith.constant 0 : index
    %12 = vector.load %arg6[%c0_9, %c0_10] : memref<8x1xf32, #tpu.memory_space<vmem>>, vector<8x1xf32>
    %13 = vector.broadcast %12 : vector<8x1xf32> to vector<8x64xf32>
    %14 = arith.addf %11, %13 : vector<8x64xf32>
    %cst_11 = arith.constant 0.000000e+00 : f32
    %15 = vector.broadcast %cst_11 : f32 to vector<8x64xf32>
    %16 = arith.maximumf %14, %15 : vector<8x64xf32>
    %cst_12 = arith.constant 0.000000e+00 : f32
    %17 = vector.broadcast %cst_12 : f32 to vector<8x9xf32>
    %18 = tpu.concatenate %17, %16, %17 in 1 : vector<8x9xf32>, vector<8x64xf32>, vector<8x9xf32> -> vector<8x82xf32>
    %c0_13 = arith.constant 0 : index
    %c0_14 = arith.constant 0 : index
    %19 = vector.load %arg2[%c0_13, %c0_14] : memref<2x64xf32, #tpu.memory_space<vmem>>, vector<2x64xf32>
    %20 = vector.extract_strided_slice %19 {offsets = [0, 0], sizes = [1, 64], strides = [1, 1]} : vector<2x64xf32> to vector<1x64xf32>
    %21 = vector.extract_strided_slice %19 {offsets = [1, 0], sizes = [1, 64], strides = [1, 1]} : vector<2x64xf32> to vector<1x64xf32>
    %22 = vector.extract_strided_slice %18 {offsets = [0, 0], sizes = [8, 64], strides = [1, 1]} : vector<8x82xf32> to vector<8x64xf32>
    %23 = vector.broadcast %20 : vector<1x64xf32> to vector<8x64xf32>
    %24 = arith.mulf %22, %23 : vector<8x64xf32>
    %25 = vector.extract_strided_slice %18 {offsets = [0, 1], sizes = [8, 64], strides = [1, 1]} : vector<8x82xf32> to vector<8x64xf32>
    %26 = vector.extract_strided_slice %18 {offsets = [0, 2], sizes = [8, 64], strides = [1, 1]} : vector<8x82xf32> to vector<8x64xf32>
    %27 = vector.broadcast %21 : vector<1x64xf32> to vector<8x64xf32>
    %28 = arith.mulf %26, %27 : vector<8x64xf32>
    %29 = vector.extract_strided_slice %18 {offsets = [0, 8], sizes = [8, 64], strides = [1, 1]} : vector<8x82xf32> to vector<8x64xf32>
    %30 = vector.broadcast %20 : vector<1x64xf32> to vector<8x64xf32>
    %31 = arith.mulf %29, %30 : vector<8x64xf32>
    %32 = vector.extract_strided_slice %18 {offsets = [0, 10], sizes = [8, 64], strides = [1, 1]} : vector<8x82xf32> to vector<8x64xf32>
    %33 = vector.broadcast %21 : vector<1x64xf32> to vector<8x64xf32>
    %34 = arith.mulf %32, %33 : vector<8x64xf32>
    %35 = vector.extract_strided_slice %18 {offsets = [0, 16], sizes = [8, 64], strides = [1, 1]} : vector<8x82xf32> to vector<8x64xf32>
    %36 = vector.broadcast %20 : vector<1x64xf32> to vector<8x64xf32>
    %37 = arith.mulf %35, %36 : vector<8x64xf32>
    %38 = vector.extract_strided_slice %18 {offsets = [0, 17], sizes = [8, 64], strides = [1, 1]} : vector<8x82xf32> to vector<8x64xf32>
    %39 = vector.extract_strided_slice %18 {offsets = [0, 18], sizes = [8, 64], strides = [1, 1]} : vector<8x82xf32> to vector<8x64xf32>
    %40 = vector.broadcast %21 : vector<1x64xf32> to vector<8x64xf32>
    %41 = arith.mulf %39, %40 : vector<8x64xf32>
    %42 = tpu.concatenate %24, %25, %28, %31, %16, %34, %37, %38, %41 in 0 : vector<8x64xf32>, vector<8x64xf32>, vector<8x64xf32>, vector<8x64xf32>, vector<8x64xf32>, vector<8x64xf32>, vector<8x64xf32>, vector<8x64xf32>, vector<8x64xf32> -> vector<72x64xf32>
    %c0_15 = arith.constant 0 : index
    %c0_16 = arith.constant 0 : index
    %43 = vector.load %arg7[%c0_15, %c0_16] : memref<8x72xf32, #tpu.memory_space<vmem>>, vector<8x72xf32>
    %cst_17 = arith.constant dense<0.000000e+00> : vector<8x64xf32>
    %44 = tpu.matmul %43, %42, %cst_17 {dimension_numbers = #tpu.dot_dimension_numbers<[1], [0], [0], [1], [0, 0, 1, 1], [], []>} : vector<8x72xf32>, vector<72x64xf32>, vector<8x64xf32> -> vector<8x64xf32>
    %c0_18 = arith.constant 0 : index
    %c0_19 = arith.constant 0 : index
    %45 = vector.load %arg8[%c0_18, %c0_19] : memref<8x1xf32, #tpu.memory_space<vmem>>, vector<8x1xf32>
    %46 = vector.broadcast %45 : vector<8x1xf32> to vector<8x64xf32>
    %47 = arith.addf %44, %46 : vector<8x64xf32>
    %cst_20 = arith.constant 0.000000e+00 : f32
    %48 = vector.broadcast %cst_20 : f32 to vector<8x64xf32>
    %49 = arith.maximumf %47, %48 : vector<8x64xf32>
    %c0_21 = arith.constant 0 : index
    %c0_22 = arith.constant 0 : index
    %50 = vector.load %arg9[%c0_21, %c0_22] : memref<12x8xf32, #tpu.memory_space<vmem>>, vector<12x8xf32>
    %cst_23 = arith.constant dense<0.000000e+00> : vector<12x64xf32>
    %51 = tpu.matmul %50, %49, %cst_23 {dimension_numbers = #tpu.dot_dimension_numbers<[1], [0], [0], [1], [0, 0, 1, 1], [], []>} : vector<12x8xf32>, vector<8x64xf32>, vector<12x64xf32> -> vector<12x64xf32>
    %c0_24 = arith.constant 0 : index
    %c0_25 = arith.constant 0 : index
    %52 = vector.load %arg10[%c0_24, %c0_25] : memref<12x1xf32, #tpu.memory_space<vmem>>, vector<12x1xf32>
    %53 = vector.broadcast %52 : vector<12x1xf32> to vector<12x64xf32>
    %54 = arith.addf %51, %53 : vector<12x64xf32>
    %55 = arith.addf %54, %1 : vector<12x64xf32>
    %c0_26 = arith.constant 0 : index
    %c0_27 = arith.constant 0 : index
    %c0_28 = arith.constant 0 : index
    %56 = vector.load %arg11[%c0_26, %c0_27, %c0_28] : memref<1x12x64xf32, #tpu.memory_space<vmem>>, vector<1x12x64xf32>
    %57 = vector.shape_cast %56 : vector<1x12x64xf32> to vector<12x64xf32>
    %58 = vector.shape_cast %55 : vector<12x64xf32> to vector<1x12x64xf32>
    tpu.vector_store %arg11[%c0_26, %c0_27, %c0_28], %58 {strides = array<i32>} : memref<1x12x64xf32, #tpu.memory_space<vmem>>, vector<1x12x64xf32>,
    return
  }
  func.func @transform_0(%arg0: i32) -> (i32, i32, i32) {
    %c0_i32 = arith.constant 0 : i32
    %c0_i32_0 = arith.constant 0 : i32
    %c0_i32_1 = arith.constant 0 : i32
    return %arg0, %c0_i32, %c0_i32_0 : i32, i32, i32
  }
  func.func @transform_1(%arg0: i32) -> (i32, i32) {
    %c0_i32 = arith.constant 0 : i32
    %c0_i32_0 = arith.constant 0 : i32
    %c0_i32_1 = arith.constant 0 : i32
    return %c0_i32, %c0_i32_0 : i32, i32
  }
  func.func @transform_2(%arg0: i32) -> (i32, i32) {
    %c0_i32 = arith.constant 0 : i32
    %c0_i32_0 = arith.constant 0 : i32
    %c0_i32_1 = arith.constant 0 : i32
    return %c0_i32, %c0_i32_0 : i32, i32
  }
  func.func @transform_3(%arg0: i32) -> (i32, i32) {
    %c0_i32 = arith.constant 0 : i32
    %c0_i32_0 = arith.constant 0 : i32
    %c0_i32_1 = arith.constant 0 : i32
    return %c0_i32, %c0_i32_0 : i32, i32
  }
  func.func @transform_4(%arg0: i32) -> (i32, i32) {
    %c0_i32 = arith.constant 0 : i32
    %c0_i32_0 = arith.constant 0 : i32
    %c0_i32_1 = arith.constant 0 : i32
    return %c0_i32, %c0_i32_0 : i32, i32
  }
  func.func @transform_5(%arg0: i32) -> (i32, i32) {
    %c0_i32 = arith.constant 0 : i32
    %c0_i32_0 = arith.constant 0 : i32
    %c0_i32_1 = arith.constant 0 : i32
    return %c0_i32, %c0_i32_0 : i32, i32
  }
  func.func @transform_6(%arg0: i32) -> (i32, i32) {
    %c0_i32 = arith.constant 0 : i32
    %c0_i32_0 = arith.constant 0 : i32
    %c0_i32_1 = arith.constant 0 : i32
    return %c0_i32, %c0_i32_0 : i32, i32
  }
  func.func @transform_7(%arg0: i32) -> (i32, i32) {
    %c0_i32 = arith.constant 0 : i32
    %c0_i32_0 = arith.constant 0 : i32
    %c0_i32_1 = arith.constant 0 : i32
    return %c0_i32, %c0_i32_0 : i32, i32
  }
  func.func @transform_8(%arg0: i32) -> (i32, i32) {
    %c0_i32 = arith.constant 0 : i32
    %c0_i32_0 = arith.constant 0 : i32
    %c0_i32_1 = arith.constant 0 : i32
    return %c0_i32, %c0_i32_0 : i32, i32
  }
  func.func @transform_9(%arg0: i32) -> (i32, i32) {
    %c0_i32 = arith.constant 0 : i32
    %c0_i32_0 = arith.constant 0 : i32
    %c0_i32_1 = arith.constant 0 : i32
    return %c0_i32, %c0_i32_0 : i32, i32
  }
  func.func @transform_10(%arg0: i32) -> (i32, i32, i32) {
    %c0_i32 = arith.constant 0 : i32
    %c0_i32_0 = arith.constant 0 : i32
    %c0_i32_1 = arith.constant 0 : i32
    return %arg0, %c0_i32, %c0_i32_0 : i32, i32, i32
  }
}

module attributes {stable_mosaic.version = 11 : i64} {
  func.func @kernel(%arg0: i32, %arg1: memref<1x12x64xf32, #tpu.memory_space<vmem>>, %arg2: memref<2x64xf32, #tpu.memory_space<vmem>>, %arg3: memref<12x1xf32, #tpu.memory_space<vmem>>, %arg4: memref<12x1xf32, #tpu.memory_space<vmem>>, %arg5: memref<8x12xf32, #tpu.memory_space<vmem>>, %arg6: memref<8x1xf32, #tpu.memory_space<vmem>>, %arg7: memref<8x72xf32, #tpu.memory_space<vmem>>, %arg8: memref<8x1xf32, #tpu.memory_space<vmem>>, %arg9: memref<8x8xf32, #tpu.memory_space<vmem>>, %arg10: memref<8x1xf32, #tpu.memory_space<vmem>>, %arg11: memref<8x12xf32, #tpu.memory_space<vmem>>, %arg12: memref<8x1xf32, #tpu.memory_space<vmem>>, %arg13: memref<1x8x64xf32, #tpu.memory_space<vmem>>) attributes {dimension_semantics = [#tpu.dimension_semantics<parallel>], iteration_bounds = array<i64: 2>, scalar_prefetch = 0 : i64, scratch_operands = 0 : i64, tpu.core_type = #tpu.core_type<tc>, window_params = [{transform_indices = @transform_0, window_bounds = array<i64: 1, 12, 64>}, {pipeline_mode = #tpu.pipeline_mode<synchronous>, transform_indices = @transform_1, window_bounds = array<i64: 2, 64>}, {pipeline_mode = #tpu.pipeline_mode<synchronous>, transform_indices = @transform_2, window_bounds = array<i64: 12, 1>}, {pipeline_mode = #tpu.pipeline_mode<synchronous>, transform_indices = @transform_3, window_bounds = array<i64: 12, 1>}, {pipeline_mode = #tpu.pipeline_mode<synchronous>, transform_indices = @transform_4, window_bounds = array<i64: 8, 12>}, {pipeline_mode = #tpu.pipeline_mode<synchronous>, transform_indices = @transform_5, window_bounds = array<i64: 8, 1>}, {pipeline_mode = #tpu.pipeline_mode<synchronous>, transform_indices = @transform_6, window_bounds = array<i64: 8, 72>}, {pipeline_mode = #tpu.pipeline_mode<synchronous>, transform_indices = @transform_7, window_bounds = array<i64: 8, 1>}, {pipeline_mode = #tpu.pipeline_mode<synchronous>, transform_indices = @transform_8, window_bounds = array<i64: 8, 8>}, {pipeline_mode = #tpu.pipeline_mode<synchronous>, transform_indices = @transform_9, window_bounds = array<i64: 8, 1>}, {pipeline_mode = #tpu.pipeline_mode<synchronous>, transform_indices = @transform_10, window_bounds = array<i64: 8, 12>}, {pipeline_mode = #tpu.pipeline_mode<synchronous>, transform_indices = @transform_11, window_bounds = array<i64: 8, 1>}, {transform_indices = @transform_12, window_bounds = array<i64: 1, 8, 64>}]} {
    %c0 = arith.constant 0 : index
    %c0_0 = arith.constant 0 : index
    %c0_1 = arith.constant 0 : index
    %0 = vector.load %arg1[%c0, %c0_0, %c0_1] : memref<1x12x64xf32, #tpu.memory_space<vmem>>, vector<1x12x64xf32>
    %1 = vector.shape_cast %0 : vector<1x12x64xf32> to vector<12x64xf32>
    %c0_2 = arith.constant 0 : index
    %c0_3 = arith.constant 0 : index
    %2 = vector.load %arg11[%c0_2, %c0_3] : memref<8x12xf32, #tpu.memory_space<vmem>>, vector<8x12xf32>
    %cst = arith.constant dense<0.000000e+00> : vector<8x64xf32>
    %3 = tpu.matmul %2, %1, %cst {dimension_numbers = #tpu.dot_dimension_numbers<[1], [0], [0], [1], [0, 0, 1, 1], [], []>} : vector<8x12xf32>, vector<12x64xf32>, vector<8x64xf32> -> vector<8x64xf32>
    %c0_4 = arith.constant 0 : index
    %c0_5 = arith.constant 0 : index
    %4 = vector.load %arg12[%c0_4, %c0_5] : memref<8x1xf32, #tpu.memory_space<vmem>>, vector<8x1xf32>
    %5 = vector.broadcast %4 : vector<8x1xf32> to vector<8x64xf32>
    %6 = arith.addf %3, %5 : vector<8x64xf32>
    %c0_6 = arith.constant 0 : index
    %c0_7 = arith.constant 0 : index
    %7 = vector.load %arg3[%c0_6, %c0_7] : memref<12x1xf32, #tpu.memory_space<vmem>>, vector<12x1xf32>
    %8 = vector.broadcast %7 : vector<12x1xf32> to vector<12x64xf32>
    %9 = arith.mulf %1, %8 : vector<12x64xf32>
    %c0_8 = arith.constant 0 : index
    %c0_9 = arith.constant 0 : index
    %10 = vector.load %arg4[%c0_8, %c0_9] : memref<12x1xf32, #tpu.memory_space<vmem>>, vector<12x1xf32>
    %11 = vector.broadcast %10 : vector<12x1xf32> to vector<12x64xf32>
    %12 = arith.addf %9, %11 : vector<12x64xf32>
    %cst_10 = arith.constant 0.000000e+00 : f32
    %13 = vector.broadcast %cst_10 : f32 to vector<12x64xf32>
    %14 = arith.maximumf %12, %13 : vector<12x64xf32>
    %c0_11 = arith.constant 0 : index
    %c0_12 = arith.constant 0 : index
    %15 = vector.load %arg5[%c0_11, %c0_12] : memref<8x12xf32, #tpu.memory_space<vmem>>, vector<8x12xf32>
    %cst_13 = arith.constant dense<0.000000e+00> : vector<8x64xf32>
    %16 = tpu.matmul %15, %14, %cst_13 {dimension_numbers = #tpu.dot_dimension_numbers<[1], [0], [0], [1], [0, 0, 1, 1], [], []>} : vector<8x12xf32>, vector<12x64xf32>, vector<8x64xf32> -> vector<8x64xf32>
    %c0_14 = arith.constant 0 : index
    %c0_15 = arith.constant 0 : index
    %17 = vector.load %arg6[%c0_14, %c0_15] : memref<8x1xf32, #tpu.memory_space<vmem>>, vector<8x1xf32>
    %18 = vector.broadcast %17 : vector<8x1xf32> to vector<8x64xf32>
    %19 = arith.addf %16, %18 : vector<8x64xf32>
    %cst_16 = arith.constant 0.000000e+00 : f32
    %20 = vector.broadcast %cst_16 : f32 to vector<8x64xf32>
    %21 = arith.maximumf %19, %20 : vector<8x64xf32>
    %cst_17 = arith.constant 0.000000e+00 : f32
    %22 = vector.broadcast %cst_17 : f32 to vector<8x9xf32>
    %23 = tpu.concatenate %22, %21, %22 in 1 : vector<8x9xf32>, vector<8x64xf32>, vector<8x9xf32> -> vector<8x82xf32>
    %c0_18 = arith.constant 0 : index
    %c0_19 = arith.constant 0 : index
    %24 = vector.load %arg2[%c0_18, %c0_19] : memref<2x64xf32, #tpu.memory_space<vmem>>, vector<2x64xf32>
    %25 = vector.extract_strided_slice %24 {offsets = [0, 0], sizes = [1, 64], strides = [1, 1]} : vector<2x64xf32> to vector<1x64xf32>
    %26 = vector.extract_strided_slice %24 {offsets = [1, 0], sizes = [1, 64], strides = [1, 1]} : vector<2x64xf32> to vector<1x64xf32>
    %27 = vector.extract_strided_slice %23 {offsets = [0, 0], sizes = [8, 64], strides = [1, 1]} : vector<8x82xf32> to vector<8x64xf32>
    %28 = vector.broadcast %25 : vector<1x64xf32> to vector<8x64xf32>
    %29 = arith.mulf %27, %28 : vector<8x64xf32>
    %30 = vector.extract_strided_slice %23 {offsets = [0, 1], sizes = [8, 64], strides = [1, 1]} : vector<8x82xf32> to vector<8x64xf32>
    %31 = vector.extract_strided_slice %23 {offsets = [0, 2], sizes = [8, 64], strides = [1, 1]} : vector<8x82xf32> to vector<8x64xf32>
    %32 = vector.broadcast %26 : vector<1x64xf32> to vector<8x64xf32>
    %33 = arith.mulf %31, %32 : vector<8x64xf32>
    %34 = vector.extract_strided_slice %23 {offsets = [0, 8], sizes = [8, 64], strides = [1, 1]} : vector<8x82xf32> to vector<8x64xf32>
    %35 = vector.broadcast %25 : vector<1x64xf32> to vector<8x64xf32>
    %36 = arith.mulf %34, %35 : vector<8x64xf32>
    %37 = vector.extract_strided_slice %23 {offsets = [0, 10], sizes = [8, 64], strides = [1, 1]} : vector<8x82xf32> to vector<8x64xf32>
    %38 = vector.broadcast %26 : vector<1x64xf32> to vector<8x64xf32>
    %39 = arith.mulf %37, %38 : vector<8x64xf32>
    %40 = vector.extract_strided_slice %23 {offsets = [0, 16], sizes = [8, 64], strides = [1, 1]} : vector<8x82xf32> to vector<8x64xf32>
    %41 = vector.broadcast %25 : vector<1x64xf32> to vector<8x64xf32>
    %42 = arith.mulf %40, %41 : vector<8x64xf32>
    %43 = vector.extract_strided_slice %23 {offsets = [0, 17], sizes = [8, 64], strides = [1, 1]} : vector<8x82xf32> to vector<8x64xf32>
    %44 = vector.extract_strided_slice %23 {offsets = [0, 18], sizes = [8, 64], strides = [1, 1]} : vector<8x82xf32> to vector<8x64xf32>
    %45 = vector.broadcast %26 : vector<1x64xf32> to vector<8x64xf32>
    %46 = arith.mulf %44, %45 : vector<8x64xf32>
    %47 = tpu.concatenate %29, %30, %33, %36, %21, %39, %42, %43, %46 in 0 : vector<8x64xf32>, vector<8x64xf32>, vector<8x64xf32>, vector<8x64xf32>, vector<8x64xf32>, vector<8x64xf32>, vector<8x64xf32>, vector<8x64xf32>, vector<8x64xf32> -> vector<72x64xf32>
    %c0_20 = arith.constant 0 : index
    %c0_21 = arith.constant 0 : index
    %48 = vector.load %arg7[%c0_20, %c0_21] : memref<8x72xf32, #tpu.memory_space<vmem>>, vector<8x72xf32>
    %cst_22 = arith.constant dense<0.000000e+00> : vector<8x64xf32>
    %49 = tpu.matmul %48, %47, %cst_22 {dimension_numbers = #tpu.dot_dimension_numbers<[1], [0], [0], [1], [0, 0, 1, 1], [], []>} : vector<8x72xf32>, vector<72x64xf32>, vector<8x64xf32> -> vector<8x64xf32>
    %c0_23 = arith.constant 0 : index
    %c0_24 = arith.constant 0 : index
    %50 = vector.load %arg8[%c0_23, %c0_24] : memref<8x1xf32, #tpu.memory_space<vmem>>, vector<8x1xf32>
    %51 = vector.broadcast %50 : vector<8x1xf32> to vector<8x64xf32>
    %52 = arith.addf %49, %51 : vector<8x64xf32>
    %cst_25 = arith.constant 0.000000e+00 : f32
    %53 = vector.broadcast %cst_25 : f32 to vector<8x64xf32>
    %54 = arith.maximumf %52, %53 : vector<8x64xf32>
    %c0_26 = arith.constant 0 : index
    %c0_27 = arith.constant 0 : index
    %55 = vector.load %arg9[%c0_26, %c0_27] : memref<8x8xf32, #tpu.memory_space<vmem>>, vector<8x8xf32>
    %cst_28 = arith.constant dense<0.000000e+00> : vector<8x64xf32>
    %56 = tpu.matmul %55, %54, %cst_28 {dimension_numbers = #tpu.dot_dimension_numbers<[1], [0], [0], [1], [0, 0, 1, 1], [], []>} : vector<8x8xf32>, vector<8x64xf32>, vector<8x64xf32> -> vector<8x64xf32>
    %c0_29 = arith.constant 0 : index
    %c0_30 = arith.constant 0 : index
    %57 = vector.load %arg10[%c0_29, %c0_30] : memref<8x1xf32, #tpu.memory_space<vmem>>, vector<8x1xf32>
    %58 = vector.broadcast %57 : vector<8x1xf32> to vector<8x64xf32>
    %59 = arith.addf %56, %58 : vector<8x64xf32>
    %60 = arith.addf %59, %6 : vector<8x64xf32>
    %c0_31 = arith.constant 0 : index
    %c0_32 = arith.constant 0 : index
    %c0_33 = arith.constant 0 : index
    %61 = vector.load %arg13[%c0_31, %c0_32, %c0_33] : memref<1x8x64xf32, #tpu.memory_space<vmem>>, vector<1x8x64xf32>
    %62 = vector.shape_cast %61 : vector<1x8x64xf32> to vector<8x64xf32>
    %63 = vector.shape_cast %60 : vector<8x64xf32> to vector<1x8x64xf32>
    tpu.vector_store %arg13[%c0_31, %c0_32, %c0_33], %63 {strides = array<i32>} : memref<1x8x64xf32, #tpu.memory_space<vmem>>, vector<1x8x64xf32>,
    return
  }
  func.func @transform_0(%arg0: i32) -> (i32, i32, i32) {
    %c0_i32 = arith.constant 0 : i32
    %c0_i32_0 = arith.constant 0 : i32
    %c0_i32_1 = arith.constant 0 : i32
    return %arg0, %c0_i32, %c0_i32_0 : i32, i32, i32
  }
  func.func @transform_1(%arg0: i32) -> (i32, i32) {
    %c0_i32 = arith.constant 0 : i32
    %c0_i32_0 = arith.constant 0 : i32
    %c0_i32_1 = arith.constant 0 : i32
    return %c0_i32, %c0_i32_0 : i32, i32
  }
  func.func @transform_2(%arg0: i32) -> (i32, i32) {
    %c0_i32 = arith.constant 0 : i32
    %c0_i32_0 = arith.constant 0 : i32
    %c0_i32_1 = arith.constant 0 : i32
    return %c0_i32, %c0_i32_0 : i32, i32
  }
  func.func @transform_3(%arg0: i32) -> (i32, i32) {
    %c0_i32 = arith.constant 0 : i32
    %c0_i32_0 = arith.constant 0 : i32
    %c0_i32_1 = arith.constant 0 : i32
    return %c0_i32, %c0_i32_0 : i32, i32
  }
  func.func @transform_4(%arg0: i32) -> (i32, i32) {
    %c0_i32 = arith.constant 0 : i32
    %c0_i32_0 = arith.constant 0 : i32
    %c0_i32_1 = arith.constant 0 : i32
    return %c0_i32, %c0_i32_0 : i32, i32
  }
  func.func @transform_5(%arg0: i32) -> (i32, i32) {
    %c0_i32 = arith.constant 0 : i32
    %c0_i32_0 = arith.constant 0 : i32
    %c0_i32_1 = arith.constant 0 : i32
    return %c0_i32, %c0_i32_0 : i32, i32
  }
  func.func @transform_6(%arg0: i32) -> (i32, i32) {
    %c0_i32 = arith.constant 0 : i32
    %c0_i32_0 = arith.constant 0 : i32
    %c0_i32_1 = arith.constant 0 : i32
    return %c0_i32, %c0_i32_0 : i32, i32
  }
  func.func @transform_7(%arg0: i32) -> (i32, i32) {
    %c0_i32 = arith.constant 0 : i32
    %c0_i32_0 = arith.constant 0 : i32
    %c0_i32_1 = arith.constant 0 : i32
    return %c0_i32, %c0_i32_0 : i32, i32
  }
  func.func @transform_8(%arg0: i32) -> (i32, i32) {
    %c0_i32 = arith.constant 0 : i32
    %c0_i32_0 = arith.constant 0 : i32
    %c0_i32_1 = arith.constant 0 : i32
    return %c0_i32, %c0_i32_0 : i32, i32
  }
  func.func @transform_9(%arg0: i32) -> (i32, i32) {
    %c0_i32 = arith.constant 0 : i32
    %c0_i32_0 = arith.constant 0 : i32
    %c0_i32_1 = arith.constant 0 : i32
    return %c0_i32, %c0_i32_0 : i32, i32
  }
  func.func @transform_10(%arg0: i32) -> (i32, i32) {
    %c0_i32 = arith.constant 0 : i32
    %c0_i32_0 = arith.constant 0 : i32
    %c0_i32_1 = arith.constant 0 : i32
    return %c0_i32, %c0_i32_0 : i32, i32
  }
  func.func @transform_11(%arg0: i32) -> (i32, i32) {
    %c0_i32 = arith.constant 0 : i32
    %c0_i32_0 = arith.constant 0 : i32
    %c0_i32_1 = arith.constant 0 : i32
    return %c0_i32, %c0_i32_0 : i32, i32
  }
  func.func @transform_12(%arg0: i32) -> (i32, i32, i32) {
    %c0_i32 = arith.constant 0 : i32
    %c0_i32_0 = arith.constant 0 : i32
    %c0_i32_1 = arith.constant 0 : i32
    return %arg0, %c0_i32, %c0_i32_0 : i32, i32, i32
  }
}

module attributes {stable_mosaic.version = 11 : i64} {
  func.func @kernel(%arg0: i32, %arg1: memref<1x8x256xf32, #tpu.memory_space<vmem>>, %arg2: memref<2x256xf32, #tpu.memory_space<vmem>>, %arg3: memref<8x1xf32, #tpu.memory_space<vmem>>, %arg4: memref<8x1xf32, #tpu.memory_space<vmem>>, %arg5: memref<8x8xf32, #tpu.memory_space<vmem>>, %arg6: memref<8x1xf32, #tpu.memory_space<vmem>>, %arg7: memref<8x72xf32, #tpu.memory_space<vmem>>, %arg8: memref<8x1xf32, #tpu.memory_space<vmem>>, %arg9: memref<8x8xf32, #tpu.memory_space<vmem>>, %arg10: memref<8x1xf32, #tpu.memory_space<vmem>>, %arg11: memref<1x8x256xf32, #tpu.memory_space<vmem>>) attributes {dimension_semantics = [#tpu.dimension_semantics<parallel>], iteration_bounds = array<i64: 2>, scalar_prefetch = 0 : i64, scratch_operands = 0 : i64, tpu.core_type = #tpu.core_type<tc>, window_params = [{transform_indices = @transform_0, window_bounds = array<i64: 1, 8, 256>}, {pipeline_mode = #tpu.pipeline_mode<synchronous>, transform_indices = @transform_1, window_bounds = array<i64: 2, 256>}, {pipeline_mode = #tpu.pipeline_mode<synchronous>, transform_indices = @transform_2, window_bounds = array<i64: 8, 1>}, {pipeline_mode = #tpu.pipeline_mode<synchronous>, transform_indices = @transform_3, window_bounds = array<i64: 8, 1>}, {pipeline_mode = #tpu.pipeline_mode<synchronous>, transform_indices = @transform_4, window_bounds = array<i64: 8, 8>}, {pipeline_mode = #tpu.pipeline_mode<synchronous>, transform_indices = @transform_5, window_bounds = array<i64: 8, 1>}, {pipeline_mode = #tpu.pipeline_mode<synchronous>, transform_indices = @transform_6, window_bounds = array<i64: 8, 72>}, {pipeline_mode = #tpu.pipeline_mode<synchronous>, transform_indices = @transform_7, window_bounds = array<i64: 8, 1>}, {pipeline_mode = #tpu.pipeline_mode<synchronous>, transform_indices = @transform_8, window_bounds = array<i64: 8, 8>}, {pipeline_mode = #tpu.pipeline_mode<synchronous>, transform_indices = @transform_9, window_bounds = array<i64: 8, 1>}, {transform_indices = @transform_10, window_bounds = array<i64: 1, 8, 256>}]} {
    %c0 = arith.constant 0 : index
    %c0_0 = arith.constant 0 : index
    %c0_1 = arith.constant 0 : index
    %0 = vector.load %arg1[%c0, %c0_0, %c0_1] : memref<1x8x256xf32, #tpu.memory_space<vmem>>, vector<1x8x256xf32>
    %1 = vector.shape_cast %0 : vector<1x8x256xf32> to vector<8x256xf32>
    %c0_2 = arith.constant 0 : index
    %c0_3 = arith.constant 0 : index
    %2 = vector.load %arg3[%c0_2, %c0_3] : memref<8x1xf32, #tpu.memory_space<vmem>>, vector<8x1xf32>
    %3 = vector.broadcast %2 : vector<8x1xf32> to vector<8x256xf32>
    %4 = arith.mulf %1, %3 : vector<8x256xf32>
    %c0_4 = arith.constant 0 : index
    %c0_5 = arith.constant 0 : index
    %5 = vector.load %arg4[%c0_4, %c0_5] : memref<8x1xf32, #tpu.memory_space<vmem>>, vector<8x1xf32>
    %6 = vector.broadcast %5 : vector<8x1xf32> to vector<8x256xf32>
    %7 = arith.addf %4, %6 : vector<8x256xf32>
    %cst = arith.constant 0.000000e+00 : f32
    %8 = vector.broadcast %cst : f32 to vector<8x256xf32>
    %9 = arith.maximumf %7, %8 : vector<8x256xf32>
    %c0_6 = arith.constant 0 : index
    %c0_7 = arith.constant 0 : index
    %10 = vector.load %arg5[%c0_6, %c0_7] : memref<8x8xf32, #tpu.memory_space<vmem>>, vector<8x8xf32>
    %cst_8 = arith.constant dense<0.000000e+00> : vector<8x256xf32>
    %11 = tpu.matmul %10, %9, %cst_8 {dimension_numbers = #tpu.dot_dimension_numbers<[1], [0], [0], [1], [0, 0, 1, 1], [], []>} : vector<8x8xf32>, vector<8x256xf32>, vector<8x256xf32> -> vector<8x256xf32>
    %c0_9 = arith.constant 0 : index
    %c0_10 = arith.constant 0 : index
    %12 = vector.load %arg6[%c0_9, %c0_10] : memref<8x1xf32, #tpu.memory_space<vmem>>, vector<8x1xf32>
    %13 = vector.broadcast %12 : vector<8x1xf32> to vector<8x256xf32>
    %14 = arith.addf %11, %13 : vector<8x256xf32>
    %cst_11 = arith.constant 0.000000e+00 : f32
    %15 = vector.broadcast %cst_11 : f32 to vector<8x256xf32>
    %16 = arith.maximumf %14, %15 : vector<8x256xf32>
    %cst_12 = arith.constant 0.000000e+00 : f32
    %17 = vector.broadcast %cst_12 : f32 to vector<8x17xf32>
    %18 = tpu.concatenate %17, %16, %17 in 1 : vector<8x17xf32>, vector<8x256xf32>, vector<8x17xf32> -> vector<8x290xf32>
    %c0_13 = arith.constant 0 : index
    %c0_14 = arith.constant 0 : index
    %19 = vector.load %arg2[%c0_13, %c0_14] : memref<2x256xf32, #tpu.memory_space<vmem>>, vector<2x256xf32>
    %20 = vector.extract_strided_slice %19 {offsets = [0, 0], sizes = [1, 256], strides = [1, 1]} : vector<2x256xf32> to vector<1x256xf32>
    %21 = vector.extract_strided_slice %19 {offsets = [1, 0], sizes = [1, 256], strides = [1, 1]} : vector<2x256xf32> to vector<1x256xf32>
    %22 = vector.extract_strided_slice %18 {offsets = [0, 0], sizes = [8, 256], strides = [1, 1]} : vector<8x290xf32> to vector<8x256xf32>
    %23 = vector.broadcast %20 : vector<1x256xf32> to vector<8x256xf32>
    %24 = arith.mulf %22, %23 : vector<8x256xf32>
    %25 = vector.extract_strided_slice %18 {offsets = [0, 1], sizes = [8, 256], strides = [1, 1]} : vector<8x290xf32> to vector<8x256xf32>
    %26 = vector.extract_strided_slice %18 {offsets = [0, 2], sizes = [8, 256], strides = [1, 1]} : vector<8x290xf32> to vector<8x256xf32>
    %27 = vector.broadcast %21 : vector<1x256xf32> to vector<8x256xf32>
    %28 = arith.mulf %26, %27 : vector<8x256xf32>
    %29 = vector.extract_strided_slice %18 {offsets = [0, 16], sizes = [8, 256], strides = [1, 1]} : vector<8x290xf32> to vector<8x256xf32>
    %30 = vector.broadcast %20 : vector<1x256xf32> to vector<8x256xf32>
    %31 = arith.mulf %29, %30 : vector<8x256xf32>
    %32 = vector.extract_strided_slice %18 {offsets = [0, 18], sizes = [8, 256], strides = [1, 1]} : vector<8x290xf32> to vector<8x256xf32>
    %33 = vector.broadcast %21 : vector<1x256xf32> to vector<8x256xf32>
    %34 = arith.mulf %32, %33 : vector<8x256xf32>
    %35 = vector.extract_strided_slice %18 {offsets = [0, 32], sizes = [8, 256], strides = [1, 1]} : vector<8x290xf32> to vector<8x256xf32>
    %36 = vector.broadcast %20 : vector<1x256xf32> to vector<8x256xf32>
    %37 = arith.mulf %35, %36 : vector<8x256xf32>
    %38 = vector.extract_strided_slice %18 {offsets = [0, 33], sizes = [8, 256], strides = [1, 1]} : vector<8x290xf32> to vector<8x256xf32>
    %39 = vector.extract_strided_slice %18 {offsets = [0, 34], sizes = [8, 256], strides = [1, 1]} : vector<8x290xf32> to vector<8x256xf32>
    %40 = vector.broadcast %21 : vector<1x256xf32> to vector<8x256xf32>
    %41 = arith.mulf %39, %40 : vector<8x256xf32>
    %42 = tpu.concatenate %24, %25, %28, %31, %16, %34, %37, %38, %41 in 0 : vector<8x256xf32>, vector<8x256xf32>, vector<8x256xf32>, vector<8x256xf32>, vector<8x256xf32>, vector<8x256xf32>, vector<8x256xf32>, vector<8x256xf32>, vector<8x256xf32> -> vector<72x256xf32>
    %c0_15 = arith.constant 0 : index
    %c0_16 = arith.constant 0 : index
    %43 = vector.load %arg7[%c0_15, %c0_16] : memref<8x72xf32, #tpu.memory_space<vmem>>, vector<8x72xf32>
    %cst_17 = arith.constant dense<0.000000e+00> : vector<8x256xf32>
    %44 = tpu.matmul %43, %42, %cst_17 {dimension_numbers = #tpu.dot_dimension_numbers<[1], [0], [0], [1], [0, 0, 1, 1], [], []>} : vector<8x72xf32>, vector<72x256xf32>, vector<8x256xf32> -> vector<8x256xf32>
    %c0_18 = arith.constant 0 : index
    %c0_19 = arith.constant 0 : index
    %45 = vector.load %arg8[%c0_18, %c0_19] : memref<8x1xf32, #tpu.memory_space<vmem>>, vector<8x1xf32>
    %46 = vector.broadcast %45 : vector<8x1xf32> to vector<8x256xf32>
    %47 = arith.addf %44, %46 : vector<8x256xf32>
    %cst_20 = arith.constant 0.000000e+00 : f32
    %48 = vector.broadcast %cst_20 : f32 to vector<8x256xf32>
    %49 = arith.maximumf %47, %48 : vector<8x256xf32>
    %c0_21 = arith.constant 0 : index
    %c0_22 = arith.constant 0 : index
    %50 = vector.load %arg9[%c0_21, %c0_22] : memref<8x8xf32, #tpu.memory_space<vmem>>, vector<8x8xf32>
    %cst_23 = arith.constant dense<0.000000e+00> : vector<8x256xf32>
    %51 = tpu.matmul %50, %49, %cst_23 {dimension_numbers = #tpu.dot_dimension_numbers<[1], [0], [0], [1], [0, 0, 1, 1], [], []>} : vector<8x8xf32>, vector<8x256xf32>, vector<8x256xf32> -> vector<8x256xf32>
    %c0_24 = arith.constant 0 : index
    %c0_25 = arith.constant 0 : index
    %52 = vector.load %arg10[%c0_24, %c0_25] : memref<8x1xf32, #tpu.memory_space<vmem>>, vector<8x1xf32>
    %53 = vector.broadcast %52 : vector<8x1xf32> to vector<8x256xf32>
    %54 = arith.addf %51, %53 : vector<8x256xf32>
    %55 = arith.addf %54, %1 : vector<8x256xf32>
    %c0_26 = arith.constant 0 : index
    %c0_27 = arith.constant 0 : index
    %c0_28 = arith.constant 0 : index
    %56 = vector.load %arg11[%c0_26, %c0_27, %c0_28] : memref<1x8x256xf32, #tpu.memory_space<vmem>>, vector<1x8x256xf32>
    %57 = vector.shape_cast %56 : vector<1x8x256xf32> to vector<8x256xf32>
    %58 = vector.shape_cast %55 : vector<8x256xf32> to vector<1x8x256xf32>
    tpu.vector_store %arg11[%c0_26, %c0_27, %c0_28], %58 {strides = array<i32>} : memref<1x8x256xf32, #tpu.memory_space<vmem>>, vector<1x8x256xf32>,
    return
  }
  func.func @transform_0(%arg0: i32) -> (i32, i32, i32) {
    %c0_i32 = arith.constant 0 : i32
    %c0_i32_0 = arith.constant 0 : i32
    %c0_i32_1 = arith.constant 0 : i32
    return %arg0, %c0_i32, %c0_i32_0 : i32, i32, i32
  }
  func.func @transform_1(%arg0: i32) -> (i32, i32) {
    %c0_i32 = arith.constant 0 : i32
    %c0_i32_0 = arith.constant 0 : i32
    %c0_i32_1 = arith.constant 0 : i32
    return %c0_i32, %c0_i32_0 : i32, i32
  }
  func.func @transform_2(%arg0: i32) -> (i32, i32) {
    %c0_i32 = arith.constant 0 : i32
    %c0_i32_0 = arith.constant 0 : i32
    %c0_i32_1 = arith.constant 0 : i32
    return %c0_i32, %c0_i32_0 : i32, i32
  }
  func.func @transform_3(%arg0: i32) -> (i32, i32) {
    %c0_i32 = arith.constant 0 : i32
    %c0_i32_0 = arith.constant 0 : i32
    %c0_i32_1 = arith.constant 0 : i32
    return %c0_i32, %c0_i32_0 : i32, i32
  }
  func.func @transform_4(%arg0: i32) -> (i32, i32) {
    %c0_i32 = arith.constant 0 : i32
    %c0_i32_0 = arith.constant 0 : i32
    %c0_i32_1 = arith.constant 0 : i32
    return %c0_i32, %c0_i32_0 : i32, i32
  }
  func.func @transform_5(%arg0: i32) -> (i32, i32) {
    %c0_i32 = arith.constant 0 : i32
    %c0_i32_0 = arith.constant 0 : i32
    %c0_i32_1 = arith.constant 0 : i32
    return %c0_i32, %c0_i32_0 : i32, i32
  }
  func.func @transform_6(%arg0: i32) -> (i32, i32) {
    %c0_i32 = arith.constant 0 : i32
    %c0_i32_0 = arith.constant 0 : i32
    %c0_i32_1 = arith.constant 0 : i32
    return %c0_i32, %c0_i32_0 : i32, i32
  }
  func.func @transform_7(%arg0: i32) -> (i32, i32) {
    %c0_i32 = arith.constant 0 : i32
    %c0_i32_0 = arith.constant 0 : i32
    %c0_i32_1 = arith.constant 0 : i32
    return %c0_i32, %c0_i32_0 : i32, i32
  }
  func.func @transform_8(%arg0: i32) -> (i32, i32) {
    %c0_i32 = arith.constant 0 : i32
    %c0_i32_0 = arith.constant 0 : i32
    %c0_i32_1 = arith.constant 0 : i32
    return %c0_i32, %c0_i32_0 : i32, i32
  }
  func.func @transform_9(%arg0: i32) -> (i32, i32) {
    %c0_i32 = arith.constant 0 : i32
    %c0_i32_0 = arith.constant 0 : i32
    %c0_i32_1 = arith.constant 0 : i32
    return %c0_i32, %c0_i32_0 : i32, i32
  }
  func.func @transform_10(%arg0: i32) -> (i32, i32, i32) {
    %c0_i32 = arith.constant 0 : i32
    %c0_i32_0 = arith.constant 0 : i32
    %c0_i32_1 = arith.constant 0 : i32
    return %arg0, %c0_i32, %c0_i32_0 : i32, i32, i32
  }
}

</mosaic_0001>

<llo_original>
// kernel: _lambda_.8
$region0: #{_lambda_.8}
  #allocation0 [shape = 'u32[]', space=smem, size = 0x4, offset = 0x4, fixed_abs, tag = 'smem constant byte address 0x4 - core index']
  #allocation1 [shape = 'u32[72,128]{1,0:T(1,128)}', space=vmem, size = 0x9000, scoped, tag = 'internal scratch']
  %s0 = inlined_call_operand.vmem [shape: f32[2,8,64], index: 0, kind: input, shape index: {}]
  %s1 = inlined_call_operand.vmem [shape: f32[2,64], index: 1, kind: input, shape index: {}]
  %s2 = inlined_call_operand.vmem [shape: f32[8,1], index: 2, kind: input, shape index: {}]
  %s3 = inlined_call_operand.vmem [shape: f32[8,1], index: 3, kind: input, shape index: {}]
  %s4 = inlined_call_operand.vmem [shape: f32[8,8], index: 4, kind: input, shape index: {}]
  %s5 = inlined_call_operand.vmem [shape: f32[8,1], index: 5, kind: input, shape index: {}]
  %s6 = inlined_call_operand.vmem [shape: f32[8,72], index: 6, kind: input, shape index: {}]
  %s7 = inlined_call_operand.vmem [shape: f32[8,1], index: 7, kind: input, shape index: {}]
  %s8 = inlined_call_operand.vmem [shape: f32[12,8], index: 8, kind: input, shape index: {}]
  %s9 = inlined_call_operand.vmem [shape: f32[12,1], index: 9, kind: input, shape index: {}]
  %s10 = inlined_call_operand.vmem [shape: f32[12,8], index: 10, kind: input, shape index: {}]
  %s11 = inlined_call_operand.vmem [shape: f32[12,1], index: 11, kind: input, shape index: {}]
  %s12 = inlined_call_operand.vmem [shape: f32[2,12,64], index: 12, kind: output, shape index: {}]
  %s13 = sld [smem:[#allocation0]]
  $region81: #{_lambda_.8} parent=0
    _
  %s15 = ssub.s32 1, %s13
  %s16 = scalar_select 0, %s15, %s13
  loop: start=0, step=1, limit=4
  $region2: #{_lambda_.8} parent=0 // loop_pre_header
    _
  $region3: #{_lambda_.8} parent=0 // loop_header
    %s18 = sphi 0, %s22
    %p19 = scmp.ge.s32.totalorder %s18, 4
    %s28 = sphi 0, %s30
    %s31 = sphi 0, %s28
    %s32 = sphi 0, %s31
    %s48 = sphi 0, %s32
    %s52 = sphi 0, %s52
    %s54 = sphi 0, %s52
    %s55 = sphi 0, %s54
    %s69 = sphi 0, %s55
    %s73 = sphi 0, %s73
    %s75 = sphi 0, %s73
    %s76 = sphi 0, %s75
    %s90 = sphi 0, %s76
    %s94 = sphi 0, %s94
    %s96 = sphi 0, %s94
    %s97 = sphi 0, %s96
    %s111 = sphi 0, %s97
    %s115 = sphi 0, %s115
    %s117 = sphi 0, %s115
    %s118 = sphi 0, %s117
    %s132 = sphi 0, %s118
    %s136 = sphi 0, %s136
    %s138 = sphi 0, %s136
    %s139 = sphi 0, %s138
    %s153 = sphi 0, %s139
    %s157 = sphi 0, %s157
    %s159 = sphi 0, %s157
    %s160 = sphi 0, %s159
    %s174 = sphi 0, %s160
    %s178 = sphi 0, %s178
    %s180 = sphi 0, %s178
    %s181 = sphi 0, %s180
    %s195 = sphi 0, %s181
    %s199 = sphi 0, %s199
    %s201 = sphi 0, %s199
    %s202 = sphi 0, %s201
    %s216 = sphi 0, %s202
    %s220 = sphi 0, %s220
    %s222 = sphi 0, %s220
    %s223 = sphi 0, %s222
    %s237 = sphi 0, %s223
    %s241 = sphi 0, %s241
    %s243 = sphi 0, %s241
    %s244 = sphi 0, %s243
    %s258 = sphi 0, %s244
    %s262 = sphi 0, %s262
    %s264 = sphi 0, %s262
    %s265 = sphi 0, %s264
    %s279 = sphi 0, %s265
    %s285 = sphi 0, %s287
    %s288 = sphi 0, %s285
    %s289 = sphi 0, %s288
    %s305 = sphi 0, %s289
  $region4: #{_lambda_.8} parent=0 // loop_header_branch
    %21 = sbr.rel (%p19) target = $region8
  $region5: #{_lambda_.8} parent=0 // loop_body
    %s23 = ssub.s32 %s18, 1
    %s24 = ssub.s32 %s18, 2
    %s25 = sadd.s32 %s18, 1
    %s26 = ssub.s32 %s18, %s25
    %p27 = scmp.eq.s32.totalorder %s26, 0
    %s29 = sadd.s32 %s28, 1
    %s30 = scalar_select %p27, %s28, %s29
    %p33 = pneg %p27
    %p34 = scmp.eq.s32.totalorder %s18, 1
    %p35 = por %p33, %p34
    %p36 = scmp.ne.s32.totalorder %s28, %s31
    %p37 = scmp.eq.s32.totalorder %s18, 0
    %p38 = por %p36, %p37
    %p39 = scmp.ne.s32.totalorder %s28, %s31
    %p40 = scmp.eq.s32.totalorder %s23, 1
    %p41 = por %p39, %p40
    %p42 = scmp.ne.s32.totalorder %s31, %s32
    %p43 = scmp.eq.s32.totalorder %s23, 0
    %p44 = por %p42, %p43
    %p45 = scmp.ne.s32.totalorder %s31, %s32
    %p46 = scmp.eq.s32.totalorder %s24, 1
    %p47 = por %p45, %p46
    %p49 = scmp.ne.s32.totalorder %s32, %s48
    %p50 = scmp.eq.s32.totalorder %s24, 0
    %p51 = por %p49, %p50
    %s53 = sadd.s32 %s52, 1
    %p56 = scmp.eq.s32.totalorder %s18, 1
    %p57 = scmp.ne.s32.totalorder %s52, %s54
    %p58 = scmp.eq.s32.totalorder %s18, 0
    %p59 = por %p57, %p58
    %p60 = scmp.ne.s32.totalorder %s52, %s54
    %p61 = scmp.eq.s32.totalorder %s23, 1
    %p62 = por %p60, %p61
    %p63 = scmp.ne.s32.totalorder %s54, %s55
    %p64 = scmp.eq.s32.totalorder %s23, 0
    %p65 = por %p63, %p64
    %p66 = scmp.ne.s32.totalorder %s54, %s55
    %p67 = scmp.eq.s32.totalorder %s24, 1
    %p68 = por %p66, %p67
    %p70 = scmp.ne.s32.totalorder %s55, %s69
    %p71 = scmp.eq.s32.totalorder %s24, 0
    %p72 = por %p70, %p71
    %s74 = sadd.s32 %s73, 1
    %p77 = scmp.eq.s32.totalorder %s18, 1
    %p78 = scmp.ne.s32.totalorder %s73, %s75
    %p79 = scmp.eq.s32.totalorder %s18, 0
    %p80 = por %p78, %p79
    %p81 = scmp.ne.s32.totalorder %s73, %s75
    %p82 = scmp.eq.s32.totalorder %s23, 1
    %p83 = por %p81, %p82
    %p84 = scmp.ne.s32.totalorder %s75, %s76
    %p85 = scmp.eq.s32.totalorder %s23, 0
    %p86 = por %p84, %p85
    %p87 = scmp.ne.s32.totalorder %s75, %s76
    %p88 = scmp.eq.s32.totalorder %s24, 1
    %p89 = por %p87, %p88
    %p91 = scmp.ne.s32.totalorder %s76, %s90
    %p92 = scmp.eq.s32.totalorder %s24, 0
    %p93 = por %p91, %p92
    %s95 = sadd.s32 %s94, 1
    %p98 = scmp.eq.s32.totalorder %s18, 1
    %p99 = scmp.ne.s32.totalorder %s94, %s96
    %p100 = scmp.eq.s32.totalorder %s18, 0
    %p101 = por %p99, %p100
    %p102 = scmp.ne.s32.totalorder %s94, %s96
    %p103 = scmp.eq.s32.totalorder %s23, 1
    %p104 = por %p102, %p103
    %p105 = scmp.ne.s32.totalorder %s96, %s97
    %p106 = scmp.eq.s32.totalorder %s23, 0
    %p107 = por %p105, %p106
    %p108 = scmp.ne.s32.totalorder %s96, %s97
    %p109 = scmp.eq.s32.totalorder %s24, 1
    %p110 = por %p108, %p109
    %p112 = scmp.ne.s32.totalorder %s97, %s111
    %p113 = scmp.eq.s32.totalorder %s24, 0
    %p114 = por %p112, %p113
    %s116 = sadd.s32 %s115, 1
    %p119 = scmp.eq.s32.totalorder %s18, 1
    %p120 = scmp.ne.s32.totalorder %s115, %s117
    %p121 = scmp.eq.s32.totalorder %s18, 0
    %p122 = por %p120, %p121
    %p123 = scmp.ne.s32.totalorder %s115, %s117
    %p124 = scmp.eq.s32.totalorder %s23, 1
    %p125 = por %p123, %p124
    %p126 = scmp.ne.s32.totalorder %s117, %s118
    %p127 = scmp.eq.s32.totalorder %s23, 0
    %p128 = por %p126, %p127
    %p129 = scmp.ne.s32.totalorder %s117, %s118
    %p130 = scmp.eq.s32.totalorder %s24, 1
    %p131 = por %p129, %p130
    %p133 = scmp.ne.s32.totalorder %s118, %s132
    %p134 = scmp.eq.s32.totalorder %s24, 0
    %p135 = por %p133, %p134
    %s137 = sadd.s32 %s136, 1
    %p140 = scmp.eq.s32.totalorder %s18, 1
    %p141 = scmp.ne.s32.totalorder %s136, %s138
    %p142 = scmp.eq.s32.totalorder %s18, 0
    %p143 = por %p141, %p142
    %p144 = scmp.ne.s32.totalorder %s136, %s138
    %p145 = scmp.eq.s32.totalorder %s23, 1
    %p146 = por %p144, %p145
    %p147 = scmp.ne.s32.totalorder %s138, %s139
    %p148 = scmp.eq.s32.totalorder %s23, 0
    %p149 = por %p147, %p148
    %p150 = scmp.ne.s32.totalorder %s138, %s139
    %p151 = scmp.eq.s32.totalorder %s24, 1
    %p152 = por %p150, %p151
    %p154 = scmp.ne.s32.totalorder %s139, %s153
    %p155 = scmp.eq.s32.totalorder %s24, 0
    %p156 = por %p154, %p155
    %s158 = sadd.s32 %s157, 1
    %p161 = scmp.eq.s32.totalorder %s18, 1
    %p162 = scmp.ne.s32.totalorder %s157, %s159
    %p163 = scmp.eq.s32.totalorder %s18, 0
    %p164 = por %p162, %p163
    %p165 = scmp.ne.s32.totalorder %s157, %s159
    %p166 = scmp.eq.s32.totalorder %s23, 1
    %p167 = por %p165, %p166
    %p168 = scmp.ne.s32.totalorder %s159, %s160
    %p169 = scmp.eq.s32.totalorder %s23, 0
    %p170 = por %p168, %p169
    %p171 = scmp.ne.s32.totalorder %s159, %s160
    %p172 = scmp.eq.s32.totalorder %s24, 1
    %p173 = por %p171, %p172
    %p175 = scmp.ne.s32.totalorder %s160, %s174
    %p176 = scmp.eq.s32.totalorder %s24, 0
    %p177 = por %p175, %p176
    %s179 = sadd.s32 %s178, 1
    %p182 = scmp.eq.s32.totalorder %s18, 1
    %p183 = scmp.ne.s32.totalorder %s178, %s180
    %p184 = scmp.eq.s32.totalorder %s18, 0
    %p185 = por %p183, %p184
    %p186 = scmp.ne.s32.totalorder %s178, %s180
    %p187 = scmp.eq.s32.totalorder %s23, 1
    %p188 = por %p186, %p187
    %p189 = scmp.ne.s32.totalorder %s180, %s181
    %p190 = scmp.eq.s32.totalorder %s23, 0
    %p191 = por %p189, %p190
    %p192 = scmp.ne.s32.totalorder %s180, %s181
    %p193 = scmp.eq.s32.totalorder %s24, 1
    %p194 = por %p192, %p193
    %p196 = scmp.ne.s32.totalorder %s181, %s195
    %p197 = scmp.eq.s32.totalorder %s24, 0
    %p198 = por %p196, %p197
    %s200 = sadd.s32 %s199, 1
    %p203 = scmp.eq.s32.totalorder %s18, 1
    %p204 = scmp.ne.s32.totalorder %s199, %s201
    %p205 = scmp.eq.s32.totalorder %s18, 0
    %p206 = por %p204, %p205
    %p207 = scmp.ne.s32.totalorder %s199, %s201
    %p208 = scmp.eq.s32.totalorder %s23, 1
    %p209 = por %p207, %p208
    %p210 = scmp.ne.s32.totalorder %s201, %s202
    %p211 = scmp.eq.s32.totalorder %s23, 0
    %p212 = por %p210, %p211
    %p213 = scmp.ne.s32.totalorder %s201, %s202
    %p214 = scmp.eq.s32.totalorder %s24, 1
    %p215 = por %p213, %p214
    %p217 = scmp.ne.s32.totalorder %s202, %s216
    %p218 = scmp.eq.s32.totalorder %s24, 0
    %p219 = por %p217, %p218
    %s221 = sadd.s32 %s220, 1
    %p224 = scmp.eq.s32.totalorder %s18, 1
    %p225 = scmp.ne.s32.totalorder %s220, %s222
    %p226 = scmp.eq.s32.totalorder %s18, 0
    %p227 = por %p225, %p226
    %p228 = scmp.ne.s32.totalorder %s220, %s222
    %p229 = scmp.eq.s32.totalorder %s23, 1
    %p230 = por %p228, %p229
    %p231 = scmp.ne.s32.totalorder %s222, %s223
    %p232 = scmp.eq.s32.totalorder %s23, 0
    %p233 = por %p231, %p232
    %p234 = scmp.ne.s32.totalorder %s222, %s223
    %p235 = scmp.eq.s32.totalorder %s24, 1
    %p236 = por %p234, %p235
    %p238 = scmp.ne.s32.totalorder %s223, %s237
    %p239 = scmp.eq.s32.totalorder %s24, 0
    %p240 = por %p238, %p239
    %s242 = sadd.s32 %s241, 1
    %p245 = scmp.eq.s32.totalorder %s18, 1
    %p246 = scmp.ne.s32.totalorder %s241, %s243
    %p247 = scmp.eq.s32.totalorder %s18, 0
    %p248 = por %p246, %p247
    %p249 = scmp.ne.s32.totalorder %s241, %s243
    %p250 = scmp.eq.s32.totalorder %s23, 1
    %p251 = por %p249, %p250
    %p252 = scmp.ne.s32.totalorder %s243, %s244
    %p253 = scmp.eq.s32.totalorder %s23, 0
    %p254 = por %p252, %p253
    %p255 = scmp.ne.s32.totalorder %s243, %s244
    %p256 = scmp.eq.s32.totalorder %s24, 1
    %p257 = por %p255, %p256
    %p259 = scmp.ne.s32.totalorder %s244, %s258
    %p260 = scmp.eq.s32.totalorder %s24, 0
    %p261 = por %p259, %p260
    %s263 = sadd.s32 %s262, 1
    %p266 = scmp.eq.s32.totalorder %s18, 1
    %p267 = scmp.ne.s32.totalorder %s262, %s264
    %p268 = scmp.eq.s32.totalorder %s18, 0
    %p269 = por %p267, %p268
    %p270 = scmp.ne.s32.totalorder %s262, %s264
    %p271 = scmp.eq.s32.totalorder %s23, 1
    %p272 = por %p270, %p271
    %p273 = scmp.ne.s32.totalorder %s264, %s265
    %p274 = scmp.eq.s32.totalorder %s23, 0
    %p275 = por %p273, %p274
    %p276 = scmp.ne.s32.totalorder %s264, %s265
    %p277 = scmp.eq.s32.totalorder %s24, 1
    %p278 = por %p276, %p277
    %p280 = scmp.ne.s32.totalorder %s265, %s279
    %p281 = scmp.eq.s32.totalorder %s24, 0
    %p282 = por %p280, %p281
    %s283 = ssub.s32 %s18, %s25
    %p284 = scmp.eq.s32.totalorder %s283, 0
    %s286 = sadd.s32 %s285, 1
    %s287 = scalar_select %p284, %s285, %s286
    %p290 = pneg %p284
    %p291 = scmp.eq.s32.totalorder %s18, 1
    %p292 = por %p290, %p291
    %p293 = scmp.ne.s32.totalorder %s285, %s288
    %p294 = scmp.eq.s32.totalorder %s18, 0
    %p295 = por %p293, %p294
    %p296 = scmp.ne.s32.totalorder %s285, %s288
    %p297 = scmp.eq.s32.totalorder %s23, 1
    %p298 = por %p296, %p297
    %p299 = scmp.ne.s32.totalorder %s288, %s289
    %p300 = scmp.eq.s32.totalorder %s23, 0
    %p301 = por %p299, %p300
    %p302 = scmp.ne.s32.totalorder %s288, %s289
    %p303 = scmp.eq.s32.totalorder %s24, 1
    %p304 = por %p302, %p303
    %p306 = scmp.ne.s32.totalorder %s289, %s305
    %p307 = scmp.eq.s32.totalorder %s24, 0
    %p308 = por %p306, %p307
    %p309 = scmp.le.s32.totalorder 1, %s18
    %p310 = scmp.lt.s32.totalorder %s18, 3
    %p311 = pnand %p309, %p310
    %p312 = pneg %p311
    // Predicated region
    $region9: #{_lambda_.8} parent=5 // pred_check
      _
    $region10: #{_lambda_.8} parent=5 // pred_check_branch
      %314 = sbr.rel (%p311) target = $region12
    $region11: #{_lambda_.8} parent=5 // pred_region
      %s315 = ssub.s32 %s18, 1
      // Predicated region
      $region13: #{_lambda_.8} parent=11 // pred_check
        %p316 = pneg %p65
      $region14: #{_lambda_.8} parent=11 // pred_check_branch
        %318 = sbr.rel (%p316) target = $region16
      $region15: #{_lambda_.8} parent=11 // pred_region
        _
      $region16: #{_lambda_.8} parent=11 // pred_fallthru
        _
      // Predicated region
      $region17: #{_lambda_.8} parent=11 // pred_check
        %p319 = pneg %p86
      $region18: #{_lambda_.8} parent=11 // pred_check_branch
        %321 = sbr.rel (%p319) target = $region20
      $region19: #{_lambda_.8} parent=11 // pred_region
        _
      $region20: #{_lambda_.8} parent=11 // pred_fallthru
        _
      // Predicated region
      $region21: #{_lambda_.8} parent=11 // pred_check
        %p322 = pneg %p107
      $region22: #{_lambda_.8} parent=11 // pred_check_branch
        %324 = sbr.rel (%p322) target = $region24
      $region23: #{_lambda_.8} parent=11 // pred_region
        _
      $region24: #{_lambda_.8} parent=11 // pred_fallthru
        _
      // Predicated region
      $region25: #{_lambda_.8} parent=11 // pred_check
        %p325 = pneg %p128
      $region26: #{_lambda_.8} parent=11 // pred_check_branch
        %327 = sbr.rel (%p325) target = $region28
      $region27: #{_lambda_.8} parent=11 // pred_region
        _
      $region28: #{_lambda_.8} parent=11 // pred_fallthru
        _
      // Predicated region
      $region29: #{_lambda_.8} parent=11 // pred_check
        %p328 = pneg %p149
      $region30: #{_lambda_.8} parent=11 // pred_check_branch
        %330 = sbr.rel (%p328) target = $region32
      $region31: #{_lambda_.8} parent=11 // pred_region
        _
      $region32: #{_lambda_.8} parent=11 // pred_fallthru
        _
      // Predicated region
      $region33: #{_lambda_.8} parent=11 // pred_check
        %p331 = pneg %p170
      $region34: #{_lambda_.8} parent=11 // pred_check_branch
        %333 = sbr.rel (%p331) target = $region36
      $region35: #{_lambda_.8} parent=11 // pred_region
        _
      $region36: #{_lambda_.8} parent=11 // pred_fallthru
        _
      // Predicated region
      $region37: #{_lambda_.8} parent=11 // pred_check
        %p334 = pneg %p191
      $region38: #{_lambda_.8} parent=11 // pred_check_branch
        %336 = sbr.rel (%p334) target = $region40
      $region39: #{_lambda_.8} parent=11 // pred_region
        _
      $region40: #{_lambda_.8} parent=11 // pred_fallthru
        _
      // Predicated region
      $region41: #{_lambda_.8} parent=11 // pred_check
        %p337 = pneg %p212
      $region42: #{_lambda_.8} parent=11 // pred_check_branch
        %339 = sbr.rel (%p337) target = $region44
      $region43: #{_lambda_.8} parent=11 // pred_region
        _
      $region44: #{_lambda_.8} parent=11 // pred_fallthru
        _
      // Predicated region
      $region45: #{_lambda_.8} parent=11 // pred_check
        %p340 = pneg %p233
      $region46: #{_lambda_.8} parent=11 // pred_check_branch
        %342 = sbr.rel (%p340) target = $region48
      $region47: #{_lambda_.8} parent=11 // pred_region
        _
      $region48: #{_lambda_.8} parent=11 // pred_fallthru
        _
      // Predicated region
      $region49: #{_lambda_.8} parent=11 // pred_check
        %p343 = pneg %p254
      $region50: #{_lambda_.8} parent=11 // pred_check_branch
        %345 = sbr.rel (%p343) target = $region52
      $region51: #{_lambda_.8} parent=11 // pred_region
        _
      $region52: #{_lambda_.8} parent=11 // pred_fallthru
        _
      // Predicated region
      $region53: #{_lambda_.8} parent=11 // pred_check
        %p346 = pneg %p275
      $region54: #{_lambda_.8} parent=11 // pred_check_branch
        %348 = sbr.rel (%p346) target = $region56
      $region55: #{_lambda_.8} parent=11 // pred_region
        _
      $region56: #{_lambda_.8} parent=11 // pred_fallthru
        _
    $region12: #{_lambda_.8} parent=5 // pred_fallthru
      _
    %p349 = scmp.lt.s32.totalorder %s18, 2
    // Predicated region
    $region57: #{_lambda_.8} parent=5 // pred_check
      %p350 = pneg %p349
    $region58: #{_lambda_.8} parent=5 // pred_check_branch
      %352 = sbr.rel (%p350) target = $region60
    $region59: #{_lambda_.8} parent=5 // pred_region
      // Predicated region
      $region61: #{_lambda_.8} parent=59 // pred_check
        %p353 = pneg %p38
      $region62: #{_lambda_.8} parent=59 // pred_check_branch
        %355 = sbr.rel (%p353) target = $region64
      $region63: #{_lambda_.8} parent=59 // pred_region
        %p356 = scmp.lt.s32.totalorder %s18, 1
        %s357 = scalar_select %p356, %s18, 1
        %s358 = smul.addr %s357, 8
        %s359 = scalar_lea.vmem %s0, %s358
      $region64: #{_lambda_.8} parent=59 // pred_fallthru
        _
    $region60: #{_lambda_.8} parent=5 // pred_fallthru
      _
    %p360 = scmp.le.s32.totalorder 1, %s18
    %p361 = scmp.lt.s32.totalorder %s18, 3
    %p362 = pnand %p360, %p361
    %p363 = pneg %p362
    // Predicated region
    $region65: #{_lambda_.8} parent=5 // pred_check
      _
    $region66: #{_lambda_.8} parent=5 // pred_check_branch
      %365 = sbr.rel (%p362) target = $region68
    $region67: #{_lambda_.8} parent=5 // pred_region
      %s366 = ssub.s32 %s18, 1
      %p367 = scmp.lt.s32.totalorder %s23, 1
      %s368 = scalar_select %p367, %s23, 1
      %s369 = smul.addr %s368, 8
      %s370 = scalar_lea.vmem %s0, %s369
      %p371 = pneg %p44
      %p372 = pneg %p41
      %p373 = pneg %p65
      %p374 = pneg %p62
      %p375 = pneg %p86
      %p376 = pneg %p83
      %p377 = pneg %p107
      %p378 = pneg %p104
      %p379 = pneg %p128
      %p380 = pneg %p125
      %p381 = pneg %p149
      %p382 = pneg %p146
      %p383 = pneg %p170
      %p384 = pneg %p167
      %p385 = pneg %p191
      %p386 = pneg %p188
      %p387 = pneg %p212
      %p388 = pneg %p209
      %p389 = pneg %p233
      %p390 = pneg %p230
      %p391 = pneg %p254
      %p392 = pneg %p251
      %p393 = pneg %p275
      %p394 = pneg %p272
      %p395 = pneg %p301
      %p396 = pneg %p298
      %p397 = scmp.lt.s32.totalorder %s23, 1
      %s398 = scalar_select %p397, %s23, 1
      %s399 = smul.addr %s398, 2
      %s400 = smul.addr %s399, 8
      %s401 = scalar_lea.vmem %s12, %s400
      %p402 = scmp.lt.s32.totalorder %s23, 1
      %s403 = scalar_select %p402, %s23, 1
      %s404 = smul.addr %s403, 8
      %s405 = scalar_lea.vmem %s0, %s404
      %p406 = scmp.lt.s32.totalorder %s23, 1
      %s407 = scalar_select %p406, %s23, 1
      %s408 = smul.addr %s407, 2
      %s409 = smul.addr %s408, 8
      %s410 = scalar_lea.vmem %s12, %s409
      %v411 = vld [vmem:[%s405] sm:$0xff]
      %v412 = vld [vmem:[%s10] sm:$0xff]
      %v413 = vld [vmem:[%s10 + $0x8] sm:$0xf]
      %v414 = vld [vmem:[%s11] sm:$0xff]
      %v415 = vld [vmem:[%s11 + $0x8] sm:$0xf]
      %417 = vset.pattern.permute.xlu0 0
      %418 = vperm.xlu0 %417, %v414
      %v419 = vpop.permute.xlu0 %418
      %422 = vset.pattern.permute.xlu0 0
      %423 = vperm.xlu0 %422, %v415
      %v424 = vpop.permute.xlu0 %423
      %vm426 = vcmask 64512
      %v428 = vsel %vm426, %v412, 0
      %v431 = vsel %vm426, %v413, 0
      %433 = vmatpush.msra.mxu0 0.0
      %434 = vmatpush.msra.mxu0 0.0
      %435 = vmatpush.msra.mxu0 0.0
      %436 = vmatpush.msra.mxu0 0.0
      %437 = vmatpush.msra.mxu0 0.0
      %438 = vmatpush.msra.mxu0 0.0
      %439 = vmatpush.msra.mxu0 0.0
      %440 = vmatpush.msra.mxu0 0.0
      %441 = vmatpush.msra.mxu0 0.0
      %442 = vmatpush.msra.mxu0 0.0
      %443 = vmatpush.msra.mxu0 0.0
      %444 = vmatpush.msra.mxu0 0.0
      %445 = vmatpush.msra.mxu0 0.0
      %446 = vmatpush.msra.mxu0 0.0
      %447 = vmatpush.msra.mxu0 0.0
      %448 = vmatpush.msra.mxu0 %v411
      %449 = vmatmul.f32.gmra.mxu0 %v428
      %v450 = vpop.f32.mrf.mxu0
      %v451 = vadd.f32 %v419, %v450
      %452 = vmatmul.f32.gmra.mxu0 %v431
      %v453 = vpop.f32.mrf.mxu0
      %v454 = vadd.f32 %v424, %v453
      %455 = vdwg.mxu0
      %v456 = vld [vmem:[%s2] sm:$0xff]
      %458 = vset.pattern.permute.xlu0 0
      %459 = vperm.xlu0 %458, %v456
      %v460 = vpop.permute.xlu0 %459
      %v462 = vmul.f32 %v411, %v460
      %v463 = vld [vmem:[%s3] sm:$0xff]
      %465 = vset.pattern.permute.xlu0 0
      %466 = vperm.xlu0 %465, %v463
      %v467 = vpop.permute.xlu0 %466
      %v469 = vadd.f32 %v462, %v467
      %v470 = vmax.f32 %v469, 0.0
      %v471 = vld [vmem:[%s4] sm:$0xff]
      %v472 = vld [vmem:[%s5] sm:$0xff]
      %474 = vset.pattern.permute.xlu0 0
      %475 = vperm.xlu0 %474, %v472
      %v476 = vpop.permute.xlu0 %475
      %v479 = vsel %vm426, %v471, 0
      %481 = vmatpush.msra.mxu0 0.0
      %482 = vmatpush.msra.mxu0 0.0
      %483 = vmatpush.msra.mxu0 0.0
      %484 = vmatpush.msra.mxu0 0.0
      %485 = vmatpush.msra.mxu0 0.0
      %486 = vmatpush.msra.mxu0 0.0
      %487 = vmatpush.msra.mxu0 0.0
      %488 = vmatpush.msra.mxu0 0.0
      %489 = vmatpush.msra.mxu0 0.0
      %490 = vmatpush.msra.mxu0 0.0
      %491 = vmatpush.msra.mxu0 0.0
      %492 = vmatpush.msra.mxu0 0.0
      %493 = vmatpush.msra.mxu0 0.0
      %494 = vmatpush.msra.mxu0 0.0
      %495 = vmatpush.msra.mxu0 0.0
      %496 = vmatpush.msra.mxu0 %v470
      %497 = vmatmul.f32.gmra.mxu0 %v479
      %v498 = vpop.f32.mrf.mxu0
      %v499 = vadd.f32 %v476, %v498
      %500 = vdwg.mxu0
      %v501 = vmax.f32 %v499, 0.0
      %503 = vrot.lane.b32.xlu0 %v501, 9
      %v504 = vpop.permute.xlu0 %503
      %vm506 = vcmask 72704
      %v507 = vsel %vm506, 0.0, %v504
      %vm508 = vcmask 596992
      %v509 = vsel %vm508, %v507, 0.0
      %v510 = vld [vmem:[%s1] sm:$0x3]
      %v511 = vperm.slane %v510, 0
      %v512 = vmul.f32 %v509, %v511
      %v513 = vperm.slane %v510, 1
      %515 = vrot.lane.b32.xlu0 %v513, 2
      %v516 = vpop.permute.xlu0 %515
      %v518 = vmul.f32 %v509, %v516
      %520 = vrot.lane.b32.xlu0 %v511, 8
      %v521 = vpop.permute.xlu0 %520
      %v523 = vmul.f32 %v509, %v521
      %524 = vrot.lane.b32.xlu0 %v513, 10
      %v525 = vpop.permute.xlu0 %524
      %v527 = vmul.f32 %v509, %v525
      %528 = vrot.lane.b32.xlu0 %v511, 16
      %v529 = vpop.permute.xlu0 %528
      %v531 = vmul.f32 %v509, %v529
      %532 = vrot.lane.b32.xlu0 %v513, 18
      %v533 = vpop.permute.xlu0 %532
      %v535 = vmul.f32 %v509, %v533
      %537 = vrot.lane.b32.xlu0 %v509, 127
      %v538 = vpop.permute.xlu0 %537
      %541 = vrot.lane.b32.xlu0 %v518, 126
      %v542 = vpop.permute.xlu0 %541
      %545 = vrot.lane.b32.xlu0 %v523, 120
      %v546 = vpop.permute.xlu0 %545
      %549 = vrot.lane.b32.xlu0 %v527, 118
      %v550 = vpop.permute.xlu0 %549
      %553 = vrot.lane.b32.xlu0 %v531, 112
      %v554 = vpop.permute.xlu0 %553
      %556 = vrot.lane.b32.xlu0 %v509, 111
      %v557 = vpop.permute.xlu0 %556
      %560 = vrot.lane.b32.xlu0 %v535, 110
      %v561 = vpop.permute.xlu0 %560
      %v563 = vld [vmem:[%s6] sm:$0xff]
      %v564 = vld [vmem:[%s7] sm:$0xff]
      %566 = vset.pattern.permute.xlu0 0
      %567 = vperm.xlu0 %566, %v564
      %v568 = vpop.permute.xlu0 %567
      %vm570 = vcmask 588800
      %v572 = vsel %vm570, %v563, 0
      %574 = vmatpush.msra.mxu0 0.0
      %575 = vmatpush.msra.mxu0 0.0
      %576 = vmatpush.msra.mxu0 0.0
      %577 = vmatpush.msra.mxu0 0.0
      %578 = vmatpush.msra.mxu0 0.0
      %579 = vmatpush.msra.mxu0 0.0
      %580 = vmatpush.msra.mxu0 0.0
      %581 = vmatpush.msra.mxu0 %v561
      %582 = vmatpush.msra.mxu0 %v557
      %583 = vmatpush.msra.mxu0 %v554
      %584 = vmatpush.msra.mxu0 %v550
      %585 = vmatpush.msra.mxu0 %v501
      %586 = vmatpush.msra.mxu0 %v546
      %587 = vmatpush.msra.mxu0 %v542
      %588 = vmatpush.msra.mxu0 %v538
      %589 = vmatpush.msra.mxu0 %v512
      %590 = vmatmul.f32.gmra.mxu0 %v572
      %v591 = vpop.f32.mrf.mxu0
      %v592 = vadd.f32 %v568, %v591
      %593 = vdwg.mxu0
      %v594 = vmax.f32 %v592, 0.0
      %v595 = vld [vmem:[%s8] sm:$0xff]
      %v596 = vld [vmem:[%s8 + $0x8] sm:$0xf]
      %v597 = vld [vmem:[%s9] sm:$0xff]
      %v598 = vld [vmem:[%s9 + $0x8] sm:$0xf]
      %600 = vset.pattern.permute.xlu0 0
      %601 = vperm.xlu0 %600, %v597
      %v602 = vpop.permute.xlu0 %601
      %605 = vset.pattern.permute.xlu0 0
      %606 = vperm.xlu0 %605, %v598
      %v607 = vpop.permute.xlu0 %606
      %v610 = vsel %vm426, %v595, 0
      %v613 = vsel %vm426, %v596, 0
      %615 = vmatpush.msra.mxu0 0.0
      %616 = vmatpush.msra.mxu0 0.0
      %617 = vmatpush.msra.mxu0 0.0
      %618 = vmatpush.msra.mxu0 0.0
      %619 = vmatpush.msra.mxu0 0.0
      %620 = vmatpush.msra.mxu0 0.0
      %621 = vmatpush.msra.mxu0 0.0
      %622 = vmatpush.msra.mxu0 0.0
      %623 = vmatpush.msra.mxu0 0.0
      %624 = vmatpush.msra.mxu0 0.0
      %625 = vmatpush.msra.mxu0 0.0
      %626 = vmatpush.msra.mxu0 0.0
      %627 = vmatpush.msra.mxu0 0.0
      %628 = vmatpush.msra.mxu0 0.0
      %629 = vmatpush.msra.mxu0 0.0
      %630 = vmatpush.msra.mxu0 %v594
      %631 = vmatmul.f32.gmra.mxu0 %v610
      %v632 = vpop.f32.mrf.mxu0
      %v633 = vadd.f32 %v602, %v632
      %634 = vmatmul.f32.gmra.mxu0 %v613
      %v635 = vpop.f32.mrf.mxu0
      %v636 = vadd.f32 %v607, %v635
      %637 = vdwg.mxu0
      %v638 = vadd.f32 %v633, %v451
      %v639 = vadd.f32 %v636, %v454
      %vm640 = vcmask 523264
      %641 = vst.msk [vmem:[%s410] sm:$0xff] %vm640, %v638
      %vm642 = vcmask 519168
      %643 = vst.msk [vmem:[%s410 + $0x8] sm:$0xf] %vm642, %v639
      %p644 = scmp.lt.s32.totalorder %s23, 1
      %s645 = scalar_select %p644, %s23, 1
      %s646 = smul.addr %s645, 2
      %s647 = smul.addr %s646, 8
      %s648 = scalar_lea.vmem %s12, %s647
      // Predicated region
      $region69: #{_lambda_.8} parent=67 // pred_check
        %p649 = pneg %p298
      $region70: #{_lambda_.8} parent=67 // pred_check_branch
        %651 = sbr.rel (%p649) target = $region72
      $region71: #{_lambda_.8} parent=67 // pred_region
        _
      $region72: #{_lambda_.8} parent=67 // pred_fallthru
        _
    $region68: #{_lambda_.8} parent=5 // pred_fallthru
      _
    %p652 = scmp.le.s32.totalorder 2, %s18
    // Predicated region
    $region73: #{_lambda_.8} parent=5 // pred_check
      %p653 = pneg %p652
    $region74: #{_lambda_.8} parent=5 // pred_check_branch
      %655 = sbr.rel (%p653) target = $region76
    $region75: #{_lambda_.8} parent=5 // pred_region
      %s656 = ssub.s32 %s18, 2
      // Predicated region
      $region77: #{_lambda_.8} parent=75 // pred_check
        %p657 = pneg %p304
      $region78: #{_lambda_.8} parent=75 // pred_check_branch
        %659 = sbr.rel (%p657) target = $region80
      $region79: #{_lambda_.8} parent=75 // pred_region
        %p660 = scmp.lt.s32.totalorder %s24, 1
        %s661 = scalar_select %p660, %s24, 1
        %s662 = smul.addr %s661, 2
        %s663 = smul.addr %s662, 8
        %s664 = scalar_lea.vmem %s12, %s663
      $region80: #{_lambda_.8} parent=75 // pred_fallthru
        _
    $region76: #{_lambda_.8} parent=5 // pred_fallthru
      _
  $region6: #{_lambda_.8} parent=0 // loop_footer
    %s22 = sadd.s32 1, %s18
  $region7: #{_lambda_.8} parent=0 // loop_footer_branch
    %17 = sbr.rel target = $region3
  $region8: #{_lambda_.8} parent=0 // loop_exit
    _

// kernel: _lambda_.10
$region0: #{_lambda_.10}
  #allocation0 [shape = 'u32[]', space=smem, size = 0x4, offset = 0x4, fixed_abs, tag = 'smem constant byte address 0x4 - core index']
  #allocation1 [shape = 'u32[72,128]{1,0:T(1,128)}', space=vmem, size = 0x9000, scoped, tag = 'internal scratch']
  %s0 = inlined_call_operand.vmem [shape: f32[2,12,16], index: 0, kind: input, shape index: {}]
  %s1 = inlined_call_operand.vmem [shape: f32[2,16], index: 1, kind: input, shape index: {}]
  %s2 = inlined_call_operand.vmem [shape: f32[12,1], index: 2, kind: input, shape index: {}]
  %s3 = inlined_call_operand.vmem [shape: f32[12,1], index: 3, kind: input, shape index: {}]
  %s4 = inlined_call_operand.vmem [shape: f32[8,12], index: 4, kind: input, shape index: {}]
  %s5 = inlined_call_operand.vmem [shape: f32[8,1], index: 5, kind: input, shape index: {}]
  %s6 = inlined_call_operand.vmem [shape: f32[8,72], index: 6, kind: input, shape index: {}]
  %s7 = inlined_call_operand.vmem [shape: f32[8,1], index: 7, kind: input, shape index: {}]
  %s8 = inlined_call_operand.vmem [shape: f32[16,8], index: 8, kind: input, shape index: {}]
  %s9 = inlined_call_operand.vmem [shape: f32[16,1], index: 9, kind: input, shape index: {}]
  %s10 = inlined_call_operand.vmem [shape: f32[16,12], index: 10, kind: input, shape index: {}]
  %s11 = inlined_call_operand.vmem [shape: f32[16,1], index: 11, kind: input, shape index: {}]
  %s12 = inlined_call_operand.vmem [shape: f32[2,16,16], index: 12, kind: output, shape index: {}]
  %s13 = sld [smem:[#allocation0]]
  $region81: #{_lambda_.10} parent=0
    _
  %s15 = ssub.s32 1, %s13
  %s16 = scalar_select 0, %s15, %s13
  loop: start=0, step=1, limit=4
  $region2: #{_lambda_.10} parent=0 // loop_pre_header
    _
  $region3: #{_lambda_.10} parent=0 // loop_header
    %s18 = sphi 0, %s22
    %p19 = scmp.ge.s32.totalorder %s18, 4
    %s28 = sphi 0, %s30
    %s31 = sphi 0, %s28
    %s32 = sphi 0, %s31
    %s48 = sphi 0, %s32
    %s52 = sphi 0, %s52
    %s54 = sphi 0, %s52
    %s55 = sphi 0, %s54
    %s69 = sphi 0, %s55
    %s73 = sphi 0, %s73
    %s75 = sphi 0, %s73
    %s76 = sphi 0, %s75
    %s90 = sphi 0, %s76
    %s94 = sphi 0, %s94
    %s96 = sphi 0, %s94
    %s97 = sphi 0, %s96
    %s111 = sphi 0, %s97
    %s115 = sphi 0, %s115
    %s117 = sphi 0, %s115
    %s118 = sphi 0, %s117
    %s132 = sphi 0, %s118
    %s136 = sphi 0, %s136
    %s138 = sphi 0, %s136
    %s139 = sphi 0, %s138
    %s153 = sphi 0, %s139
    %s157 = sphi 0, %s157
    %s159 = sphi 0, %s157
    %s160 = sphi 0, %s159
    %s174 = sphi 0, %s160
    %s178 = sphi 0, %s178
    %s180 = sphi 0, %s178
    %s181 = sphi 0, %s180
    %s195 = sphi 0, %s181
    %s199 = sphi 0, %s199
    %s201 = sphi 0, %s199
    %s202 = sphi 0, %s201
    %s216 = sphi 0, %s202
    %s220 = sphi 0, %s220
    %s222 = sphi 0, %s220
    %s223 = sphi 0, %s222
    %s237 = sphi 0, %s223
    %s241 = sphi 0, %s241
    %s243 = sphi 0, %s241
    %s244 = sphi 0, %s243
    %s258 = sphi 0, %s244
    %s262 = sphi 0, %s262
    %s264 = sphi 0, %s262
    %s265 = sphi 0, %s264
    %s279 = sphi 0, %s265
    %s285 = sphi 0, %s287
    %s288 = sphi 0, %s285
    %s289 = sphi 0, %s288
    %s305 = sphi 0, %s289
  $region4: #{_lambda_.10} parent=0 // loop_header_branch
    %21 = sbr.rel (%p19) target = $region8
  $region5: #{_lambda_.10} parent=0 // loop_body
    %s23 = ssub.s32 %s18, 1
    %s24 = ssub.s32 %s18, 2
    %s25 = sadd.s32 %s18, 1
    %s26 = ssub.s32 %s18, %s25
    %p27 = scmp.eq.s32.totalorder %s26, 0
    %s29 = sadd.s32 %s28, 1
    %s30 = scalar_select %p27, %s28, %s29
    %p33 = pneg %p27
    %p34 = scmp.eq.s32.totalorder %s18, 1
    %p35 = por %p33, %p34
    %p36 = scmp.ne.s32.totalorder %s28, %s31
    %p37 = scmp.eq.s32.totalorder %s18, 0
    %p38 = por %p36, %p37
    %p39 = scmp.ne.s32.totalorder %s28, %s31
    %p40 = scmp.eq.s32.totalorder %s23, 1
    %p41 = por %p39, %p40
    %p42 = scmp.ne.s32.totalorder %s31, %s32
    %p43 = scmp.eq.s32.totalorder %s23, 0
    %p44 = por %p42, %p43
    %p45 = scmp.ne.s32.totalorder %s31, %s32
    %p46 = scmp.eq.s32.totalorder %s24, 1
    %p47 = por %p45, %p46
    %p49 = scmp.ne.s32.totalorder %s32, %s48
    %p50 = scmp.eq.s32.totalorder %s24, 0
    %p51 = por %p49, %p50
    %s53 = sadd.s32 %s52, 1
    %p56 = scmp.eq.s32.totalorder %s18, 1
    %p57 = scmp.ne.s32.totalorder %s52, %s54
    %p58 = scmp.eq.s32.totalorder %s18, 0
    %p59 = por %p57, %p58
    %p60 = scmp.ne.s32.totalorder %s52, %s54
    %p61 = scmp.eq.s32.totalorder %s23, 1
    %p62 = por %p60, %p61
    %p63 = scmp.ne.s32.totalorder %s54, %s55
    %p64 = scmp.eq.s32.totalorder %s23, 0
    %p65 = por %p63, %p64
    %p66 = scmp.ne.s32.totalorder %s54, %s55
    %p67 = scmp.eq.s32.totalorder %s24, 1
    %p68 = por %p66, %p67
    %p70 = scmp.ne.s32.totalorder %s55, %s69
    %p71 = scmp.eq.s32.totalorder %s24, 0
    %p72 = por %p70, %p71
    %s74 = sadd.s32 %s73, 1
    %p77 = scmp.eq.s32.totalorder %s18, 1
    %p78 = scmp.ne.s32.totalorder %s73, %s75
    %p79 = scmp.eq.s32.totalorder %s18, 0
    %p80 = por %p78, %p79
    %p81 = scmp.ne.s32.totalorder %s73, %s75
    %p82 = scmp.eq.s32.totalorder %s23, 1
    %p83 = por %p81, %p82
    %p84 = scmp.ne.s32.totalorder %s75, %s76
    %p85 = scmp.eq.s32.totalorder %s23, 0
    %p86 = por %p84, %p85
    %p87 = scmp.ne.s32.totalorder %s75, %s76
    %p88 = scmp.eq.s32.totalorder %s24, 1
    %p89 = por %p87, %p88
    %p91 = scmp.ne.s32.totalorder %s76, %s90
    %p92 = scmp.eq.s32.totalorder %s24, 0
    %p93 = por %p91, %p92
    %s95 = sadd.s32 %s94, 1
    %p98 = scmp.eq.s32.totalorder %s18, 1
    %p99 = scmp.ne.s32.totalorder %s94, %s96
    %p100 = scmp.eq.s32.totalorder %s18, 0
    %p101 = por %p99, %p100
    %p102 = scmp.ne.s32.totalorder %s94, %s96
    %p103 = scmp.eq.s32.totalorder %s23, 1
    %p104 = por %p102, %p103
    %p105 = scmp.ne.s32.totalorder %s96, %s97
    %p106 = scmp.eq.s32.totalorder %s23, 0
    %p107 = por %p105, %p106
    %p108 = scmp.ne.s32.totalorder %s96, %s97
    %p109 = scmp.eq.s32.totalorder %s24, 1
    %p110 = por %p108, %p109
    %p112 = scmp.ne.s32.totalorder %s97, %s111
    %p113 = scmp.eq.s32.totalorder %s24, 0
    %p114 = por %p112, %p113
    %s116 = sadd.s32 %s115, 1
    %p119 = scmp.eq.s32.totalorder %s18, 1
    %p120 = scmp.ne.s32.totalorder %s115, %s117
    %p121 = scmp.eq.s32.totalorder %s18, 0
    %p122 = por %p120, %p121
    %p123 = scmp.ne.s32.totalorder %s115, %s117
    %p124 = scmp.eq.s32.totalorder %s23, 1
    %p125 = por %p123, %p124
    %p126 = scmp.ne.s32.totalorder %s117, %s118
    %p127 = scmp.eq.s32.totalorder %s23, 0
    %p128 = por %p126, %p127
    %p129 = scmp.ne.s32.totalorder %s117, %s118
    %p130 = scmp.eq.s32.totalorder %s24, 1
    %p131 = por %p129, %p130
    %p133 = scmp.ne.s32.totalorder %s118, %s132
    %p134 = scmp.eq.s32.totalorder %s24, 0
    %p135 = por %p133, %p134
    %s137 = sadd.s32 %s136, 1
    %p140 = scmp.eq.s32.totalorder %s18, 1
    %p141 = scmp.ne.s32.totalorder %s136, %s138
    %p142 = scmp.eq.s32.totalorder %s18, 0
    %p143 = por %p141, %p142
    %p144 = scmp.ne.s32.totalorder %s136, %s138
    %p145 = scmp.eq.s32.totalorder %s23, 1
    %p146 = por %p144, %p145
    %p147 = scmp.ne.s32.totalorder %s138, %s139
    %p148 = scmp.eq.s32.totalorder %s23, 0
    %p149 = por %p147, %p148
    %p150 = scmp.ne.s32.totalorder %s138, %s139
    %p151 = scmp.eq.s32.totalorder %s24, 1
    %p152 = por %p150, %p151
    %p154 = scmp.ne.s32.totalorder %s139, %s153
    %p155 = scmp.eq.s32.totalorder %s24, 0
    %p156 = por %p154, %p155
    %s158 = sadd.s32 %s157, 1
    %p161 = scmp.eq.s32.totalorder %s18, 1
    %p162 = scmp.ne.s32.totalorder %s157, %s159
    %p163 = scmp.eq.s32.totalorder %s18, 0
    %p164 = por %p162, %p163
    %p165 = scmp.ne.s32.totalorder %s157, %s159
    %p166 = scmp.eq.s32.totalorder %s23, 1
    %p167 = por %p165, %p166
    %p168 = scmp.ne.s32.totalorder %s159, %s160
    %p169 = scmp.eq.s32.totalorder %s23, 0
    %p170 = por %p168, %p169
    %p171 = scmp.ne.s32.totalorder %s159, %s160
    %p172 = scmp.eq.s32.totalorder %s24, 1
    %p173 = por %p171, %p172
    %p175 = scmp.ne.s32.totalorder %s160, %s174
    %p176 = scmp.eq.s32.totalorder %s24, 0
    %p177 = por %p175, %p176
    %s179 = sadd.s32 %s178, 1
    %p182 = scmp.eq.s32.totalorder %s18, 1
    %p183 = scmp.ne.s32.totalorder %s178, %s180
    %p184 = scmp.eq.s32.totalorder %s18, 0
    %p185 = por %p183, %p184
    %p186 = scmp.ne.s32.totalorder %s178, %s180
    %p187 = scmp.eq.s32.totalorder %s23, 1
    %p188 = por %p186, %p187
    %p189 = scmp.ne.s32.totalorder %s180, %s181
    %p190 = scmp.eq.s32.totalorder %s23, 0
    %p191 = por %p189, %p190
    %p192 = scmp.ne.s32.totalorder %s180, %s181
    %p193 = scmp.eq.s32.totalorder %s24, 1
    %p194 = por %p192, %p193
    %p196 = scmp.ne.s32.totalorder %s181, %s195
    %p197 = scmp.eq.s32.totalorder %s24, 0
    %p198 = por %p196, %p197
    %s200 = sadd.s32 %s199, 1
    %p203 = scmp.eq.s32.totalorder %s18, 1
    %p204 = scmp.ne.s32.totalorder %s199, %s201
    %p205 = scmp.eq.s32.totalorder %s18, 0
    %p206 = por %p204, %p205
    %p207 = scmp.ne.s32.totalorder %s199, %s201
    %p208 = scmp.eq.s32.totalorder %s23, 1
    %p209 = por %p207, %p208
    %p210 = scmp.ne.s32.totalorder %s201, %s202
    %p211 = scmp.eq.s32.totalorder %s23, 0
    %p212 = por %p210, %p211
    %p213 = scmp.ne.s32.totalorder %s201, %s202
    %p214 = scmp.eq.s32.totalorder %s24, 1
    %p215 = por %p213, %p214
    %p217 = scmp.ne.s32.totalorder %s202, %s216
    %p218 = scmp.eq.s32.totalorder %s24, 0
    %p219 = por %p217, %p218
    %s221 = sadd.s32 %s220, 1
    %p224 = scmp.eq.s32.totalorder %s18, 1
    %p225 = scmp.ne.s32.totalorder %s220, %s222
    %p226 = scmp.eq.s32.totalorder %s18, 0
    %p227 = por %p225, %p226
    %p228 = scmp.ne.s32.totalorder %s220, %s222
    %p229 = scmp.eq.s32.totalorder %s23, 1
    %p230 = por %p228, %p229
    %p231 = scmp.ne.s32.totalorder %s222, %s223
    %p232 = scmp.eq.s32.totalorder %s23, 0
    %p233 = por %p231, %p232
    %p234 = scmp.ne.s32.totalorder %s222, %s223
    %p235 = scmp.eq.s32.totalorder %s24, 1
    %p236 = por %p234, %p235
    %p238 = scmp.ne.s32.totalorder %s223, %s237
    %p239 = scmp.eq.s32.totalorder %s24, 0
    %p240 = por %p238, %p239
    %s242 = sadd.s32 %s241, 1
    %p245 = scmp.eq.s32.totalorder %s18, 1
    %p246 = scmp.ne.s32.totalorder %s241, %s243
    %p247 = scmp.eq.s32.totalorder %s18, 0
    %p248 = por %p246, %p247
    %p249 = scmp.ne.s32.totalorder %s241, %s243
    %p250 = scmp.eq.s32.totalorder %s23, 1
    %p251 = por %p249, %p250
    %p252 = scmp.ne.s32.totalorder %s243, %s244
    %p253 = scmp.eq.s32.totalorder %s23, 0
    %p254 = por %p252, %p253
    %p255 = scmp.ne.s32.totalorder %s243, %s244
    %p256 = scmp.eq.s32.totalorder %s24, 1
    %p257 = por %p255, %p256
    %p259 = scmp.ne.s32.totalorder %s244, %s258
    %p260 = scmp.eq.s32.totalorder %s24, 0
    %p261 = por %p259, %p260
    %s263 = sadd.s32 %s262, 1
    %p266 = scmp.eq.s32.totalorder %s18, 1
    %p267 = scmp.ne.s32.totalorder %s262, %s264
    %p268 = scmp.eq.s32.totalorder %s18, 0
    %p269 = por %p267, %p268
    %p270 = scmp.ne.s32.totalorder %s262, %s264
    %p271 = scmp.eq.s32.totalorder %s23, 1
    %p272 = por %p270, %p271
    %p273 = scmp.ne.s32.totalorder %s264, %s265
    %p274 = scmp.eq.s32.totalorder %s23, 0
    %p275 = por %p273, %p274
    %p276 = scmp.ne.s32.totalorder %s264, %s265
    %p277 = scmp.eq.s32.totalorder %s24, 1
    %p278 = por %p276, %p277
    %p280 = scmp.ne.s32.totalorder %s265, %s279
    %p281 = scmp.eq.s32.totalorder %s24, 0
    %p282 = por %p280, %p281
    %s283 = ssub.s32 %s18, %s25
    %p284 = scmp.eq.s32.totalorder %s283, 0
    %s286 = sadd.s32 %s285, 1
    %s287 = scalar_select %p284, %s285, %s286
    %p290 = pneg %p284
    %p291 = scmp.eq.s32.totalorder %s18, 1
    %p292 = por %p290, %p291
    %p293 = scmp.ne.s32.totalorder %s285, %s288
    %p294 = scmp.eq.s32.totalorder %s18, 0
    %p295 = por %p293, %p294
    %p296 = scmp.ne.s32.totalorder %s285, %s288
    %p297 = scmp.eq.s32.totalorder %s23, 1
    %p298 = por %p296, %p297
    %p299 = scmp.ne.s32.totalorder %s288, %s289
    %p300 = scmp.eq.s32.totalorder %s23, 0
    %p301 = por %p299, %p300
    %p302 = scmp.ne.s32.totalorder %s288, %s289
    %p303 = scmp.eq.s32.totalorder %s24, 1
    %p304 = por %p302, %p303
    %p306 = scmp.ne.s32.totalorder %s289, %s305
    %p307 = scmp.eq.s32.totalorder %s24, 0
    %p308 = por %p306, %p307
    %p309 = scmp.le.s32.totalorder 1, %s18
    %p310 = scmp.lt.s32.totalorder %s18, 3
    %p311 = pnand %p309, %p310
    %p312 = pneg %p311
    // Predicated region
    $region9: #{_lambda_.10} parent=5 // pred_check
      _
    $region10: #{_lambda_.10} parent=5 // pred_check_branch
      %314 = sbr.rel (%p311) target = $region12
    $region11: #{_lambda_.10} parent=5 // pred_region
      %s315 = ssub.s32 %s18, 1
      // Predicated region
      $region13: #{_lambda_.10} parent=11 // pred_check
        %p316 = pneg %p65
      $region14: #{_lambda_.10} parent=11 // pred_check_branch
        %318 = sbr.rel (%p316) target = $region16
      $region15: #{_lambda_.10} parent=11 // pred_region
        _
      $region16: #{_lambda_.10} parent=11 // pred_fallthru
        _
      // Predicated region
      $region17: #{_lambda_.10} parent=11 // pred_check
        %p319 = pneg %p86
      $region18: #{_lambda_.10} parent=11 // pred_check_branch
        %321 = sbr.rel (%p319) target = $region20
      $region19: #{_lambda_.10} parent=11 // pred_region
        _
      $region20: #{_lambda_.10} parent=11 // pred_fallthru
        _
      // Predicated region
      $region21: #{_lambda_.10} parent=11 // pred_check
        %p322 = pneg %p107
      $region22: #{_lambda_.10} parent=11 // pred_check_branch
        %324 = sbr.rel (%p322) target = $region24
      $region23: #{_lambda_.10} parent=11 // pred_region
        _
      $region24: #{_lambda_.10} parent=11 // pred_fallthru
        _
      // Predicated region
      $region25: #{_lambda_.10} parent=11 // pred_check
        %p325 = pneg %p128
      $region26: #{_lambda_.10} parent=11 // pred_check_branch
        %327 = sbr.rel (%p325) target = $region28
      $region27: #{_lambda_.10} parent=11 // pred_region
        _
      $region28: #{_lambda_.10} parent=11 // pred_fallthru
        _
      // Predicated region
      $region29: #{_lambda_.10} parent=11 // pred_check
        %p328 = pneg %p149
      $region30: #{_lambda_.10} parent=11 // pred_check_branch
        %330 = sbr.rel (%p328) target = $region32
      $region31: #{_lambda_.10} parent=11 // pred_region
        _
      $region32: #{_lambda_.10} parent=11 // pred_fallthru
        _
      // Predicated region
      $region33: #{_lambda_.10} parent=11 // pred_check
        %p331 = pneg %p170
      $region34: #{_lambda_.10} parent=11 // pred_check_branch
        %333 = sbr.rel (%p331) target = $region36
      $region35: #{_lambda_.10} parent=11 // pred_region
        _
      $region36: #{_lambda_.10} parent=11 // pred_fallthru
        _
      // Predicated region
      $region37: #{_lambda_.10} parent=11 // pred_check
        %p334 = pneg %p191
      $region38: #{_lambda_.10} parent=11 // pred_check_branch
        %336 = sbr.rel (%p334) target = $region40
      $region39: #{_lambda_.10} parent=11 // pred_region
        _
      $region40: #{_lambda_.10} parent=11 // pred_fallthru
        _
      // Predicated region
      $region41: #{_lambda_.10} parent=11 // pred_check
        %p337 = pneg %p212
      $region42: #{_lambda_.10} parent=11 // pred_check_branch
        %339 = sbr.rel (%p337) target = $region44
      $region43: #{_lambda_.10} parent=11 // pred_region
        _
      $region44: #{_lambda_.10} parent=11 // pred_fallthru
        _
      // Predicated region
      $region45: #{_lambda_.10} parent=11 // pred_check
        %p340 = pneg %p233
      $region46: #{_lambda_.10} parent=11 // pred_check_branch
        %342 = sbr.rel (%p340) target = $region48
      $region47: #{_lambda_.10} parent=11 // pred_region
        _
      $region48: #{_lambda_.10} parent=11 // pred_fallthru
        _
      // Predicated region
      $region49: #{_lambda_.10} parent=11 // pred_check
        %p343 = pneg %p254
      $region50: #{_lambda_.10} parent=11 // pred_check_branch
        %345 = sbr.rel (%p343) target = $region52
      $region51: #{_lambda_.10} parent=11 // pred_region
        _
      $region52: #{_lambda_.10} parent=11 // pred_fallthru
        _
      // Predicated region
      $region53: #{_lambda_.10} parent=11 // pred_check
        %p346 = pneg %p275
      $region54: #{_lambda_.10} parent=11 // pred_check_branch
        %348 = sbr.rel (%p346) target = $region56
      $region55: #{_lambda_.10} parent=11 // pred_region
        _
      $region56: #{_lambda_.10} parent=11 // pred_fallthru
        _
    $region12: #{_lambda_.10} parent=5 // pred_fallthru
      _
    %p349 = scmp.lt.s32.totalorder %s18, 2
    // Predicated region
    $region57: #{_lambda_.10} parent=5 // pred_check
      %p350 = pneg %p349
    $region58: #{_lambda_.10} parent=5 // pred_check_branch
      %352 = sbr.rel (%p350) target = $region60
    $region59: #{_lambda_.10} parent=5 // pred_region
      // Predicated region
      $region61: #{_lambda_.10} parent=59 // pred_check
        %p353 = pneg %p38
      $region62: #{_lambda_.10} parent=59 // pred_check_branch
        %355 = sbr.rel (%p353) target = $region64
      $region63: #{_lambda_.10} parent=59 // pred_region
        %p356 = scmp.lt.s32.totalorder %s18, 1
        %s357 = scalar_select %p356, %s18, 1
        %s358 = smul.addr %s357, 2
        %s359 = smul.addr %s358, 8
        %s360 = scalar_lea.vmem %s0, %s359
      $region64: #{_lambda_.10} parent=59 // pred_fallthru
        _
    $region60: #{_lambda_.10} parent=5 // pred_fallthru
      _
    %p361 = scmp.le.s32.totalorder 1, %s18
    %p362 = scmp.lt.s32.totalorder %s18, 3
    %p363 = pnand %p361, %p362
    %p364 = pneg %p363
    // Predicated region
    $region65: #{_lambda_.10} parent=5 // pred_check
      _
    $region66: #{_lambda_.10} parent=5 // pred_check_branch
      %366 = sbr.rel (%p363) target = $region68
    $region67: #{_lambda_.10} parent=5 // pred_region
      %s367 = ssub.s32 %s18, 1
      %p368 = scmp.lt.s32.totalorder %s23, 1
      %s369 = scalar_select %p368, %s23, 1
      %s370 = smul.addr %s369, 2
      %s371 = smul.addr %s370, 8
      %s372 = scalar_lea.vmem %s0, %s371
      %p373 = pneg %p44
      %p374 = pneg %p41
      %p375 = pneg %p65
      %p376 = pneg %p62
      %p377 = pneg %p86
      %p378 = pneg %p83
      %p379 = pneg %p107
      %p380 = pneg %p104
      %p381 = pneg %p128
      %p382 = pneg %p125
      %p383 = pneg %p149
      %p384 = pneg %p146
      %p385 = pneg %p170
      %p386 = pneg %p167
      %p387 = pneg %p191
      %p388 = pneg %p188
      %p389 = pneg %p212
      %p390 = pneg %p209
      %p391 = pneg %p233
      %p392 = pneg %p230
      %p393 = pneg %p254
      %p394 = pneg %p251
      %p395 = pneg %p275
      %p396 = pneg %p272
      %p397 = pneg %p301
      %p398 = pneg %p298
      %p399 = scmp.lt.s32.totalorder %s23, 1
      %s400 = scalar_select %p399, %s23, 1
      %s401 = smul.addr %s400, 2
      %s402 = smul.addr %s401, 8
      %s403 = scalar_lea.vmem %s12, %s402
      %p404 = scmp.lt.s32.totalorder %s23, 1
      %s405 = scalar_select %p404, %s23, 1
      %s406 = smul.addr %s405, 2
      %s407 = smul.addr %s406, 8
      %s408 = scalar_lea.vmem %s0, %s407
      %p409 = scmp.lt.s32.totalorder %s23, 1
      %s410 = scalar_select %p409, %s23, 1
      %s411 = smul.addr %s410, 2
      %s412 = smul.addr %s411, 8
      %s413 = scalar_lea.vmem %s12, %s412
      %v414 = vld [vmem:[%s408] sm:$0xff]
      %v415 = vld [vmem:[%s408 + $0x8] sm:$0xf]
      %v416 = vld [vmem:[%s10] sm:$0xff]
      %v417 = vld [vmem:[%s10 + $0x8] sm:$0xff]
      %v418 = vld [vmem:[%s11] sm:$0xff]
      %v419 = vld [vmem:[%s11 + $0x8] sm:$0xff]
      %421 = vset.pattern.permute.xlu0 0
      %422 = vperm.xlu0 %421, %v418
      %v423 = vpop.permute.xlu0 %422
      %426 = vset.pattern.permute.xlu0 0
      %427 = vperm.xlu0 %426, %v419
      %v428 = vpop.permute.xlu0 %427
      %vm430 = vcmask 97280
      %v432 = vsel %vm430, %v416, 0
      %v435 = vsel %vm430, %v417, 0
      %vm437 = vcmask 1043456
      %v439 = vsel %vm437, %v415, 0
      %441 = vmatpush.msra.mxu0 0.0
      %442 = vmatpush.msra.mxu0 0.0
      %443 = vmatpush.msra.mxu0 0.0
      %444 = vmatpush.msra.mxu0 0.0
      %445 = vmatpush.msra.mxu0 0.0
      %446 = vmatpush.msra.mxu0 0.0
      %447 = vmatpush.msra.mxu0 0.0
      %448 = vmatpush.msra.mxu0 0.0
      %449 = vmatpush.msra.mxu0 0.0
      %450 = vmatpush.msra.mxu0 0.0
      %451 = vmatpush.msra.mxu0 0.0
      %452 = vmatpush.msra.mxu0 0.0
      %453 = vmatpush.msra.mxu0 0.0
      %454 = vmatpush.msra.mxu0 0.0
      %455 = vmatpush.msra.mxu0 %v439
      %456 = vmatpush.msra.mxu0 %v414
      %457 = vmatmul.f32.gmra.mxu0 %v432
      %v458 = vpop.f32.mrf.mxu0
      %v459 = vadd.f32 %v423, %v458
      %460 = vmatmul.f32.gmra.mxu0 %v435
      %v461 = vpop.f32.mrf.mxu0
      %v462 = vadd.f32 %v428, %v461
      %463 = vdwg.mxu0
      %v464 = vld [vmem:[%s2] sm:$0xff]
      %v465 = vld [vmem:[%s2 + $0x8] sm:$0xf]
      %467 = vset.pattern.permute.xlu0 0
      %468 = vperm.xlu0 %467, %v464
      %v469 = vpop.permute.xlu0 %468
      %472 = vset.pattern.permute.xlu0 0
      %473 = vperm.xlu0 %472, %v465
      %v474 = vpop.permute.xlu0 %473
      %v476 = vmul.f32 %v414, %v469
      %v477 = vmul.f32 %v415, %v474
      %v478 = vld [vmem:[%s3] sm:$0xff]
      %v479 = vld [vmem:[%s3 + $0x8] sm:$0xf]
      %481 = vset.pattern.permute.xlu0 0
      %482 = vperm.xlu0 %481, %v478
      %v483 = vpop.permute.xlu0 %482
      %486 = vset.pattern.permute.xlu0 0
      %487 = vperm.xlu0 %486, %v479
      %v488 = vpop.permute.xlu0 %487
      %v490 = vadd.f32 %v476, %v483
      %v491 = vadd.f32 %v477, %v488
      %v492 = vmax.f32 %v490, 0.0
      %v493 = vmax.f32 %v491, 0.0
      %v494 = vld [vmem:[%s4] sm:$0xff]
      %v495 = vld [vmem:[%s5] sm:$0xff]
      %497 = vset.pattern.permute.xlu0 0
      %498 = vperm.xlu0 %497, %v495
      %v499 = vpop.permute.xlu0 %498
      %v502 = vsel %vm430, %v494, 0
      %v505 = vsel %vm437, %v493, 0
      %507 = vmatpush.msra.mxu0 0.0
      %508 = vmatpush.msra.mxu0 0.0
      %509 = vmatpush.msra.mxu0 0.0
      %510 = vmatpush.msra.mxu0 0.0
      %511 = vmatpush.msra.mxu0 0.0
      %512 = vmatpush.msra.mxu0 0.0
      %513 = vmatpush.msra.mxu0 0.0
      %514 = vmatpush.msra.mxu0 0.0
      %515 = vmatpush.msra.mxu0 0.0
      %516 = vmatpush.msra.mxu0 0.0
      %517 = vmatpush.msra.mxu0 0.0
      %518 = vmatpush.msra.mxu0 0.0
      %519 = vmatpush.msra.mxu0 0.0
      %520 = vmatpush.msra.mxu0 0.0
      %521 = vmatpush.msra.mxu0 %v505
      %522 = vmatpush.msra.mxu0 %v492
      %523 = vmatmul.f32.gmra.mxu0 %v502
      %v524 = vpop.f32.mrf.mxu0
      %v525 = vadd.f32 %v499, %v524
      %526 = vdwg.mxu0
      %v527 = vmax.f32 %v525, 0.0
      %529 = vrot.lane.b32.xlu0 %v527, 5
      %v530 = vpop.permute.xlu0 %529
      %vm532 = vcmask 39936
      %v533 = vsel %vm532, 0.0, %v530
      %vm534 = vcmask 171008
      %v535 = vsel %vm534, %v533, 0.0
      %v536 = vld [vmem:[%s1] sm:$0x3]
      %v537 = vperm.slane %v536, 0
      %v538 = vmul.f32 %v535, %v537
      %v539 = vperm.slane %v536, 1
      %541 = vrot.lane.b32.xlu0 %v539, 2
      %v542 = vpop.permute.xlu0 %541
      %v544 = vmul.f32 %v535, %v542
      %546 = vrot.lane.b32.xlu0 %v537, 4
      %v547 = vpop.permute.xlu0 %546
      %v549 = vmul.f32 %v535, %v547
      %550 = vrot.lane.b32.xlu0 %v539, 6
      %v551 = vpop.permute.xlu0 %550
      %v553 = vmul.f32 %v535, %v551
      %554 = vrot.lane.b32.xlu0 %v537, 8
      %v555 = vpop.permute.xlu0 %554
      %v557 = vmul.f32 %v535, %v555
      %558 = vrot.lane.b32.xlu0 %v539, 10
      %v559 = vpop.permute.xlu0 %558
      %v561 = vmul.f32 %v535, %v559
      %563 = vrot.lane.b32.xlu0 %v535, 127
      %v564 = vpop.permute.xlu0 %563
      %567 = vrot.lane.b32.xlu0 %v544, 126
      %v568 = vpop.permute.xlu0 %567
      %571 = vrot.lane.b32.xlu0 %v549, 124
      %v572 = vpop.permute.xlu0 %571
      %575 = vrot.lane.b32.xlu0 %v553, 122
      %v576 = vpop.permute.xlu0 %575
      %579 = vrot.lane.b32.xlu0 %v557, 120
      %v580 = vpop.permute.xlu0 %579
      %582 = vrot.lane.b32.xlu0 %v535, 119
      %v583 = vpop.permute.xlu0 %582
      %586 = vrot.lane.b32.xlu0 %v561, 118
      %v587 = vpop.permute.xlu0 %586
      %v589 = vld [vmem:[%s6] sm:$0xff]
      %v590 = vld [vmem:[%s7] sm:$0xff]
      %592 = vset.pattern.permute.xlu0 0
      %593 = vperm.xlu0 %592, %v590
      %v594 = vpop.permute.xlu0 %593
      %vm596 = vcmask 588800
      %v598 = vsel %vm596, %v589, 0
      %600 = vmatpush.msra.mxu0 0.0
      %601 = vmatpush.msra.mxu0 0.0
      %602 = vmatpush.msra.mxu0 0.0
      %603 = vmatpush.msra.mxu0 0.0
      %604 = vmatpush.msra.mxu0 0.0
      %605 = vmatpush.msra.mxu0 0.0
      %606 = vmatpush.msra.mxu0 0.0
      %607 = vmatpush.msra.mxu0 %v587
      %608 = vmatpush.msra.mxu0 %v583
      %609 = vmatpush.msra.mxu0 %v580
      %610 = vmatpush.msra.mxu0 %v576
      %611 = vmatpush.msra.mxu0 %v527
      %612 = vmatpush.msra.mxu0 %v572
      %613 = vmatpush.msra.mxu0 %v568
      %614 = vmatpush.msra.mxu0 %v564
      %615 = vmatpush.msra.mxu0 %v538
      %616 = vmatmul.f32.gmra.mxu0 %v598
      %v617 = vpop.f32.mrf.mxu0
      %v618 = vadd.f32 %v594, %v617
      %619 = vdwg.mxu0
      %v620 = vmax.f32 %v618, 0.0
      %v621 = vld [vmem:[%s8] sm:$0xff]
      %v622 = vld [vmem:[%s8 + $0x8] sm:$0xff]
      %v623 = vld [vmem:[%s9] sm:$0xff]
      %v624 = vld [vmem:[%s9 + $0x8] sm:$0xff]
      %626 = vset.pattern.permute.xlu0 0
      %627 = vperm.xlu0 %626, %v623
      %v628 = vpop.permute.xlu0 %627
      %631 = vset.pattern.permute.xlu0 0
      %632 = vperm.xlu0 %631, %v624
      %v633 = vpop.permute.xlu0 %632
      %vm635 = vcmask 64512
      %v637 = vsel %vm635, %v621, 0
      %v640 = vsel %vm635, %v622, 0
      %642 = vmatpush.msra.mxu0 0.0
      %643 = vmatpush.msra.mxu0 0.0
      %644 = vmatpush.msra.mxu0 0.0
      %645 = vmatpush.msra.mxu0 0.0
      %646 = vmatpush.msra.mxu0 0.0
      %647 = vmatpush.msra.mxu0 0.0
      %648 = vmatpush.msra.mxu0 0.0
      %649 = vmatpush.msra.mxu0 0.0
      %650 = vmatpush.msra.mxu0 0.0
      %651 = vmatpush.msra.mxu0 0.0
      %652 = vmatpush.msra.mxu0 0.0
      %653 = vmatpush.msra.mxu0 0.0
      %654 = vmatpush.msra.mxu0 0.0
      %655 = vmatpush.msra.mxu0 0.0
      %656 = vmatpush.msra.mxu0 0.0
      %657 = vmatpush.msra.mxu0 %v620
      %658 = vmatmul.f32.gmra.mxu0 %v637
      %v659 = vpop.f32.mrf.mxu0
      %v660 = vadd.f32 %v628, %v659
      %661 = vmatmul.f32.gmra.mxu0 %v640
      %v662 = vpop.f32.mrf.mxu0
      %v663 = vadd.f32 %v633, %v662
      %664 = vdwg.mxu0
      %v665 = vadd.f32 %v660, %v459
      %v666 = vadd.f32 %v663, %v462
      %vm667 = vcmask 130048
      %668 = vst.msk [vmem:[%s413] sm:$0xff] %vm667, %v665
      %669 = vst.msk [vmem:[%s413 + $0x8] sm:$0xff] %vm667, %v666
      %p670 = scmp.lt.s32.totalorder %s23, 1
      %s671 = scalar_select %p670, %s23, 1
      %s672 = smul.addr %s671, 2
      %s673 = smul.addr %s672, 8
      %s674 = scalar_lea.vmem %s12, %s673
      // Predicated region
      $region69: #{_lambda_.10} parent=67 // pred_check
        %p675 = pneg %p298
      $region70: #{_lambda_.10} parent=67 // pred_check_branch
        %677 = sbr.rel (%p675) target = $region72
      $region71: #{_lambda_.10} parent=67 // pred_region
        _
      $region72: #{_lambda_.10} parent=67 // pred_fallthru
        _
    $region68: #{_lambda_.10} parent=5 // pred_fallthru
      _
    %p678 = scmp.le.s32.totalorder 2, %s18
    // Predicated region
    $region73: #{_lambda_.10} parent=5 // pred_check
      %p679 = pneg %p678
    $region74: #{_lambda_.10} parent=5 // pred_check_branch
      %681 = sbr.rel (%p679) target = $region76
    $region75: #{_lambda_.10} parent=5 // pred_region
      %s682 = ssub.s32 %s18, 2
      // Predicated region
      $region77: #{_lambda_.10} parent=75 // pred_check
        %p683 = pneg %p304
      $region78: #{_lambda_.10} parent=75 // pred_check_branch
        %685 = sbr.rel (%p683) target = $region80
      $region79: #{_lambda_.10} parent=75 // pred_region
        %p686 = scmp.lt.s32.totalorder %s24, 1
        %s687 = scalar_select %p686, %s24, 1
        %s688 = smul.addr %s687, 2
        %s689 = smul.addr %s688, 8
        %s690 = scalar_lea.vmem %s12, %s689
      $region80: #{_lambda_.10} parent=75 // pred_fallthru
        _
    $region76: #{_lambda_.10} parent=5 // pred_fallthru
      _
  $region6: #{_lambda_.10} parent=0 // loop_footer
    %s22 = sadd.s32 1, %s18
  $region7: #{_lambda_.10} parent=0 // loop_footer_branch
    %17 = sbr.rel target = $region3
  $region8: #{_lambda_.10} parent=0 // loop_exit
    _

// kernel: _lambda_.11
$region0: #{_lambda_.11}
  #allocation0 [shape = 'u32[]', space=smem, size = 0x4, offset = 0x4, fixed_abs, tag = 'smem constant byte address 0x4 - core index']
  #allocation1 [shape = 'u32[72,128]{1,0:T(1,128)}', space=vmem, size = 0x9000, scoped, tag = 'internal scratch']
  %s0 = inlined_call_operand.vmem [shape: f32[2,16,16], index: 0, kind: input, shape index: {}]
  %s1 = inlined_call_operand.vmem [shape: f32[2,16], index: 1, kind: input, shape index: {}]
  %s2 = inlined_call_operand.vmem [shape: f32[16,1], index: 2, kind: input, shape index: {}]
  %s3 = inlined_call_operand.vmem [shape: f32[16,1], index: 3, kind: input, shape index: {}]
  %s4 = inlined_call_operand.vmem [shape: f32[8,16], index: 4, kind: input, shape index: {}]
  %s5 = inlined_call_operand.vmem [shape: f32[8,1], index: 5, kind: input, shape index: {}]
  %s6 = inlined_call_operand.vmem [shape: f32[8,72], index: 6, kind: input, shape index: {}]
  %s7 = inlined_call_operand.vmem [shape: f32[8,1], index: 7, kind: input, shape index: {}]
  %s8 = inlined_call_operand.vmem [shape: f32[16,8], index: 8, kind: input, shape index: {}]
  %s9 = inlined_call_operand.vmem [shape: f32[16,1], index: 9, kind: input, shape index: {}]
  %s10 = inlined_call_operand.vmem [shape: f32[2,16,16], index: 10, kind: output, shape index: {}]
  %s11 = sld [smem:[#allocation0]]
  $region73: #{_lambda_.11} parent=0
    _
  %s13 = ssub.s32 1, %s11
  %s14 = scalar_select 0, %s13, %s11
  loop: start=0, step=1, limit=4
  $region2: #{_lambda_.11} parent=0 // loop_pre_header
    _
  $region3: #{_lambda_.11} parent=0 // loop_header
    %s16 = sphi 0, %s20
    %p17 = scmp.ge.s32.totalorder %s16, 4
    %s26 = sphi 0, %s28
    %s29 = sphi 0, %s26
    %s30 = sphi 0, %s29
    %s46 = sphi 0, %s30
    %s50 = sphi 0, %s50
    %s52 = sphi 0, %s50
    %s53 = sphi 0, %s52
    %s67 = sphi 0, %s53
    %s71 = sphi 0, %s71
    %s73 = sphi 0, %s71
    %s74 = sphi 0, %s73
    %s88 = sphi 0, %s74
    %s92 = sphi 0, %s92
    %s94 = sphi 0, %s92
    %s95 = sphi 0, %s94
    %s109 = sphi 0, %s95
    %s113 = sphi 0, %s113
    %s115 = sphi 0, %s113
    %s116 = sphi 0, %s115
    %s130 = sphi 0, %s116
    %s134 = sphi 0, %s134
    %s136 = sphi 0, %s134
    %s137 = sphi 0, %s136
    %s151 = sphi 0, %s137
    %s155 = sphi 0, %s155
    %s157 = sphi 0, %s155
    %s158 = sphi 0, %s157
    %s172 = sphi 0, %s158
    %s176 = sphi 0, %s176
    %s178 = sphi 0, %s176
    %s179 = sphi 0, %s178
    %s193 = sphi 0, %s179
    %s197 = sphi 0, %s197
    %s199 = sphi 0, %s197
    %s200 = sphi 0, %s199
    %s214 = sphi 0, %s200
    %s218 = sphi 0, %s218
    %s220 = sphi 0, %s218
    %s221 = sphi 0, %s220
    %s235 = sphi 0, %s221
    %s241 = sphi 0, %s243
    %s244 = sphi 0, %s241
    %s245 = sphi 0, %s244
    %s261 = sphi 0, %s245
  $region4: #{_lambda_.11} parent=0 // loop_header_branch
    %19 = sbr.rel (%p17) target = $region8
  $region5: #{_lambda_.11} parent=0 // loop_body
    %s21 = ssub.s32 %s16, 1
    %s22 = ssub.s32 %s16, 2
    %s23 = sadd.s32 %s16, 1
    %s24 = ssub.s32 %s16, %s23
    %p25 = scmp.eq.s32.totalorder %s24, 0
    %s27 = sadd.s32 %s26, 1
    %s28 = scalar_select %p25, %s26, %s27
    %p31 = pneg %p25
    %p32 = scmp.eq.s32.totalorder %s16, 1
    %p33 = por %p31, %p32
    %p34 = scmp.ne.s32.totalorder %s26, %s29
    %p35 = scmp.eq.s32.totalorder %s16, 0
    %p36 = por %p34, %p35
    %p37 = scmp.ne.s32.totalorder %s26, %s29
    %p38 = scmp.eq.s32.totalorder %s21, 1
    %p39 = por %p37, %p38
    %p40 = scmp.ne.s32.totalorder %s29, %s30
    %p41 = scmp.eq.s32.totalorder %s21, 0
    %p42 = por %p40, %p41
    %p43 = scmp.ne.s32.totalorder %s29, %s30
    %p44 = scmp.eq.s32.totalorder %s22, 1
    %p45 = por %p43, %p44
    %p47 = scmp.ne.s32.totalorder %s30, %s46
    %p48 = scmp.eq.s32.totalorder %s22, 0
    %p49 = por %p47, %p48
    %s51 = sadd.s32 %s50, 1
    %p54 = scmp.eq.s32.totalorder %s16, 1
    %p55 = scmp.ne.s32.totalorder %s50, %s52
    %p56 = scmp.eq.s32.totalorder %s16, 0
    %p57 = por %p55, %p56
    %p58 = scmp.ne.s32.totalorder %s50, %s52
    %p59 = scmp.eq.s32.totalorder %s21, 1
    %p60 = por %p58, %p59
    %p61 = scmp.ne.s32.totalorder %s52, %s53
    %p62 = scmp.eq.s32.totalorder %s21, 0
    %p63 = por %p61, %p62
    %p64 = scmp.ne.s32.totalorder %s52, %s53
    %p65 = scmp.eq.s32.totalorder %s22, 1
    %p66 = por %p64, %p65
    %p68 = scmp.ne.s32.totalorder %s53, %s67
    %p69 = scmp.eq.s32.totalorder %s22, 0
    %p70 = por %p68, %p69
    %s72 = sadd.s32 %s71, 1
    %p75 = scmp.eq.s32.totalorder %s16, 1
    %p76 = scmp.ne.s32.totalorder %s71, %s73
    %p77 = scmp.eq.s32.totalorder %s16, 0
    %p78 = por %p76, %p77
    %p79 = scmp.ne.s32.totalorder %s71, %s73
    %p80 = scmp.eq.s32.totalorder %s21, 1
    %p81 = por %p79, %p80
    %p82 = scmp.ne.s32.totalorder %s73, %s74
    %p83 = scmp.eq.s32.totalorder %s21, 0
    %p84 = por %p82, %p83
    %p85 = scmp.ne.s32.totalorder %s73, %s74
    %p86 = scmp.eq.s32.totalorder %s22, 1
    %p87 = por %p85, %p86
    %p89 = scmp.ne.s32.totalorder %s74, %s88
    %p90 = scmp.eq.s32.totalorder %s22, 0
    %p91 = por %p89, %p90
    %s93 = sadd.s32 %s92, 1
    %p96 = scmp.eq.s32.totalorder %s16, 1
    %p97 = scmp.ne.s32.totalorder %s92, %s94
    %p98 = scmp.eq.s32.totalorder %s16, 0
    %p99 = por %p97, %p98
    %p100 = scmp.ne.s32.totalorder %s92, %s94
    %p101 = scmp.eq.s32.totalorder %s21, 1
    %p102 = por %p100, %p101
    %p103 = scmp.ne.s32.totalorder %s94, %s95
    %p104 = scmp.eq.s32.totalorder %s21, 0
    %p105 = por %p103, %p104
    %p106 = scmp.ne.s32.totalorder %s94, %s95
    %p107 = scmp.eq.s32.totalorder %s22, 1
    %p108 = por %p106, %p107
    %p110 = scmp.ne.s32.totalorder %s95, %s109
    %p111 = scmp.eq.s32.totalorder %s22, 0
    %p112 = por %p110, %p111
    %s114 = sadd.s32 %s113, 1
    %p117 = scmp.eq.s32.totalorder %s16, 1
    %p118 = scmp.ne.s32.totalorder %s113, %s115
    %p119 = scmp.eq.s32.totalorder %s16, 0
    %p120 = por %p118, %p119
    %p121 = scmp.ne.s32.totalorder %s113, %s115
    %p122 = scmp.eq.s32.totalorder %s21, 1
    %p123 = por %p121, %p122
    %p124 = scmp.ne.s32.totalorder %s115, %s116
    %p125 = scmp.eq.s32.totalorder %s21, 0
    %p126 = por %p124, %p125
    %p127 = scmp.ne.s32.totalorder %s115, %s116
    %p128 = scmp.eq.s32.totalorder %s22, 1
    %p129 = por %p127, %p128
    %p131 = scmp.ne.s32.totalorder %s116, %s130
    %p132 = scmp.eq.s32.totalorder %s22, 0
    %p133 = por %p131, %p132
    %s135 = sadd.s32 %s134, 1
    %p138 = scmp.eq.s32.totalorder %s16, 1
    %p139 = scmp.ne.s32.totalorder %s134, %s136
    %p140 = scmp.eq.s32.totalorder %s16, 0
    %p141 = por %p139, %p140
    %p142 = scmp.ne.s32.totalorder %s134, %s136
    %p143 = scmp.eq.s32.totalorder %s21, 1
    %p144 = por %p142, %p143
    %p145 = scmp.ne.s32.totalorder %s136, %s137
    %p146 = scmp.eq.s32.totalorder %s21, 0
    %p147 = por %p145, %p146
    %p148 = scmp.ne.s32.totalorder %s136, %s137
    %p149 = scmp.eq.s32.totalorder %s22, 1
    %p150 = por %p148, %p149
    %p152 = scmp.ne.s32.totalorder %s137, %s151
    %p153 = scmp.eq.s32.totalorder %s22, 0
    %p154 = por %p152, %p153
    %s156 = sadd.s32 %s155, 1
    %p159 = scmp.eq.s32.totalorder %s16, 1
    %p160 = scmp.ne.s32.totalorder %s155, %s157
    %p161 = scmp.eq.s32.totalorder %s16, 0
    %p162 = por %p160, %p161
    %p163 = scmp.ne.s32.totalorder %s155, %s157
    %p164 = scmp.eq.s32.totalorder %s21, 1
    %p165 = por %p163, %p164
    %p166 = scmp.ne.s32.totalorder %s157, %s158
    %p167 = scmp.eq.s32.totalorder %s21, 0
    %p168 = por %p166, %p167
    %p169 = scmp.ne.s32.totalorder %s157, %s158
    %p170 = scmp.eq.s32.totalorder %s22, 1
    %p171 = por %p169, %p170
    %p173 = scmp.ne.s32.totalorder %s158, %s172
    %p174 = scmp.eq.s32.totalorder %s22, 0
    %p175 = por %p173, %p174
    %s177 = sadd.s32 %s176, 1
    %p180 = scmp.eq.s32.totalorder %s16, 1
    %p181 = scmp.ne.s32.totalorder %s176, %s178
    %p182 = scmp.eq.s32.totalorder %s16, 0
    %p183 = por %p181, %p182
    %p184 = scmp.ne.s32.totalorder %s176, %s178
    %p185 = scmp.eq.s32.totalorder %s21, 1
    %p186 = por %p184, %p185
    %p187 = scmp.ne.s32.totalorder %s178, %s179
    %p188 = scmp.eq.s32.totalorder %s21, 0
    %p189 = por %p187, %p188
    %p190 = scmp.ne.s32.totalorder %s178, %s179
    %p191 = scmp.eq.s32.totalorder %s22, 1
    %p192 = por %p190, %p191
    %p194 = scmp.ne.s32.totalorder %s179, %s193
    %p195 = scmp.eq.s32.totalorder %s22, 0
    %p196 = por %p194, %p195
    %s198 = sadd.s32 %s197, 1
    %p201 = scmp.eq.s32.totalorder %s16, 1
    %p202 = scmp.ne.s32.totalorder %s197, %s199
    %p203 = scmp.eq.s32.totalorder %s16, 0
    %p204 = por %p202, %p203
    %p205 = scmp.ne.s32.totalorder %s197, %s199
    %p206 = scmp.eq.s32.totalorder %s21, 1
    %p207 = por %p205, %p206
    %p208 = scmp.ne.s32.totalorder %s199, %s200
    %p209 = scmp.eq.s32.totalorder %s21, 0
    %p210 = por %p208, %p209
    %p211 = scmp.ne.s32.totalorder %s199, %s200
    %p212 = scmp.eq.s32.totalorder %s22, 1
    %p213 = por %p211, %p212
    %p215 = scmp.ne.s32.totalorder %s200, %s214
    %p216 = scmp.eq.s32.totalorder %s22, 0
    %p217 = por %p215, %p216
    %s219 = sadd.s32 %s218, 1
    %p222 = scmp.eq.s32.totalorder %s16, 1
    %p223 = scmp.ne.s32.totalorder %s218, %s220
    %p224 = scmp.eq.s32.totalorder %s16, 0
    %p225 = por %p223, %p224
    %p226 = scmp.ne.s32.totalorder %s218, %s220
    %p227 = scmp.eq.s32.totalorder %s21, 1
    %p228 = por %p226, %p227
    %p229 = scmp.ne.s32.totalorder %s220, %s221
    %p230 = scmp.eq.s32.totalorder %s21, 0
    %p231 = por %p229, %p230
    %p232 = scmp.ne.s32.totalorder %s220, %s221
    %p233 = scmp.eq.s32.totalorder %s22, 1
    %p234 = por %p232, %p233
    %p236 = scmp.ne.s32.totalorder %s221, %s235
    %p237 = scmp.eq.s32.totalorder %s22, 0
    %p238 = por %p236, %p237
    %s239 = ssub.s32 %s16, %s23
    %p240 = scmp.eq.s32.totalorder %s239, 0
    %s242 = sadd.s32 %s241, 1
    %s243 = scalar_select %p240, %s241, %s242
    %p246 = pneg %p240
    %p247 = scmp.eq.s32.totalorder %s16, 1
    %p248 = por %p246, %p247
    %p249 = scmp.ne.s32.totalorder %s241, %s244
    %p250 = scmp.eq.s32.totalorder %s16, 0
    %p251 = por %p249, %p250
    %p252 = scmp.ne.s32.totalorder %s241, %s244
    %p253 = scmp.eq.s32.totalorder %s21, 1
    %p254 = por %p252, %p253
    %p255 = scmp.ne.s32.totalorder %s244, %s245
    %p256 = scmp.eq.s32.totalorder %s21, 0
    %p257 = por %p255, %p256
    %p258 = scmp.ne.s32.totalorder %s244, %s245
    %p259 = scmp.eq.s32.totalorder %s22, 1
    %p260 = por %p258, %p259
    %p262 = scmp.ne.s32.totalorder %s245, %s261
    %p263 = scmp.eq.s32.totalorder %s22, 0
    %p264 = por %p262, %p263
    %p265 = scmp.le.s32.totalorder 1, %s16
    %p266 = scmp.lt.s32.totalorder %s16, 3
    %p267 = pnand %p265, %p266
    %p268 = pneg %p267
    // Predicated region
    $region9: #{_lambda_.11} parent=5 // pred_check
      _
    $region10: #{_lambda_.11} parent=5 // pred_check_branch
      %270 = sbr.rel (%p267) target = $region12
    $region11: #{_lambda_.11} parent=5 // pred_region
      %s271 = ssub.s32 %s16, 1
      // Predicated region
      $region13: #{_lambda_.11} parent=11 // pred_check
        %p272 = pneg %p63
      $region14: #{_lambda_.11} parent=11 // pred_check_branch
        %274 = sbr.rel (%p272) target = $region16
      $region15: #{_lambda_.11} parent=11 // pred_region
        _
      $region16: #{_lambda_.11} parent=11 // pred_fallthru
        _
      // Predicated region
      $region17: #{_lambda_.11} parent=11 // pred_check
        %p275 = pneg %p84
      $region18: #{_lambda_.11} parent=11 // pred_check_branch
        %277 = sbr.rel (%p275) target = $region20
      $region19: #{_lambda_.11} parent=11 // pred_region
        _
      $region20: #{_lambda_.11} parent=11 // pred_fallthru
        _
      // Predicated region
      $region21: #{_lambda_.11} parent=11 // pred_check
        %p278 = pneg %p105
      $region22: #{_lambda_.11} parent=11 // pred_check_branch
        %280 = sbr.rel (%p278) target = $region24
      $region23: #{_lambda_.11} parent=11 // pred_region
        _
      $region24: #{_lambda_.11} parent=11 // pred_fallthru
        _
      // Predicated region
      $region25: #{_lambda_.11} parent=11 // pred_check
        %p281 = pneg %p126
      $region26: #{_lambda_.11} parent=11 // pred_check_branch
        %283 = sbr.rel (%p281) target = $region28
      $region27: #{_lambda_.11} parent=11 // pred_region
        _
      $region28: #{_lambda_.11} parent=11 // pred_fallthru
        _
      // Predicated region
      $region29: #{_lambda_.11} parent=11 // pred_check
        %p284 = pneg %p147
      $region30: #{_lambda_.11} parent=11 // pred_check_branch
        %286 = sbr.rel (%p284) target = $region32
      $region31: #{_lambda_.11} parent=11 // pred_region
        _
      $region32: #{_lambda_.11} parent=11 // pred_fallthru
        _
      // Predicated region
      $region33: #{_lambda_.11} parent=11 // pred_check
        %p287 = pneg %p168
      $region34: #{_lambda_.11} parent=11 // pred_check_branch
        %289 = sbr.rel (%p287) target = $region36
      $region35: #{_lambda_.11} parent=11 // pred_region
        _
      $region36: #{_lambda_.11} parent=11 // pred_fallthru
        _
      // Predicated region
      $region37: #{_lambda_.11} parent=11 // pred_check
        %p290 = pneg %p189
      $region38: #{_lambda_.11} parent=11 // pred_check_branch
        %292 = sbr.rel (%p290) target = $region40
      $region39: #{_lambda_.11} parent=11 // pred_region
        _
      $region40: #{_lambda_.11} parent=11 // pred_fallthru
        _
      // Predicated region
      $region41: #{_lambda_.11} parent=11 // pred_check
        %p293 = pneg %p210
      $region42: #{_lambda_.11} parent=11 // pred_check_branch
        %295 = sbr.rel (%p293) target = $region44
      $region43: #{_lambda_.11} parent=11 // pred_region
        _
      $region44: #{_lambda_.11} parent=11 // pred_fallthru
        _
      // Predicated region
      $region45: #{_lambda_.11} parent=11 // pred_check
        %p296 = pneg %p231
      $region46: #{_lambda_.11} parent=11 // pred_check_branch
        %298 = sbr.rel (%p296) target = $region48
      $region47: #{_lambda_.11} parent=11 // pred_region
        _
      $region48: #{_lambda_.11} parent=11 // pred_fallthru
        _
    $region12: #{_lambda_.11} parent=5 // pred_fallthru
      _
    %p299 = scmp.lt.s32.totalorder %s16, 2
    // Predicated region
    $region49: #{_lambda_.11} parent=5 // pred_check
      %p300 = pneg %p299
    $region50: #{_lambda_.11} parent=5 // pred_check_branch
      %302 = sbr.rel (%p300) target = $region52
    $region51: #{_lambda_.11} parent=5 // pred_region
      // Predicated region
      $region53: #{_lambda_.11} parent=51 // pred_check
        %p303 = pneg %p36
      $region54: #{_lambda_.11} parent=51 // pred_check_branch
        %305 = sbr.rel (%p303) target = $region56
      $region55: #{_lambda_.11} parent=51 // pred_region
        %p306 = scmp.lt.s32.totalorder %s16, 1
        %s307 = scalar_select %p306, %s16, 1
        %s308 = smul.addr %s307, 2
        %s309 = smul.addr %s308, 8
        %s310 = scalar_lea.vmem %s0, %s309
      $region56: #{_lambda_.11} parent=51 // pred_fallthru
        _
    $region52: #{_lambda_.11} parent=5 // pred_fallthru
      _
    %p311 = scmp.le.s32.totalorder 1, %s16
    %p312 = scmp.lt.s32.totalorder %s16, 3
    %p313 = pnand %p311, %p312
    %p314 = pneg %p313
    // Predicated region
    $region57: #{_lambda_.11} parent=5 // pred_check
      _
    $region58: #{_lambda_.11} parent=5 // pred_check_branch
      %316 = sbr.rel (%p313) target = $region60
    $region59: #{_lambda_.11} parent=5 // pred_region
      %s317 = ssub.s32 %s16, 1
      %p318 = scmp.lt.s32.totalorder %s21, 1
      %s319 = scalar_select %p318, %s21, 1
      %s320 = smul.addr %s319, 2
      %s321 = smul.addr %s320, 8
      %s322 = scalar_lea.vmem %s0, %s321
      %p323 = pneg %p42
      %p324 = pneg %p39
      %p325 = pneg %p63
      %p326 = pneg %p60
      %p327 = pneg %p84
      %p328 = pneg %p81
      %p329 = pneg %p105
      %p330 = pneg %p102
      %p331 = pneg %p126
      %p332 = pneg %p123
      %p333 = pneg %p147
      %p334 = pneg %p144
      %p335 = pneg %p168
      %p336 = pneg %p165
      %p337 = pneg %p189
      %p338 = pneg %p186
      %p339 = pneg %p210
      %p340 = pneg %p207
      %p341 = pneg %p231
      %p342 = pneg %p228
      %p343 = pneg %p257
      %p344 = pneg %p254
      %p345 = scmp.lt.s32.totalorder %s21, 1
      %s346 = scalar_select %p345, %s21, 1
      %s347 = smul.addr %s346, 2
      %s348 = smul.addr %s347, 8
      %s349 = scalar_lea.vmem %s10, %s348
      %p350 = scmp.lt.s32.totalorder %s21, 1
      %s351 = scalar_select %p350, %s21, 1
      %s352 = smul.addr %s351, 2
      %s353 = smul.addr %s352, 8
      %s354 = scalar_lea.vmem %s0, %s353
      %p355 = scmp.lt.s32.totalorder %s21, 1
      %s356 = scalar_select %p355, %s21, 1
      %s357 = smul.addr %s356, 2
      %s358 = smul.addr %s357, 8
      %s359 = scalar_lea.vmem %s10, %s358
      %v360 = vld [vmem:[%s354] sm:$0xff]
      %v361 = vld [vmem:[%s354 + $0x8] sm:$0xff]
      %v362 = vld [vmem:[%s2] sm:$0xff]
      %v363 = vld [vmem:[%s2 + $0x8] sm:$0xff]
      %365 = vset.pattern.permute.xlu0 0
      %366 = vperm.xlu0 %365, %v362
      %v367 = vpop.permute.xlu0 %366
      %370 = vset.pattern.permute.xlu0 0
      %371 = vperm.xlu0 %370, %v363
      %v372 = vpop.permute.xlu0 %371
      %v374 = vmul.f32 %v360, %v367
      %v375 = vmul.f32 %v361, %v372
      %v376 = vld [vmem:[%s3] sm:$0xff]
      %v377 = vld [vmem:[%s3 + $0x8] sm:$0xff]
      %379 = vset.pattern.permute.xlu0 0
      %380 = vperm.xlu0 %379, %v376
      %v381 = vpop.permute.xlu0 %380
      %384 = vset.pattern.permute.xlu0 0
      %385 = vperm.xlu0 %384, %v377
      %v386 = vpop.permute.xlu0 %385
      %v388 = vadd.f32 %v374, %v381
      %v389 = vadd.f32 %v375, %v386
      %v390 = vmax.f32 %v388, 0.0
      %v391 = vmax.f32 %v389, 0.0
      %v392 = vld [vmem:[%s4] sm:$0xff]
      %v393 = vld [vmem:[%s5] sm:$0xff]
      %395 = vset.pattern.permute.xlu0 0
      %396 = vperm.xlu0 %395, %v393
      %v397 = vpop.permute.xlu0 %396
      %vm399 = vcmask 130048
      %v401 = vsel %vm399, %v392, 0
      %403 = vmatpush.msra.mxu0 0.0
      %404 = vmatpush.msra.mxu0 0.0
      %405 = vmatpush.msra.mxu0 0.0
      %406 = vmatpush.msra.mxu0 0.0
      %407 = vmatpush.msra.mxu0 0.0
      %408 = vmatpush.msra.mxu0 0.0
      %409 = vmatpush.msra.mxu0 0.0
      %410 = vmatpush.msra.mxu0 0.0
      %411 = vmatpush.msra.mxu0 0.0
      %412 = vmatpush.msra.mxu0 0.0
      %413 = vmatpush.msra.mxu0 0.0
      %414 = vmatpush.msra.mxu0 0.0
      %415 = vmatpush.msra.mxu0 0.0
      %416 = vmatpush.msra.mxu0 0.0
      %417 = vmatpush.msra.mxu0 %v391
      %418 = vmatpush.msra.mxu0 %v390
      %419 = vmatmul.f32.gmra.mxu0 %v401
      %v420 = vpop.f32.mrf.mxu0
      %v421 = vadd.f32 %v397, %v420
      %422 = vdwg.mxu0
      %v423 = vmax.f32 %v421, 0.0
      %425 = vrot.lane.b32.xlu0 %v423, 5
      %v426 = vpop.permute.xlu0 %425
      %vm428 = vcmask 39936
      %v429 = vsel %vm428, 0.0, %v426
      %vm430 = vcmask 171008
      %v431 = vsel %vm430, %v429, 0.0
      %v432 = vld [vmem:[%s1] sm:$0x3]
      %v433 = vperm.slane %v432, 0
      %v434 = vmul.f32 %v431, %v433
      %v435 = vperm.slane %v432, 1
      %437 = vrot.lane.b32.xlu0 %v435, 2
      %v438 = vpop.permute.xlu0 %437
      %v440 = vmul.f32 %v431, %v438
      %442 = vrot.lane.b32.xlu0 %v433, 4
      %v443 = vpop.permute.xlu0 %442
      %v445 = vmul.f32 %v431, %v443
      %446 = vrot.lane.b32.xlu0 %v435, 6
      %v447 = vpop.permute.xlu0 %446
      %v449 = vmul.f32 %v431, %v447
      %450 = vrot.lane.b32.xlu0 %v433, 8
      %v451 = vpop.permute.xlu0 %450
      %v453 = vmul.f32 %v431, %v451
      %454 = vrot.lane.b32.xlu0 %v435, 10
      %v455 = vpop.permute.xlu0 %454
      %v457 = vmul.f32 %v431, %v455
      %459 = vrot.lane.b32.xlu0 %v431, 127
      %v460 = vpop.permute.xlu0 %459
      %463 = vrot.lane.b32.xlu0 %v440, 126
      %v464 = vpop.permute.xlu0 %463
      %467 = vrot.lane.b32.xlu0 %v445, 124
      %v468 = vpop.permute.xlu0 %467
      %471 = vrot.lane.b32.xlu0 %v449, 122
      %v472 = vpop.permute.xlu0 %471
      %475 = vrot.lane.b32.xlu0 %v453, 120
      %v476 = vpop.permute.xlu0 %475
      %478 = vrot.lane.b32.xlu0 %v431, 119
      %v479 = vpop.permute.xlu0 %478
      %482 = vrot.lane.b32.xlu0 %v457, 118
      %v483 = vpop.permute.xlu0 %482
      %v485 = vld [vmem:[%s6] sm:$0xff]
      %v486 = vld [vmem:[%s7] sm:$0xff]
      %488 = vset.pattern.permute.xlu0 0
      %489 = vperm.xlu0 %488, %v486
      %v490 = vpop.permute.xlu0 %489
      %vm492 = vcmask 588800
      %v494 = vsel %vm492, %v485, 0
      %496 = vmatpush.msra.mxu0 0.0
      %497 = vmatpush.msra.mxu0 0.0
      %498 = vmatpush.msra.mxu0 0.0
      %499 = vmatpush.msra.mxu0 0.0
      %500 = vmatpush.msra.mxu0 0.0
      %501 = vmatpush.msra.mxu0 0.0
      %502 = vmatpush.msra.mxu0 0.0
      %503 = vmatpush.msra.mxu0 %v483
      %504 = vmatpush.msra.mxu0 %v479
      %505 = vmatpush.msra.mxu0 %v476
      %506 = vmatpush.msra.mxu0 %v472
      %507 = vmatpush.msra.mxu0 %v423
      %508 = vmatpush.msra.mxu0 %v468
      %509 = vmatpush.msra.mxu0 %v464
      %510 = vmatpush.msra.mxu0 %v460
      %511 = vmatpush.msra.mxu0 %v434
      %512 = vmatmul.f32.gmra.mxu0 %v494
      %v513 = vpop.f32.mrf.mxu0
      %v514 = vadd.f32 %v490, %v513
      %515 = vdwg.mxu0
      %v516 = vmax.f32 %v514, 0.0
      %v517 = vld [vmem:[%s8] sm:$0xff]
      %v518 = vld [vmem:[%s8 + $0x8] sm:$0xff]
      %v519 = vld [vmem:[%s9] sm:$0xff]
      %v520 = vld [vmem:[%s9 + $0x8] sm:$0xff]
      %522 = vset.pattern.permute.xlu0 0
      %523 = vperm.xlu0 %522, %v519
      %v524 = vpop.permute.xlu0 %523
      %527 = vset.pattern.permute.xlu0 0
      %528 = vperm.xlu0 %527, %v520
      %v529 = vpop.permute.xlu0 %528
      %vm531 = vcmask 64512
      %v533 = vsel %vm531, %v517, 0
      %v536 = vsel %vm531, %v518, 0
      %538 = vmatpush.msra.mxu0 0.0
      %539 = vmatpush.msra.mxu0 0.0
      %540 = vmatpush.msra.mxu0 0.0
      %541 = vmatpush.msra.mxu0 0.0
      %542 = vmatpush.msra.mxu0 0.0
      %543 = vmatpush.msra.mxu0 0.0
      %544 = vmatpush.msra.mxu0 0.0
      %545 = vmatpush.msra.mxu0 0.0
      %546 = vmatpush.msra.mxu0 0.0
      %547 = vmatpush.msra.mxu0 0.0
      %548 = vmatpush.msra.mxu0 0.0
      %549 = vmatpush.msra.mxu0 0.0
      %550 = vmatpush.msra.mxu0 0.0
      %551 = vmatpush.msra.mxu0 0.0
      %552 = vmatpush.msra.mxu0 0.0
      %553 = vmatpush.msra.mxu0 %v516
      %554 = vmatmul.f32.gmra.mxu0 %v533
      %v555 = vpop.f32.mrf.mxu0
      %v556 = vadd.f32 %v524, %v555
      %557 = vmatmul.f32.gmra.mxu0 %v536
      %v558 = vpop.f32.mrf.mxu0
      %v559 = vadd.f32 %v529, %v558
      %560 = vdwg.mxu0
      %v561 = vadd.f32 %v556, %v360
      %v562 = vadd.f32 %v559, %v361
      %563 = vst.msk [vmem:[%s359] sm:$0xff] %vm399, %v561
      %564 = vst.msk [vmem:[%s359 + $0x8] sm:$0xff] %vm399, %v562
      %p565 = scmp.lt.s32.totalorder %s21, 1
      %s566 = scalar_select %p565, %s21, 1
      %s567 = smul.addr %s566, 2
      %s568 = smul.addr %s567, 8
      %s569 = scalar_lea.vmem %s10, %s568
      // Predicated region
      $region61: #{_lambda_.11} parent=59 // pred_check
        %p570 = pneg %p254
      $region62: #{_lambda_.11} parent=59 // pred_check_branch
        %572 = sbr.rel (%p570) target = $region64
      $region63: #{_lambda_.11} parent=59 // pred_region
        _
      $region64: #{_lambda_.11} parent=59 // pred_fallthru
        _
    $region60: #{_lambda_.11} parent=5 // pred_fallthru
      _
    %p573 = scmp.le.s32.totalorder 2, %s16
    // Predicated region
    $region65: #{_lambda_.11} parent=5 // pred_check
      %p574 = pneg %p573
    $region66: #{_lambda_.11} parent=5 // pred_check_branch
      %576 = sbr.rel (%p574) target = $region68
    $region67: #{_lambda_.11} parent=5 // pred_region
      %s577 = ssub.s32 %s16, 2
      // Predicated region
      $region69: #{_lambda_.11} parent=67 // pred_check
        %p578 = pneg %p260
      $region70: #{_lambda_.11} parent=67 // pred_check_branch
        %580 = sbr.rel (%p578) target = $region72
      $region71: #{_lambda_.11} parent=67 // pred_region
        %p581 = scmp.lt.s32.totalorder %s22, 1
        %s582 = scalar_select %p581, %s22, 1
        %s583 = smul.addr %s582, 2
        %s584 = smul.addr %s583, 8
        %s585 = scalar_lea.vmem %s10, %s584
      $region72: #{_lambda_.11} parent=67 // pred_fallthru
        _
    $region68: #{_lambda_.11} parent=5 // pred_fallthru
      _
  $region6: #{_lambda_.11} parent=0 // loop_footer
    %s20 = sadd.s32 1, %s16
  $region7: #{_lambda_.11} parent=0 // loop_footer_branch
    %15 = sbr.rel target = $region3
  $region8: #{_lambda_.11} parent=0 // loop_exit
    _

// kernel: _lambda_.12
$region0: #{_lambda_.12}
  #allocation0 [shape = 'u32[]', space=smem, size = 0x4, offset = 0x4, fixed_abs, tag = 'smem constant byte address 0x4 - core index']
  #allocation1 [shape = 'u32[72,128]{1,0:T(1,128)}', space=vmem, size = 0x9000, scoped, tag = 'internal scratch']
  %s0 = inlined_call_operand.vmem [shape: f32[2,16,16], index: 0, kind: input, shape index: {}]
  %s1 = inlined_call_operand.vmem [shape: f32[2,16], index: 1, kind: input, shape index: {}]
  %s2 = inlined_call_operand.vmem [shape: f32[16,1], index: 2, kind: input, shape index: {}]
  %s3 = inlined_call_operand.vmem [shape: f32[16,1], index: 3, kind: input, shape index: {}]
  %s4 = inlined_call_operand.vmem [shape: f32[8,16], index: 4, kind: input, shape index: {}]
  %s5 = inlined_call_operand.vmem [shape: f32[8,1], index: 5, kind: input, shape index: {}]
  %s6 = inlined_call_operand.vmem [shape: f32[8,72], index: 6, kind: input, shape index: {}]
  %s7 = inlined_call_operand.vmem [shape: f32[8,1], index: 7, kind: input, shape index: {}]
  %s8 = inlined_call_operand.vmem [shape: f32[12,8], index: 8, kind: input, shape index: {}]
  %s9 = inlined_call_operand.vmem [shape: f32[12,1], index: 9, kind: input, shape index: {}]
  %s10 = inlined_call_operand.vmem [shape: f32[12,16], index: 10, kind: input, shape index: {}]
  %s11 = inlined_call_operand.vmem [shape: f32[12,1], index: 11, kind: input, shape index: {}]
  %s12 = inlined_call_operand.vmem [shape: f32[2,12,16], index: 12, kind: output, shape index: {}]
  %s13 = sld [smem:[#allocation0]]
  $region81: #{_lambda_.12} parent=0
    _
  %s15 = ssub.s32 1, %s13
  %s16 = scalar_select 0, %s15, %s13
  loop: start=0, step=1, limit=4
  $region2: #{_lambda_.12} parent=0 // loop_pre_header
    _
  $region3: #{_lambda_.12} parent=0 // loop_header
    %s18 = sphi 0, %s22
    %p19 = scmp.ge.s32.totalorder %s18, 4
    %s28 = sphi 0, %s30
    %s31 = sphi 0, %s28
    %s32 = sphi 0, %s31
    %s48 = sphi 0, %s32
    %s52 = sphi 0, %s52
    %s54 = sphi 0, %s52
    %s55 = sphi 0, %s54
    %s69 = sphi 0, %s55
    %s73 = sphi 0, %s73
    %s75 = sphi 0, %s73
    %s76 = sphi 0, %s75
    %s90 = sphi 0, %s76
    %s94 = sphi 0, %s94
    %s96 = sphi 0, %s94
    %s97 = sphi 0, %s96
    %s111 = sphi 0, %s97
    %s115 = sphi 0, %s115
    %s117 = sphi 0, %s115
    %s118 = sphi 0, %s117
    %s132 = sphi 0, %s118
    %s136 = sphi 0, %s136
    %s138 = sphi 0, %s136
    %s139 = sphi 0, %s138
    %s153 = sphi 0, %s139
    %s157 = sphi 0, %s157
    %s159 = sphi 0, %s157
    %s160 = sphi 0, %s159
    %s174 = sphi 0, %s160
    %s178 = sphi 0, %s178
    %s180 = sphi 0, %s178
    %s181 = sphi 0, %s180
    %s195 = sphi 0, %s181
    %s199 = sphi 0, %s199
    %s201 = sphi 0, %s199
    %s202 = sphi 0, %s201
    %s216 = sphi 0, %s202
    %s220 = sphi 0, %s220
    %s222 = sphi 0, %s220
    %s223 = sphi 0, %s222
    %s237 = sphi 0, %s223
    %s241 = sphi 0, %s241
    %s243 = sphi 0, %s241
    %s244 = sphi 0, %s243
    %s258 = sphi 0, %s244
    %s262 = sphi 0, %s262
    %s264 = sphi 0, %s262
    %s265 = sphi 0, %s264
    %s279 = sphi 0, %s265
    %s285 = sphi 0, %s287
    %s288 = sphi 0, %s285
    %s289 = sphi 0, %s288
    %s305 = sphi 0, %s289
  $region4: #{_lambda_.12} parent=0 // loop_header_branch
    %21 = sbr.rel (%p19) target = $region8
  $region5: #{_lambda_.12} parent=0 // loop_body
    %s23 = ssub.s32 %s18, 1
    %s24 = ssub.s32 %s18, 2
    %s25 = sadd.s32 %s18, 1
    %s26 = ssub.s32 %s18, %s25
    %p27 = scmp.eq.s32.totalorder %s26, 0
    %s29 = sadd.s32 %s28, 1
    %s30 = scalar_select %p27, %s28, %s29
    %p33 = pneg %p27
    %p34 = scmp.eq.s32.totalorder %s18, 1
    %p35 = por %p33, %p34
    %p36 = scmp.ne.s32.totalorder %s28, %s31
    %p37 = scmp.eq.s32.totalorder %s18, 0
    %p38 = por %p36, %p37
    %p39 = scmp.ne.s32.totalorder %s28, %s31
    %p40 = scmp.eq.s32.totalorder %s23, 1
    %p41 = por %p39, %p40
    %p42 = scmp.ne.s32.totalorder %s31, %s32
    %p43 = scmp.eq.s32.totalorder %s23, 0
    %p44 = por %p42, %p43
    %p45 = scmp.ne.s32.totalorder %s31, %s32
    %p46 = scmp.eq.s32.totalorder %s24, 1
    %p47 = por %p45, %p46
    %p49 = scmp.ne.s32.totalorder %s32, %s48
    %p50 = scmp.eq.s32.totalorder %s24, 0
    %p51 = por %p49, %p50
    %s53 = sadd.s32 %s52, 1
    %p56 = scmp.eq.s32.totalorder %s18, 1
    %p57 = scmp.ne.s32.totalorder %s52, %s54
    %p58 = scmp.eq.s32.totalorder %s18, 0
    %p59 = por %p57, %p58
    %p60 = scmp.ne.s32.totalorder %s52, %s54
    %p61 = scmp.eq.s32.totalorder %s23, 1
    %p62 = por %p60, %p61
    %p63 = scmp.ne.s32.totalorder %s54, %s55
    %p64 = scmp.eq.s32.totalorder %s23, 0
    %p65 = por %p63, %p64
    %p66 = scmp.ne.s32.totalorder %s54, %s55
    %p67 = scmp.eq.s32.totalorder %s24, 1
    %p68 = por %p66, %p67
    %p70 = scmp.ne.s32.totalorder %s55, %s69
    %p71 = scmp.eq.s32.totalorder %s24, 0
    %p72 = por %p70, %p71
    %s74 = sadd.s32 %s73, 1
    %p77 = scmp.eq.s32.totalorder %s18, 1
    %p78 = scmp.ne.s32.totalorder %s73, %s75
    %p79 = scmp.eq.s32.totalorder %s18, 0
    %p80 = por %p78, %p79
    %p81 = scmp.ne.s32.totalorder %s73, %s75
    %p82 = scmp.eq.s32.totalorder %s23, 1
    %p83 = por %p81, %p82
    %p84 = scmp.ne.s32.totalorder %s75, %s76
    %p85 = scmp.eq.s32.totalorder %s23, 0
    %p86 = por %p84, %p85
    %p87 = scmp.ne.s32.totalorder %s75, %s76
    %p88 = scmp.eq.s32.totalorder %s24, 1
    %p89 = por %p87, %p88
    %p91 = scmp.ne.s32.totalorder %s76, %s90
    %p92 = scmp.eq.s32.totalorder %s24, 0
    %p93 = por %p91, %p92
    %s95 = sadd.s32 %s94, 1
    %p98 = scmp.eq.s32.totalorder %s18, 1
    %p99 = scmp.ne.s32.totalorder %s94, %s96
    %p100 = scmp.eq.s32.totalorder %s18, 0
    %p101 = por %p99, %p100
    %p102 = scmp.ne.s32.totalorder %s94, %s96
    %p103 = scmp.eq.s32.totalorder %s23, 1
    %p104 = por %p102, %p103
    %p105 = scmp.ne.s32.totalorder %s96, %s97
    %p106 = scmp.eq.s32.totalorder %s23, 0
    %p107 = por %p105, %p106
    %p108 = scmp.ne.s32.totalorder %s96, %s97
    %p109 = scmp.eq.s32.totalorder %s24, 1
    %p110 = por %p108, %p109
    %p112 = scmp.ne.s32.totalorder %s97, %s111
    %p113 = scmp.eq.s32.totalorder %s24, 0
    %p114 = por %p112, %p113
    %s116 = sadd.s32 %s115, 1
    %p119 = scmp.eq.s32.totalorder %s18, 1
    %p120 = scmp.ne.s32.totalorder %s115, %s117
    %p121 = scmp.eq.s32.totalorder %s18, 0
    %p122 = por %p120, %p121
    %p123 = scmp.ne.s32.totalorder %s115, %s117
    %p124 = scmp.eq.s32.totalorder %s23, 1
    %p125 = por %p123, %p124
    %p126 = scmp.ne.s32.totalorder %s117, %s118
    %p127 = scmp.eq.s32.totalorder %s23, 0
    %p128 = por %p126, %p127
    %p129 = scmp.ne.s32.totalorder %s117, %s118
    %p130 = scmp.eq.s32.totalorder %s24, 1
    %p131 = por %p129, %p130
    %p133 = scmp.ne.s32.totalorder %s118, %s132
    %p134 = scmp.eq.s32.totalorder %s24, 0
    %p135 = por %p133, %p134
    %s137 = sadd.s32 %s136, 1
    %p140 = scmp.eq.s32.totalorder %s18, 1
    %p141 = scmp.ne.s32.totalorder %s136, %s138
    %p142 = scmp.eq.s32.totalorder %s18, 0
    %p143 = por %p141, %p142
    %p144 = scmp.ne.s32.totalorder %s136, %s138
    %p145 = scmp.eq.s32.totalorder %s23, 1
    %p146 = por %p144, %p145
    %p147 = scmp.ne.s32.totalorder %s138, %s139
    %p148 = scmp.eq.s32.totalorder %s23, 0
    %p149 = por %p147, %p148
    %p150 = scmp.ne.s32.totalorder %s138, %s139
    %p151 = scmp.eq.s32.totalorder %s24, 1
    %p152 = por %p150, %p151
    %p154 = scmp.ne.s32.totalorder %s139, %s153
    %p155 = scmp.eq.s32.totalorder %s24, 0
    %p156 = por %p154, %p155
    %s158 = sadd.s32 %s157, 1
    %p161 = scmp.eq.s32.totalorder %s18, 1
    %p162 = scmp.ne.s32.totalorder %s157, %s159
    %p163 = scmp.eq.s32.totalorder %s18, 0
    %p164 = por %p162, %p163
    %p165 = scmp.ne.s32.totalorder %s157, %s159
    %p166 = scmp.eq.s32.totalorder %s23, 1
    %p167 = por %p165, %p166
    %p168 = scmp.ne.s32.totalorder %s159, %s160
    %p169 = scmp.eq.s32.totalorder %s23, 0
    %p170 = por %p168, %p169
    %p171 = scmp.ne.s32.totalorder %s159, %s160
    %p172 = scmp.eq.s32.totalorder %s24, 1
    %p173 = por %p171, %p172
    %p175 = scmp.ne.s32.totalorder %s160, %s174
    %p176 = scmp.eq.s32.totalorder %s24, 0
    %p177 = por %p175, %p176
    %s179 = sadd.s32 %s178, 1
    %p182 = scmp.eq.s32.totalorder %s18, 1
    %p183 = scmp.ne.s32.totalorder %s178, %s180
    %p184 = scmp.eq.s32.totalorder %s18, 0
    %p185 = por %p183, %p184
    %p186 = scmp.ne.s32.totalorder %s178, %s180
    %p187 = scmp.eq.s32.totalorder %s23, 1
    %p188 = por %p186, %p187
    %p189 = scmp.ne.s32.totalorder %s180, %s181
    %p190 = scmp.eq.s32.totalorder %s23, 0
    %p191 = por %p189, %p190
    %p192 = scmp.ne.s32.totalorder %s180, %s181
    %p193 = scmp.eq.s32.totalorder %s24, 1
    %p194 = por %p192, %p193
    %p196 = scmp.ne.s32.totalorder %s181, %s195
    %p197 = scmp.eq.s32.totalorder %s24, 0
    %p198 = por %p196, %p197
    %s200 = sadd.s32 %s199, 1
    %p203 = scmp.eq.s32.totalorder %s18, 1
    %p204 = scmp.ne.s32.totalorder %s199, %s201
    %p205 = scmp.eq.s32.totalorder %s18, 0
    %p206 = por %p204, %p205
    %p207 = scmp.ne.s32.totalorder %s199, %s201
    %p208 = scmp.eq.s32.totalorder %s23, 1
    %p209 = por %p207, %p208
    %p210 = scmp.ne.s32.totalorder %s201, %s202
    %p211 = scmp.eq.s32.totalorder %s23, 0
    %p212 = por %p210, %p211
    %p213 = scmp.ne.s32.totalorder %s201, %s202
    %p214 = scmp.eq.s32.totalorder %s24, 1
    %p215 = por %p213, %p214
    %p217 = scmp.ne.s32.totalorder %s202, %s216
    %p218 = scmp.eq.s32.totalorder %s24, 0
    %p219 = por %p217, %p218
    %s221 = sadd.s32 %s220, 1
    %p224 = scmp.eq.s32.totalorder %s18, 1
    %p225 = scmp.ne.s32.totalorder %s220, %s222
    %p226 = scmp.eq.s32.totalorder %s18, 0
    %p227 = por %p225, %p226
    %p228 = scmp.ne.s32.totalorder %s220, %s222
    %p229 = scmp.eq.s32.totalorder %s23, 1
    %p230 = por %p228, %p229
    %p231 = scmp.ne.s32.totalorder %s222, %s223
    %p232 = scmp.eq.s32.totalorder %s23, 0
    %p233 = por %p231, %p232
    %p234 = scmp.ne.s32.totalorder %s222, %s223
    %p235 = scmp.eq.s32.totalorder %s24, 1
    %p236 = por %p234, %p235
    %p238 = scmp.ne.s32.totalorder %s223, %s237
    %p239 = scmp.eq.s32.totalorder %s24, 0
    %p240 = por %p238, %p239
    %s242 = sadd.s32 %s241, 1
    %p245 = scmp.eq.s32.totalorder %s18, 1
    %p246 = scmp.ne.s32.totalorder %s241, %s243
    %p247 = scmp.eq.s32.totalorder %s18, 0
    %p248 = por %p246, %p247
    %p249 = scmp.ne.s32.totalorder %s241, %s243
    %p250 = scmp.eq.s32.totalorder %s23, 1
    %p251 = por %p249, %p250
    %p252 = scmp.ne.s32.totalorder %s243, %s244
    %p253 = scmp.eq.s32.totalorder %s23, 0
    %p254 = por %p252, %p253
    %p255 = scmp.ne.s32.totalorder %s243, %s244
    %p256 = scmp.eq.s32.totalorder %s24, 1
    %p257 = por %p255, %p256
    %p259 = scmp.ne.s32.totalorder %s244, %s258
    %p260 = scmp.eq.s32.totalorder %s24, 0
    %p261 = por %p259, %p260
    %s263 = sadd.s32 %s262, 1
    %p266 = scmp.eq.s32.totalorder %s18, 1
    %p267 = scmp.ne.s32.totalorder %s262, %s264
    %p268 = scmp.eq.s32.totalorder %s18, 0
    %p269 = por %p267, %p268
    %p270 = scmp.ne.s32.totalorder %s262, %s264
    %p271 = scmp.eq.s32.totalorder %s23, 1
    %p272 = por %p270, %p271
    %p273 = scmp.ne.s32.totalorder %s264, %s265
    %p274 = scmp.eq.s32.totalorder %s23, 0
    %p275 = por %p273, %p274
    %p276 = scmp.ne.s32.totalorder %s264, %s265
    %p277 = scmp.eq.s32.totalorder %s24, 1
    %p278 = por %p276, %p277
    %p280 = scmp.ne.s32.totalorder %s265, %s279
    %p281 = scmp.eq.s32.totalorder %s24, 0
    %p282 = por %p280, %p281
    %s283 = ssub.s32 %s18, %s25
    %p284 = scmp.eq.s32.totalorder %s283, 0
    %s286 = sadd.s32 %s285, 1
    %s287 = scalar_select %p284, %s285, %s286
    %p290 = pneg %p284
    %p291 = scmp.eq.s32.totalorder %s18, 1
    %p292 = por %p290, %p291
    %p293 = scmp.ne.s32.totalorder %s285, %s288
    %p294 = scmp.eq.s32.totalorder %s18, 0
    %p295 = por %p293, %p294
    %p296 = scmp.ne.s32.totalorder %s285, %s288
    %p297 = scmp.eq.s32.totalorder %s23, 1
    %p298 = por %p296, %p297
    %p299 = scmp.ne.s32.totalorder %s288, %s289
    %p300 = scmp.eq.s32.totalorder %s23, 0
    %p301 = por %p299, %p300
    %p302 = scmp.ne.s32.totalorder %s288, %s289
    %p303 = scmp.eq.s32.totalorder %s24, 1
    %p304 = por %p302, %p303
    %p306 = scmp.ne.s32.totalorder %s289, %s305
    %p307 = scmp.eq.s32.totalorder %s24, 0
    %p308 = por %p306, %p307
    %p309 = scmp.le.s32.totalorder 1, %s18
    %p310 = scmp.lt.s32.totalorder %s18, 3
    %p311 = pnand %p309, %p310
    %p312 = pneg %p311
    // Predicated region
    $region9: #{_lambda_.12} parent=5 // pred_check
      _
    $region10: #{_lambda_.12} parent=5 // pred_check_branch
      %314 = sbr.rel (%p311) target = $region12
    $region11: #{_lambda_.12} parent=5 // pred_region
      %s315 = ssub.s32 %s18, 1
      // Predicated region
      $region13: #{_lambda_.12} parent=11 // pred_check
        %p316 = pneg %p65
      $region14: #{_lambda_.12} parent=11 // pred_check_branch
        %318 = sbr.rel (%p316) target = $region16
      $region15: #{_lambda_.12} parent=11 // pred_region
        _
      $region16: #{_lambda_.12} parent=11 // pred_fallthru
        _
      // Predicated region
      $region17: #{_lambda_.12} parent=11 // pred_check
        %p319 = pneg %p86
      $region18: #{_lambda_.12} parent=11 // pred_check_branch
        %321 = sbr.rel (%p319) target = $region20
      $region19: #{_lambda_.12} parent=11 // pred_region
        _
      $region20: #{_lambda_.12} parent=11 // pred_fallthru
        _
      // Predicated region
      $region21: #{_lambda_.12} parent=11 // pred_check
        %p322 = pneg %p107
      $region22: #{_lambda_.12} parent=11 // pred_check_branch
        %324 = sbr.rel (%p322) target = $region24
      $region23: #{_lambda_.12} parent=11 // pred_region
        _
      $region24: #{_lambda_.12} parent=11 // pred_fallthru
        _
      // Predicated region
      $region25: #{_lambda_.12} parent=11 // pred_check
        %p325 = pneg %p128
      $region26: #{_lambda_.12} parent=11 // pred_check_branch
        %327 = sbr.rel (%p325) target = $region28
      $region27: #{_lambda_.12} parent=11 // pred_region
        _
      $region28: #{_lambda_.12} parent=11 // pred_fallthru
        _
      // Predicated region
      $region29: #{_lambda_.12} parent=11 // pred_check
        %p328 = pneg %p149
      $region30: #{_lambda_.12} parent=11 // pred_check_branch
        %330 = sbr.rel (%p328) target = $region32
      $region31: #{_lambda_.12} parent=11 // pred_region
        _
      $region32: #{_lambda_.12} parent=11 // pred_fallthru
        _
      // Predicated region
      $region33: #{_lambda_.12} parent=11 // pred_check
        %p331 = pneg %p170
      $region34: #{_lambda_.12} parent=11 // pred_check_branch
        %333 = sbr.rel (%p331) target = $region36
      $region35: #{_lambda_.12} parent=11 // pred_region
        _
      $region36: #{_lambda_.12} parent=11 // pred_fallthru
        _
      // Predicated region
      $region37: #{_lambda_.12} parent=11 // pred_check
        %p334 = pneg %p191
      $region38: #{_lambda_.12} parent=11 // pred_check_branch
        %336 = sbr.rel (%p334) target = $region40
      $region39: #{_lambda_.12} parent=11 // pred_region
        _
      $region40: #{_lambda_.12} parent=11 // pred_fallthru
        _
      // Predicated region
      $region41: #{_lambda_.12} parent=11 // pred_check
        %p337 = pneg %p212
      $region42: #{_lambda_.12} parent=11 // pred_check_branch
        %339 = sbr.rel (%p337) target = $region44
      $region43: #{_lambda_.12} parent=11 // pred_region
        _
      $region44: #{_lambda_.12} parent=11 // pred_fallthru
        _
      // Predicated region
      $region45: #{_lambda_.12} parent=11 // pred_check
        %p340 = pneg %p233
      $region46: #{_lambda_.12} parent=11 // pred_check_branch
        %342 = sbr.rel (%p340) target = $region48
      $region47: #{_lambda_.12} parent=11 // pred_region
        _
      $region48: #{_lambda_.12} parent=11 // pred_fallthru
        _
      // Predicated region
      $region49: #{_lambda_.12} parent=11 // pred_check
        %p343 = pneg %p254
      $region50: #{_lambda_.12} parent=11 // pred_check_branch
        %345 = sbr.rel (%p343) target = $region52
      $region51: #{_lambda_.12} parent=11 // pred_region
        _
      $region52: #{_lambda_.12} parent=11 // pred_fallthru
        _
      // Predicated region
      $region53: #{_lambda_.12} parent=11 // pred_check
        %p346 = pneg %p275
      $region54: #{_lambda_.12} parent=11 // pred_check_branch
        %348 = sbr.rel (%p346) target = $region56
      $region55: #{_lambda_.12} parent=11 // pred_region
        _
      $region56: #{_lambda_.12} parent=11 // pred_fallthru
        _
    $region12: #{_lambda_.12} parent=5 // pred_fallthru
      _
    %p349 = scmp.lt.s32.totalorder %s18, 2
    // Predicated region
    $region57: #{_lambda_.12} parent=5 // pred_check
      %p350 = pneg %p349
    $region58: #{_lambda_.12} parent=5 // pred_check_branch
      %352 = sbr.rel (%p350) target = $region60
    $region59: #{_lambda_.12} parent=5 // pred_region
      // Predicated region
      $region61: #{_lambda_.12} parent=59 // pred_check
        %p353 = pneg %p38
      $region62: #{_lambda_.12} parent=59 // pred_check_branch
        %355 = sbr.rel (%p353) target = $region64
      $region63: #{_lambda_.12} parent=59 // pred_region
        %p356 = scmp.lt.s32.totalorder %s18, 1
        %s357 = scalar_select %p356, %s18, 1
        %s358 = smul.addr %s357, 2
        %s359 = smul.addr %s358, 8
        %s360 = scalar_lea.vmem %s0, %s359
      $region64: #{_lambda_.12} parent=59 // pred_fallthru
        _
    $region60: #{_lambda_.12} parent=5 // pred_fallthru
      _
    %p361 = scmp.le.s32.totalorder 1, %s18
    %p362 = scmp.lt.s32.totalorder %s18, 3
    %p363 = pnand %p361, %p362
    %p364 = pneg %p363
    // Predicated region
    $region65: #{_lambda_.12} parent=5 // pred_check
      _
    $region66: #{_lambda_.12} parent=5 // pred_check_branch
      %366 = sbr.rel (%p363) target = $region68
    $region67: #{_lambda_.12} parent=5 // pred_region
      %s367 = ssub.s32 %s18, 1
      %p368 = scmp.lt.s32.totalorder %s23, 1
      %s369 = scalar_select %p368, %s23, 1
      %s370 = smul.addr %s369, 2
      %s371 = smul.addr %s370, 8
      %s372 = scalar_lea.vmem %s0, %s371
      %p373 = pneg %p44
      %p374 = pneg %p41
      %p375 = pneg %p65
      %p376 = pneg %p62
      %p377 = pneg %p86
      %p378 = pneg %p83
      %p379 = pneg %p107
      %p380 = pneg %p104
      %p381 = pneg %p128
      %p382 = pneg %p125
      %p383 = pneg %p149
      %p384 = pneg %p146
      %p385 = pneg %p170
      %p386 = pneg %p167
      %p387 = pneg %p191
      %p388 = pneg %p188
      %p389 = pneg %p212
      %p390 = pneg %p209
      %p391 = pneg %p233
      %p392 = pneg %p230
      %p393 = pneg %p254
      %p394 = pneg %p251
      %p395 = pneg %p275
      %p396 = pneg %p272
      %p397 = pneg %p301
      %p398 = pneg %p298
      %p399 = scmp.lt.s32.totalorder %s23, 1
      %s400 = scalar_select %p399, %s23, 1
      %s401 = smul.addr %s400, 2
      %s402 = smul.addr %s401, 8
      %s403 = scalar_lea.vmem %s12, %s402
      %p404 = scmp.lt.s32.totalorder %s23, 1
      %s405 = scalar_select %p404, %s23, 1
      %s406 = smul.addr %s405, 2
      %s407 = smul.addr %s406, 8
      %s408 = scalar_lea.vmem %s0, %s407
      %p409 = scmp.lt.s32.totalorder %s23, 1
      %s410 = scalar_select %p409, %s23, 1
      %s411 = smul.addr %s410, 2
      %s412 = smul.addr %s411, 8
      %s413 = scalar_lea.vmem %s12, %s412
      %v414 = vld [vmem:[%s408] sm:$0xff]
      %v415 = vld [vmem:[%s408 + $0x8] sm:$0xff]
      %v416 = vld [vmem:[%s10] sm:$0xff]
      %v417 = vld [vmem:[%s10 + $0x8] sm:$0xf]
      %v418 = vld [vmem:[%s11] sm:$0xff]
      %v419 = vld [vmem:[%s11 + $0x8] sm:$0xf]
      %421 = vset.pattern.permute.xlu0 0
      %422 = vperm.xlu0 %421, %v418
      %v423 = vpop.permute.xlu0 %422
      %426 = vset.pattern.permute.xlu0 0
      %427 = vperm.xlu0 %426, %v419
      %v428 = vpop.permute.xlu0 %427
      %vm430 = vcmask 130048
      %v432 = vsel %vm430, %v416, 0
      %v435 = vsel %vm430, %v417, 0
      %437 = vmatpush.msra.mxu0 0.0
      %438 = vmatpush.msra.mxu0 0.0
      %439 = vmatpush.msra.mxu0 0.0
      %440 = vmatpush.msra.mxu0 0.0
      %441 = vmatpush.msra.mxu0 0.0
      %442 = vmatpush.msra.mxu0 0.0
      %443 = vmatpush.msra.mxu0 0.0
      %444 = vmatpush.msra.mxu0 0.0
      %445 = vmatpush.msra.mxu0 0.0
      %446 = vmatpush.msra.mxu0 0.0
      %447 = vmatpush.msra.mxu0 0.0
      %448 = vmatpush.msra.mxu0 0.0
      %449 = vmatpush.msra.mxu0 0.0
      %450 = vmatpush.msra.mxu0 0.0
      %451 = vmatpush.msra.mxu0 %v415
      %452 = vmatpush.msra.mxu0 %v414
      %453 = vmatmul.f32.gmra.mxu0 %v432
      %v454 = vpop.f32.mrf.mxu0
      %v455 = vadd.f32 %v423, %v454
      %456 = vmatmul.f32.gmra.mxu0 %v435
      %v457 = vpop.f32.mrf.mxu0
      %v458 = vadd.f32 %v428, %v457
      %459 = vdwg.mxu0
      %v460 = vld [vmem:[%s2] sm:$0xff]
      %v461 = vld [vmem:[%s2 + $0x8] sm:$0xff]
      %463 = vset.pattern.permute.xlu0 0
      %464 = vperm.xlu0 %463, %v460
      %v465 = vpop.permute.xlu0 %464
      %468 = vset.pattern.permute.xlu0 0
      %469 = vperm.xlu0 %468, %v461
      %v470 = vpop.permute.xlu0 %469
      %v472 = vmul.f32 %v414, %v465
      %v473 = vmul.f32 %v415, %v470
      %v474 = vld [vmem:[%s3] sm:$0xff]
      %v475 = vld [vmem:[%s3 + $0x8] sm:$0xff]
      %477 = vset.pattern.permute.xlu0 0
      %478 = vperm.xlu0 %477, %v474
      %v479 = vpop.permute.xlu0 %478
      %482 = vset.pattern.permute.xlu0 0
      %483 = vperm.xlu0 %482, %v475
      %v484 = vpop.permute.xlu0 %483
      %v486 = vadd.f32 %v472, %v479
      %v487 = vadd.f32 %v473, %v484
      %v488 = vmax.f32 %v486, 0.0
      %v489 = vmax.f32 %v487, 0.0
      %v490 = vld [vmem:[%s4] sm:$0xff]
      %v491 = vld [vmem:[%s5] sm:$0xff]
      %493 = vset.pattern.permute.xlu0 0
      %494 = vperm.xlu0 %493, %v491
      %v495 = vpop.permute.xlu0 %494
      %v498 = vsel %vm430, %v490, 0
      %500 = vmatpush.msra.mxu0 0.0
      %501 = vmatpush.msra.mxu0 0.0
      %502 = vmatpush.msra.mxu0 0.0
      %503 = vmatpush.msra.mxu0 0.0
      %504 = vmatpush.msra.mxu0 0.0
      %505 = vmatpush.msra.mxu0 0.0
      %506 = vmatpush.msra.mxu0 0.0
      %507 = vmatpush.msra.mxu0 0.0
      %508 = vmatpush.msra.mxu0 0.0
      %509 = vmatpush.msra.mxu0 0.0
      %510 = vmatpush.msra.mxu0 0.0
      %511 = vmatpush.msra.mxu0 0.0
      %512 = vmatpush.msra.mxu0 0.0
      %513 = vmatpush.msra.mxu0 0.0
      %514 = vmatpush.msra.mxu0 %v489
      %515 = vmatpush.msra.mxu0 %v488
      %516 = vmatmul.f32.gmra.mxu0 %v498
      %v517 = vpop.f32.mrf.mxu0
      %v518 = vadd.f32 %v495, %v517
      %519 = vdwg.mxu0
      %v520 = vmax.f32 %v518, 0.0
      %522 = vrot.lane.b32.xlu0 %v520, 5
      %v523 = vpop.permute.xlu0 %522
      %vm525 = vcmask 39936
      %v526 = vsel %vm525, 0.0, %v523
      %vm527 = vcmask 171008
      %v528 = vsel %vm527, %v526, 0.0
      %v529 = vld [vmem:[%s1] sm:$0x3]
      %v530 = vperm.slane %v529, 0
      %v531 = vmul.f32 %v528, %v530
      %v532 = vperm.slane %v529, 1
      %534 = vrot.lane.b32.xlu0 %v532, 2
      %v535 = vpop.permute.xlu0 %534
      %v537 = vmul.f32 %v528, %v535
      %539 = vrot.lane.b32.xlu0 %v530, 4
      %v540 = vpop.permute.xlu0 %539
      %v542 = vmul.f32 %v528, %v540
      %543 = vrot.lane.b32.xlu0 %v532, 6
      %v544 = vpop.permute.xlu0 %543
      %v546 = vmul.f32 %v528, %v544
      %547 = vrot.lane.b32.xlu0 %v530, 8
      %v548 = vpop.permute.xlu0 %547
      %v550 = vmul.f32 %v528, %v548
      %551 = vrot.lane.b32.xlu0 %v532, 10
      %v552 = vpop.permute.xlu0 %551
      %v554 = vmul.f32 %v528, %v552
      %556 = vrot.lane.b32.xlu0 %v528, 127
      %v557 = vpop.permute.xlu0 %556
      %560 = vrot.lane.b32.xlu0 %v537, 126
      %v561 = vpop.permute.xlu0 %560
      %564 = vrot.lane.b32.xlu0 %v542, 124
      %v565 = vpop.permute.xlu0 %564
      %568 = vrot.lane.b32.xlu0 %v546, 122
      %v569 = vpop.permute.xlu0 %568
      %572 = vrot.lane.b32.xlu0 %v550, 120
      %v573 = vpop.permute.xlu0 %572
      %575 = vrot.lane.b32.xlu0 %v528, 119
      %v576 = vpop.permute.xlu0 %575
      %579 = vrot.lane.b32.xlu0 %v554, 118
      %v580 = vpop.permute.xlu0 %579
      %v582 = vld [vmem:[%s6] sm:$0xff]
      %v583 = vld [vmem:[%s7] sm:$0xff]
      %585 = vset.pattern.permute.xlu0 0
      %586 = vperm.xlu0 %585, %v583
      %v587 = vpop.permute.xlu0 %586
      %vm589 = vcmask 588800
      %v591 = vsel %vm589, %v582, 0
      %593 = vmatpush.msra.mxu0 0.0
      %594 = vmatpush.msra.mxu0 0.0
      %595 = vmatpush.msra.mxu0 0.0
      %596 = vmatpush.msra.mxu0 0.0
      %597 = vmatpush.msra.mxu0 0.0
      %598 = vmatpush.msra.mxu0 0.0
      %599 = vmatpush.msra.mxu0 0.0
      %600 = vmatpush.msra.mxu0 %v580
      %601 = vmatpush.msra.mxu0 %v576
      %602 = vmatpush.msra.mxu0 %v573
      %603 = vmatpush.msra.mxu0 %v569
      %604 = vmatpush.msra.mxu0 %v520
      %605 = vmatpush.msra.mxu0 %v565
      %606 = vmatpush.msra.mxu0 %v561
      %607 = vmatpush.msra.mxu0 %v557
      %608 = vmatpush.msra.mxu0 %v531
      %609 = vmatmul.f32.gmra.mxu0 %v591
      %v610 = vpop.f32.mrf.mxu0
      %v611 = vadd.f32 %v587, %v610
      %612 = vdwg.mxu0
      %v613 = vmax.f32 %v611, 0.0
      %v614 = vld [vmem:[%s8] sm:$0xff]
      %v615 = vld [vmem:[%s8 + $0x8] sm:$0xf]
      %v616 = vld [vmem:[%s9] sm:$0xff]
      %v617 = vld [vmem:[%s9 + $0x8] sm:$0xf]
      %619 = vset.pattern.permute.xlu0 0
      %620 = vperm.xlu0 %619, %v616
      %v621 = vpop.permute.xlu0 %620
      %624 = vset.pattern.permute.xlu0 0
      %625 = vperm.xlu0 %624, %v617
      %v626 = vpop.permute.xlu0 %625
      %vm628 = vcmask 64512
      %v630 = vsel %vm628, %v614, 0
      %v633 = vsel %vm628, %v615, 0
      %635 = vmatpush.msra.mxu0 0.0
      %636 = vmatpush.msra.mxu0 0.0
      %637 = vmatpush.msra.mxu0 0.0
      %638 = vmatpush.msra.mxu0 0.0
      %639 = vmatpush.msra.mxu0 0.0
      %640 = vmatpush.msra.mxu0 0.0
      %641 = vmatpush.msra.mxu0 0.0
      %642 = vmatpush.msra.mxu0 0.0
      %643 = vmatpush.msra.mxu0 0.0
      %644 = vmatpush.msra.mxu0 0.0
      %645 = vmatpush.msra.mxu0 0.0
      %646 = vmatpush.msra.mxu0 0.0
      %647 = vmatpush.msra.mxu0 0.0
      %648 = vmatpush.msra.mxu0 0.0
      %649 = vmatpush.msra.mxu0 0.0
      %650 = vmatpush.msra.mxu0 %v613
      %651 = vmatmul.f32.gmra.mxu0 %v630
      %v652 = vpop.f32.mrf.mxu0
      %v653 = vadd.f32 %v621, %v652
      %654 = vmatmul.f32.gmra.mxu0 %v633
      %v655 = vpop.f32.mrf.mxu0
      %v656 = vadd.f32 %v626, %v655
      %657 = vdwg.mxu0
      %v658 = vadd.f32 %v653, %v455
      %v659 = vadd.f32 %v656, %v458
      %660 = vst.msk [vmem:[%s413] sm:$0xff] %vm430, %v658
      %vm661 = vcmask 125952
      %662 = vst.msk [vmem:[%s413 + $0x8] sm:$0xf] %vm661, %v659
      %p663 = scmp.lt.s32.totalorder %s23, 1
      %s664 = scalar_select %p663, %s23, 1
      %s665 = smul.addr %s664, 2
      %s666 = smul.addr %s665, 8
      %s667 = scalar_lea.vmem %s12, %s666
      // Predicated region
      $region69: #{_lambda_.12} parent=67 // pred_check
        %p668 = pneg %p298
      $region70: #{_lambda_.12} parent=67 // pred_check_branch
        %670 = sbr.rel (%p668) target = $region72
      $region71: #{_lambda_.12} parent=67 // pred_region
        _
      $region72: #{_lambda_.12} parent=67 // pred_fallthru
        _
    $region68: #{_lambda_.12} parent=5 // pred_fallthru
      _
    %p671 = scmp.le.s32.totalorder 2, %s18
    // Predicated region
    $region73: #{_lambda_.12} parent=5 // pred_check
      %p672 = pneg %p671
    $region74: #{_lambda_.12} parent=5 // pred_check_branch
      %674 = sbr.rel (%p672) target = $region76
    $region75: #{_lambda_.12} parent=5 // pred_region
      %s675 = ssub.s32 %s18, 2
      // Predicated region
      $region77: #{_lambda_.12} parent=75 // pred_check
        %p676 = pneg %p304
      $region78: #{_lambda_.12} parent=75 // pred_check_branch
        %678 = sbr.rel (%p676) target = $region80
      $region79: #{_lambda_.12} parent=75 // pred_region
        %p679 = scmp.lt.s32.totalorder %s24, 1
        %s680 = scalar_select %p679, %s24, 1
        %s681 = smul.addr %s680, 2
        %s682 = smul.addr %s681, 8
        %s683 = scalar_lea.vmem %s12, %s682
      $region80: #{_lambda_.12} parent=75 // pred_fallthru
        _
    $region76: #{_lambda_.12} parent=5 // pred_fallthru
      _
  $region6: #{_lambda_.12} parent=0 // loop_footer
    %s22 = sadd.s32 1, %s18
  $region7: #{_lambda_.12} parent=0 // loop_footer_branch
    %17 = sbr.rel target = $region3
  $region8: #{_lambda_.12} parent=0 // loop_exit
    _

// kernel: _lambda_.13
$region0: #{_lambda_.13}
  #allocation0 [shape = 'u32[]', space=smem, size = 0x4, offset = 0x4, fixed_abs, tag = 'smem constant byte address 0x4 - core index']
  #allocation1 [shape = 'u32[72,128]{1,0:T(1,128)}', space=vmem, size = 0x9000, scoped, tag = 'internal scratch']
  %s0 = inlined_call_operand.vmem [shape: f32[2,12,64], index: 0, kind: input, shape index: {}]
  %s1 = inlined_call_operand.vmem [shape: f32[2,64], index: 1, kind: input, shape index: {}]
  %s2 = inlined_call_operand.vmem [shape: f32[12,1], index: 2, kind: input, shape index: {}]
  %s3 = inlined_call_operand.vmem [shape: f32[12,1], index: 3, kind: input, shape index: {}]
  %s4 = inlined_call_operand.vmem [shape: f32[8,12], index: 4, kind: input, shape index: {}]
  %s5 = inlined_call_operand.vmem [shape: f32[8,1], index: 5, kind: input, shape index: {}]
  %s6 = inlined_call_operand.vmem [shape: f32[8,72], index: 6, kind: input, shape index: {}]
  %s7 = inlined_call_operand.vmem [shape: f32[8,1], index: 7, kind: input, shape index: {}]
  %s8 = inlined_call_operand.vmem [shape: f32[8,8], index: 8, kind: input, shape index: {}]
  %s9 = inlined_call_operand.vmem [shape: f32[8,1], index: 9, kind: input, shape index: {}]
  %s10 = inlined_call_operand.vmem [shape: f32[8,12], index: 10, kind: input, shape index: {}]
  %s11 = inlined_call_operand.vmem [shape: f32[8,1], index: 11, kind: input, shape index: {}]
  %s12 = inlined_call_operand.vmem [shape: f32[2,8,64], index: 12, kind: output, shape index: {}]
  %s13 = sld [smem:[#allocation0]]
  $region81: #{_lambda_.13} parent=0
    _
  %s15 = ssub.s32 1, %s13
  %s16 = scalar_select 0, %s15, %s13
  loop: start=0, step=1, limit=4
  $region2: #{_lambda_.13} parent=0 // loop_pre_header
    _
  $region3: #{_lambda_.13} parent=0 // loop_header
    %s18 = sphi 0, %s22
    %p19 = scmp.ge.s32.totalorder %s18, 4
    %s28 = sphi 0, %s30
    %s31 = sphi 0, %s28
    %s32 = sphi 0, %s31
    %s48 = sphi 0, %s32
    %s52 = sphi 0, %s52
    %s54 = sphi 0, %s52
    %s55 = sphi 0, %s54
    %s69 = sphi 0, %s55
    %s73 = sphi 0, %s73
    %s75 = sphi 0, %s73
    %s76 = sphi 0, %s75
    %s90 = sphi 0, %s76
    %s94 = sphi 0, %s94
    %s96 = sphi 0, %s94
    %s97 = sphi 0, %s96
    %s111 = sphi 0, %s97
    %s115 = sphi 0, %s115
    %s117 = sphi 0, %s115
    %s118 = sphi 0, %s117
    %s132 = sphi 0, %s118
    %s136 = sphi 0, %s136
    %s138 = sphi 0, %s136
    %s139 = sphi 0, %s138
    %s153 = sphi 0, %s139
    %s157 = sphi 0, %s157
    %s159 = sphi 0, %s157
    %s160 = sphi 0, %s159
    %s174 = sphi 0, %s160
    %s178 = sphi 0, %s178
    %s180 = sphi 0, %s178
    %s181 = sphi 0, %s180
    %s195 = sphi 0, %s181
    %s199 = sphi 0, %s199
    %s201 = sphi 0, %s199
    %s202 = sphi 0, %s201
    %s216 = sphi 0, %s202
    %s220 = sphi 0, %s220
    %s222 = sphi 0, %s220
    %s223 = sphi 0, %s222
    %s237 = sphi 0, %s223
    %s241 = sphi 0, %s241
    %s243 = sphi 0, %s241
    %s244 = sphi 0, %s243
    %s258 = sphi 0, %s244
    %s262 = sphi 0, %s262
    %s264 = sphi 0, %s262
    %s265 = sphi 0, %s264
    %s279 = sphi 0, %s265
    %s285 = sphi 0, %s287
    %s288 = sphi 0, %s285
    %s289 = sphi 0, %s288
    %s305 = sphi 0, %s289
  $region4: #{_lambda_.13} parent=0 // loop_header_branch
    %21 = sbr.rel (%p19) target = $region8
  $region5: #{_lambda_.13} parent=0 // loop_body
    %s23 = ssub.s32 %s18, 1
    %s24 = ssub.s32 %s18, 2
    %s25 = sadd.s32 %s18, 1
    %s26 = ssub.s32 %s18, %s25
    %p27 = scmp.eq.s32.totalorder %s26, 0
    %s29 = sadd.s32 %s28, 1
    %s30 = scalar_select %p27, %s28, %s29
    %p33 = pneg %p27
    %p34 = scmp.eq.s32.totalorder %s18, 1
    %p35 = por %p33, %p34
    %p36 = scmp.ne.s32.totalorder %s28, %s31
    %p37 = scmp.eq.s32.totalorder %s18, 0
    %p38 = por %p36, %p37
    %p39 = scmp.ne.s32.totalorder %s28, %s31
    %p40 = scmp.eq.s32.totalorder %s23, 1
    %p41 = por %p39, %p40
    %p42 = scmp.ne.s32.totalorder %s31, %s32
    %p43 = scmp.eq.s32.totalorder %s23, 0
    %p44 = por %p42, %p43
    %p45 = scmp.ne.s32.totalorder %s31, %s32
    %p46 = scmp.eq.s32.totalorder %s24, 1
    %p47 = por %p45, %p46
    %p49 = scmp.ne.s32.totalorder %s32, %s48
    %p50 = scmp.eq.s32.totalorder %s24, 0
    %p51 = por %p49, %p50
    %s53 = sadd.s32 %s52, 1
    %p56 = scmp.eq.s32.totalorder %s18, 1
    %p57 = scmp.ne.s32.totalorder %s52, %s54
    %p58 = scmp.eq.s32.totalorder %s18, 0
    %p59 = por %p57, %p58
    %p60 = scmp.ne.s32.totalorder %s52, %s54
    %p61 = scmp.eq.s32.totalorder %s23, 1
    %p62 = por %p60, %p61
    %p63 = scmp.ne.s32.totalorder %s54, %s55
    %p64 = scmp.eq.s32.totalorder %s23, 0
    %p65 = por %p63, %p64
    %p66 = scmp.ne.s32.totalorder %s54, %s55
    %p67 = scmp.eq.s32.totalorder %s24, 1
    %p68 = por %p66, %p67
    %p70 = scmp.ne.s32.totalorder %s55, %s69
    %p71 = scmp.eq.s32.totalorder %s24, 0
    %p72 = por %p70, %p71
    %s74 = sadd.s32 %s73, 1
    %p77 = scmp.eq.s32.totalorder %s18, 1
    %p78 = scmp.ne.s32.totalorder %s73, %s75
    %p79 = scmp.eq.s32.totalorder %s18, 0
    %p80 = por %p78, %p79
    %p81 = scmp.ne.s32.totalorder %s73, %s75
    %p82 = scmp.eq.s32.totalorder %s23, 1
    %p83 = por %p81, %p82
    %p84 = scmp.ne.s32.totalorder %s75, %s76
    %p85 = scmp.eq.s32.totalorder %s23, 0
    %p86 = por %p84, %p85
    %p87 = scmp.ne.s32.totalorder %s75, %s76
    %p88 = scmp.eq.s32.totalorder %s24, 1
    %p89 = por %p87, %p88
    %p91 = scmp.ne.s32.totalorder %s76, %s90
    %p92 = scmp.eq.s32.totalorder %s24, 0
    %p93 = por %p91, %p92
    %s95 = sadd.s32 %s94, 1
    %p98 = scmp.eq.s32.totalorder %s18, 1
    %p99 = scmp.ne.s32.totalorder %s94, %s96
    %p100 = scmp.eq.s32.totalorder %s18, 0
    %p101 = por %p99, %p100
    %p102 = scmp.ne.s32.totalorder %s94, %s96
    %p103 = scmp.eq.s32.totalorder %s23, 1
    %p104 = por %p102, %p103
    %p105 = scmp.ne.s32.totalorder %s96, %s97
    %p106 = scmp.eq.s32.totalorder %s23, 0
    %p107 = por %p105, %p106
    %p108 = scmp.ne.s32.totalorder %s96, %s97
    %p109 = scmp.eq.s32.totalorder %s24, 1
    %p110 = por %p108, %p109
    %p112 = scmp.ne.s32.totalorder %s97, %s111
    %p113 = scmp.eq.s32.totalorder %s24, 0
    %p114 = por %p112, %p113
    %s116 = sadd.s32 %s115, 1
    %p119 = scmp.eq.s32.totalorder %s18, 1
    %p120 = scmp.ne.s32.totalorder %s115, %s117
    %p121 = scmp.eq.s32.totalorder %s18, 0
    %p122 = por %p120, %p121
    %p123 = scmp.ne.s32.totalorder %s115, %s117
    %p124 = scmp.eq.s32.totalorder %s23, 1
    %p125 = por %p123, %p124
    %p126 = scmp.ne.s32.totalorder %s117, %s118
    %p127 = scmp.eq.s32.totalorder %s23, 0
    %p128 = por %p126, %p127
    %p129 = scmp.ne.s32.totalorder %s117, %s118
    %p130 = scmp.eq.s32.totalorder %s24, 1
    %p131 = por %p129, %p130
    %p133 = scmp.ne.s32.totalorder %s118, %s132
    %p134 = scmp.eq.s32.totalorder %s24, 0
    %p135 = por %p133, %p134
    %s137 = sadd.s32 %s136, 1
    %p140 = scmp.eq.s32.totalorder %s18, 1
    %p141 = scmp.ne.s32.totalorder %s136, %s138
    %p142 = scmp.eq.s32.totalorder %s18, 0
    %p143 = por %p141, %p142
    %p144 = scmp.ne.s32.totalorder %s136, %s138
    %p145 = scmp.eq.s32.totalorder %s23, 1
    %p146 = por %p144, %p145
    %p147 = scmp.ne.s32.totalorder %s138, %s139
    %p148 = scmp.eq.s32.totalorder %s23, 0
    %p149 = por %p147, %p148
    %p150 = scmp.ne.s32.totalorder %s138, %s139
    %p151 = scmp.eq.s32.totalorder %s24, 1
    %p152 = por %p150, %p151
    %p154 = scmp.ne.s32.totalorder %s139, %s153
    %p155 = scmp.eq.s32.totalorder %s24, 0
    %p156 = por %p154, %p155
    %s158 = sadd.s32 %s157, 1
    %p161 = scmp.eq.s32.totalorder %s18, 1
    %p162 = scmp.ne.s32.totalorder %s157, %s159
    %p163 = scmp.eq.s32.totalorder %s18, 0
    %p164 = por %p162, %p163
    %p165 = scmp.ne.s32.totalorder %s157, %s159
    %p166 = scmp.eq.s32.totalorder %s23, 1
    %p167 = por %p165, %p166
    %p168 = scmp.ne.s32.totalorder %s159, %s160
    %p169 = scmp.eq.s32.totalorder %s23, 0
    %p170 = por %p168, %p169
    %p171 = scmp.ne.s32.totalorder %s159, %s160
    %p172 = scmp.eq.s32.totalorder %s24, 1
    %p173 = por %p171, %p172
    %p175 = scmp.ne.s32.totalorder %s160, %s174
    %p176 = scmp.eq.s32.totalorder %s24, 0
    %p177 = por %p175, %p176
    %s179 = sadd.s32 %s178, 1
    %p182 = scmp.eq.s32.totalorder %s18, 1
    %p183 = scmp.ne.s32.totalorder %s178, %s180
    %p184 = scmp.eq.s32.totalorder %s18, 0
    %p185 = por %p183, %p184
    %p186 = scmp.ne.s32.totalorder %s178, %s180
    %p187 = scmp.eq.s32.totalorder %s23, 1
    %p188 = por %p186, %p187
    %p189 = scmp.ne.s32.totalorder %s180, %s181
    %p190 = scmp.eq.s32.totalorder %s23, 0
    %p191 = por %p189, %p190
    %p192 = scmp.ne.s32.totalorder %s180, %s181
    %p193 = scmp.eq.s32.totalorder %s24, 1
    %p194 = por %p192, %p193
    %p196 = scmp.ne.s32.totalorder %s181, %s195
    %p197 = scmp.eq.s32.totalorder %s24, 0
    %p198 = por %p196, %p197
    %s200 = sadd.s32 %s199, 1
    %p203 = scmp.eq.s32.totalorder %s18, 1
    %p204 = scmp.ne.s32.totalorder %s199, %s201
    %p205 = scmp.eq.s32.totalorder %s18, 0
    %p206 = por %p204, %p205
    %p207 = scmp.ne.s32.totalorder %s199, %s201
    %p208 = scmp.eq.s32.totalorder %s23, 1
    %p209 = por %p207, %p208
    %p210 = scmp.ne.s32.totalorder %s201, %s202
    %p211 = scmp.eq.s32.totalorder %s23, 0
    %p212 = por %p210, %p211
    %p213 = scmp.ne.s32.totalorder %s201, %s202
    %p214 = scmp.eq.s32.totalorder %s24, 1
    %p215 = por %p213, %p214
    %p217 = scmp.ne.s32.totalorder %s202, %s216
    %p218 = scmp.eq.s32.totalorder %s24, 0
    %p219 = por %p217, %p218
    %s221 = sadd.s32 %s220, 1
    %p224 = scmp.eq.s32.totalorder %s18, 1
    %p225 = scmp.ne.s32.totalorder %s220, %s222
    %p226 = scmp.eq.s32.totalorder %s18, 0
    %p227 = por %p225, %p226
    %p228 = scmp.ne.s32.totalorder %s220, %s222
    %p229 = scmp.eq.s32.totalorder %s23, 1
    %p230 = por %p228, %p229
    %p231 = scmp.ne.s32.totalorder %s222, %s223
    %p232 = scmp.eq.s32.totalorder %s23, 0
    %p233 = por %p231, %p232
    %p234 = scmp.ne.s32.totalorder %s222, %s223
    %p235 = scmp.eq.s32.totalorder %s24, 1
    %p236 = por %p234, %p235
    %p238 = scmp.ne.s32.totalorder %s223, %s237
    %p239 = scmp.eq.s32.totalorder %s24, 0
    %p240 = por %p238, %p239
    %s242 = sadd.s32 %s241, 1
    %p245 = scmp.eq.s32.totalorder %s18, 1
    %p246 = scmp.ne.s32.totalorder %s241, %s243
    %p247 = scmp.eq.s32.totalorder %s18, 0
    %p248 = por %p246, %p247
    %p249 = scmp.ne.s32.totalorder %s241, %s243
    %p250 = scmp.eq.s32.totalorder %s23, 1
    %p251 = por %p249, %p250
    %p252 = scmp.ne.s32.totalorder %s243, %s244
    %p253 = scmp.eq.s32.totalorder %s23, 0
    %p254 = por %p252, %p253
    %p255 = scmp.ne.s32.totalorder %s243, %s244
    %p256 = scmp.eq.s32.totalorder %s24, 1
    %p257 = por %p255, %p256
    %p259 = scmp.ne.s32.totalorder %s244, %s258
    %p260 = scmp.eq.s32.totalorder %s24, 0
    %p261 = por %p259, %p260
    %s263 = sadd.s32 %s262, 1
    %p266 = scmp.eq.s32.totalorder %s18, 1
    %p267 = scmp.ne.s32.totalorder %s262, %s264
    %p268 = scmp.eq.s32.totalorder %s18, 0
    %p269 = por %p267, %p268
    %p270 = scmp.ne.s32.totalorder %s262, %s264
    %p271 = scmp.eq.s32.totalorder %s23, 1
    %p272 = por %p270, %p271
    %p273 = scmp.ne.s32.totalorder %s264, %s265
    %p274 = scmp.eq.s32.totalorder %s23, 0
    %p275 = por %p273, %p274
    %p276 = scmp.ne.s32.totalorder %s264, %s265
    %p277 = scmp.eq.s32.totalorder %s24, 1
    %p278 = por %p276, %p277
    %p280 = scmp.ne.s32.totalorder %s265, %s279
    %p281 = scmp.eq.s32.totalorder %s24, 0
    %p282 = por %p280, %p281
    %s283 = ssub.s32 %s18, %s25
    %p284 = scmp.eq.s32.totalorder %s283, 0
    %s286 = sadd.s32 %s285, 1
    %s287 = scalar_select %p284, %s285, %s286
    %p290 = pneg %p284
    %p291 = scmp.eq.s32.totalorder %s18, 1
    %p292 = por %p290, %p291
    %p293 = scmp.ne.s32.totalorder %s285, %s288
    %p294 = scmp.eq.s32.totalorder %s18, 0
    %p295 = por %p293, %p294
    %p296 = scmp.ne.s32.totalorder %s285, %s288
    %p297 = scmp.eq.s32.totalorder %s23, 1
    %p298 = por %p296, %p297
    %p299 = scmp.ne.s32.totalorder %s288, %s289
    %p300 = scmp.eq.s32.totalorder %s23, 0
    %p301 = por %p299, %p300
    %p302 = scmp.ne.s32.totalorder %s288, %s289
    %p303 = scmp.eq.s32.totalorder %s24, 1
    %p304 = por %p302, %p303
    %p306 = scmp.ne.s32.totalorder %s289, %s305
    %p307 = scmp.eq.s32.totalorder %s24, 0
    %p308 = por %p306, %p307
    %p309 = scmp.le.s32.totalorder 1, %s18
    %p310 = scmp.lt.s32.totalorder %s18, 3
    %p311 = pnand %p309, %p310
    %p312 = pneg %p311
    // Predicated region
    $region9: #{_lambda_.13} parent=5 // pred_check
      _
    $region10: #{_lambda_.13} parent=5 // pred_check_branch
      %314 = sbr.rel (%p311) target = $region12
    $region11: #{_lambda_.13} parent=5 // pred_region
      %s315 = ssub.s32 %s18, 1
      // Predicated region
      $region13: #{_lambda_.13} parent=11 // pred_check
        %p316 = pneg %p65
      $region14: #{_lambda_.13} parent=11 // pred_check_branch
        %318 = sbr.rel (%p316) target = $region16
      $region15: #{_lambda_.13} parent=11 // pred_region
        _
      $region16: #{_lambda_.13} parent=11 // pred_fallthru
        _
      // Predicated region
      $region17: #{_lambda_.13} parent=11 // pred_check
        %p319 = pneg %p86
      $region18: #{_lambda_.13} parent=11 // pred_check_branch
        %321 = sbr.rel (%p319) target = $region20
      $region19: #{_lambda_.13} parent=11 // pred_region
        _
      $region20: #{_lambda_.13} parent=11 // pred_fallthru
        _
      // Predicated region
      $region21: #{_lambda_.13} parent=11 // pred_check
        %p322 = pneg %p107
      $region22: #{_lambda_.13} parent=11 // pred_check_branch
        %324 = sbr.rel (%p322) target = $region24
      $region23: #{_lambda_.13} parent=11 // pred_region
        _
      $region24: #{_lambda_.13} parent=11 // pred_fallthru
        _
      // Predicated region
      $region25: #{_lambda_.13} parent=11 // pred_check
        %p325 = pneg %p128
      $region26: #{_lambda_.13} parent=11 // pred_check_branch
        %327 = sbr.rel (%p325) target = $region28
      $region27: #{_lambda_.13} parent=11 // pred_region
        _
      $region28: #{_lambda_.13} parent=11 // pred_fallthru
        _
      // Predicated region
      $region29: #{_lambda_.13} parent=11 // pred_check
        %p328 = pneg %p149
      $region30: #{_lambda_.13} parent=11 // pred_check_branch
        %330 = sbr.rel (%p328) target = $region32
      $region31: #{_lambda_.13} parent=11 // pred_region
        _
      $region32: #{_lambda_.13} parent=11 // pred_fallthru
        _
      // Predicated region
      $region33: #{_lambda_.13} parent=11 // pred_check
        %p331 = pneg %p170
      $region34: #{_lambda_.13} parent=11 // pred_check_branch
        %333 = sbr.rel (%p331) target = $region36
      $region35: #{_lambda_.13} parent=11 // pred_region
        _
      $region36: #{_lambda_.13} parent=11 // pred_fallthru
        _
      // Predicated region
      $region37: #{_lambda_.13} parent=11 // pred_check
        %p334 = pneg %p191
      $region38: #{_lambda_.13} parent=11 // pred_check_branch
        %336 = sbr.rel (%p334) target = $region40
      $region39: #{_lambda_.13} parent=11 // pred_region
        _
      $region40: #{_lambda_.13} parent=11 // pred_fallthru
        _
      // Predicated region
      $region41: #{_lambda_.13} parent=11 // pred_check
        %p337 = pneg %p212
      $region42: #{_lambda_.13} parent=11 // pred_check_branch
        %339 = sbr.rel (%p337) target = $region44
      $region43: #{_lambda_.13} parent=11 // pred_region
        _
      $region44: #{_lambda_.13} parent=11 // pred_fallthru
        _
      // Predicated region
      $region45: #{_lambda_.13} parent=11 // pred_check
        %p340 = pneg %p233
      $region46: #{_lambda_.13} parent=11 // pred_check_branch
        %342 = sbr.rel (%p340) target = $region48
      $region47: #{_lambda_.13} parent=11 // pred_region
        _
      $region48: #{_lambda_.13} parent=11 // pred_fallthru
        _
      // Predicated region
      $region49: #{_lambda_.13} parent=11 // pred_check
        %p343 = pneg %p254
      $region50: #{_lambda_.13} parent=11 // pred_check_branch
        %345 = sbr.rel (%p343) target = $region52
      $region51: #{_lambda_.13} parent=11 // pred_region
        _
      $region52: #{_lambda_.13} parent=11 // pred_fallthru
        _
      // Predicated region
      $region53: #{_lambda_.13} parent=11 // pred_check
        %p346 = pneg %p275
      $region54: #{_lambda_.13} parent=11 // pred_check_branch
        %348 = sbr.rel (%p346) target = $region56
      $region55: #{_lambda_.13} parent=11 // pred_region
        _
      $region56: #{_lambda_.13} parent=11 // pred_fallthru
        _
    $region12: #{_lambda_.13} parent=5 // pred_fallthru
      _
    %p349 = scmp.lt.s32.totalorder %s18, 2
    // Predicated region
    $region57: #{_lambda_.13} parent=5 // pred_check
      %p350 = pneg %p349
    $region58: #{_lambda_.13} parent=5 // pred_check_branch
      %352 = sbr.rel (%p350) target = $region60
    $region59: #{_lambda_.13} parent=5 // pred_region
      // Predicated region
      $region61: #{_lambda_.13} parent=59 // pred_check
        %p353 = pneg %p38
      $region62: #{_lambda_.13} parent=59 // pred_check_branch
        %355 = sbr.rel (%p353) target = $region64
      $region63: #{_lambda_.13} parent=59 // pred_region
        %p356 = scmp.lt.s32.totalorder %s18, 1
        %s357 = scalar_select %p356, %s18, 1
        %s358 = smul.addr %s357, 2
        %s359 = smul.addr %s358, 8
        %s360 = scalar_lea.vmem %s0, %s359
      $region64: #{_lambda_.13} parent=59 // pred_fallthru
        _
    $region60: #{_lambda_.13} parent=5 // pred_fallthru
      _
    %p361 = scmp.le.s32.totalorder 1, %s18
    %p362 = scmp.lt.s32.totalorder %s18, 3
    %p363 = pnand %p361, %p362
    %p364 = pneg %p363
    // Predicated region
    $region65: #{_lambda_.13} parent=5 // pred_check
      _
    $region66: #{_lambda_.13} parent=5 // pred_check_branch
      %366 = sbr.rel (%p363) target = $region68
    $region67: #{_lambda_.13} parent=5 // pred_region
      %s367 = ssub.s32 %s18, 1
      %p368 = scmp.lt.s32.totalorder %s23, 1
      %s369 = scalar_select %p368, %s23, 1
      %s370 = smul.addr %s369, 2
      %s371 = smul.addr %s370, 8
      %s372 = scalar_lea.vmem %s0, %s371
      %p373 = pneg %p44
      %p374 = pneg %p41
      %p375 = pneg %p65
      %p376 = pneg %p62
      %p377 = pneg %p86
      %p378 = pneg %p83
      %p379 = pneg %p107
      %p380 = pneg %p104
      %p381 = pneg %p128
      %p382 = pneg %p125
      %p383 = pneg %p149
      %p384 = pneg %p146
      %p385 = pneg %p170
      %p386 = pneg %p167
      %p387 = pneg %p191
      %p388 = pneg %p188
      %p389 = pneg %p212
      %p390 = pneg %p209
      %p391 = pneg %p233
      %p392 = pneg %p230
      %p393 = pneg %p254
      %p394 = pneg %p251
      %p395 = pneg %p275
      %p396 = pneg %p272
      %p397 = pneg %p301
      %p398 = pneg %p298
      %p399 = scmp.lt.s32.totalorder %s23, 1
      %s400 = scalar_select %p399, %s23, 1
      %s401 = smul.addr %s400, 8
      %s402 = scalar_lea.vmem %s12, %s401
      %p403 = scmp.lt.s32.totalorder %s23, 1
      %s404 = scalar_select %p403, %s23, 1
      %s405 = smul.addr %s404, 2
      %s406 = smul.addr %s405, 8
      %s407 = scalar_lea.vmem %s0, %s406
      %p408 = scmp.lt.s32.totalorder %s23, 1
      %s409 = scalar_select %p408, %s23, 1
      %s410 = smul.addr %s409, 8
      %s411 = scalar_lea.vmem %s12, %s410
      %v412 = vld [vmem:[%s407] sm:$0xff]
      %v413 = vld [vmem:[%s407 + $0x8] sm:$0xf]
      %v414 = vld [vmem:[%s10] sm:$0xff]
      %v415 = vld [vmem:[%s11] sm:$0xff]
      %417 = vset.pattern.permute.xlu0 0
      %418 = vperm.xlu0 %417, %v415
      %v419 = vpop.permute.xlu0 %418
      %vm421 = vcmask 97280
      %v423 = vsel %vm421, %v414, 0
      %vm425 = vcmask 1043456
      %v427 = vsel %vm425, %v413, 0
      %429 = vmatpush.msra.mxu0 0.0
      %430 = vmatpush.msra.mxu0 0.0
      %431 = vmatpush.msra.mxu0 0.0
      %432 = vmatpush.msra.mxu0 0.0
      %433 = vmatpush.msra.mxu0 0.0
      %434 = vmatpush.msra.mxu0 0.0
      %435 = vmatpush.msra.mxu0 0.0
      %436 = vmatpush.msra.mxu0 0.0
      %437 = vmatpush.msra.mxu0 0.0
      %438 = vmatpush.msra.mxu0 0.0
      %439 = vmatpush.msra.mxu0 0.0
      %440 = vmatpush.msra.mxu0 0.0
      %441 = vmatpush.msra.mxu0 0.0
      %442 = vmatpush.msra.mxu0 0.0
      %443 = vmatpush.msra.mxu0 %v427
      %444 = vmatpush.msra.mxu0 %v412
      %445 = vmatmul.f32.gmra.mxu0 %v423
      %v446 = vpop.f32.mrf.mxu0
      %v447 = vadd.f32 %v419, %v446
      %448 = vdwg.mxu0
      %v449 = vld [vmem:[%s2] sm:$0xff]
      %v450 = vld [vmem:[%s2 + $0x8] sm:$0xf]
      %452 = vset.pattern.permute.xlu0 0
      %453 = vperm.xlu0 %452, %v449
      %v454 = vpop.permute.xlu0 %453
      %457 = vset.pattern.permute.xlu0 0
      %458 = vperm.xlu0 %457, %v450
      %v459 = vpop.permute.xlu0 %458
      %v461 = vmul.f32 %v412, %v454
      %v462 = vmul.f32 %v413, %v459
      %v463 = vld [vmem:[%s3] sm:$0xff]
      %v464 = vld [vmem:[%s3 + $0x8] sm:$0xf]
      %466 = vset.pattern.permute.xlu0 0
      %467 = vperm.xlu0 %466, %v463
      %v468 = vpop.permute.xlu0 %467
      %471 = vset.pattern.permute.xlu0 0
      %472 = vperm.xlu0 %471, %v464
      %v473 = vpop.permute.xlu0 %472
      %v475 = vadd.f32 %v461, %v468
      %v476 = vadd.f32 %v462, %v473
      %v477 = vmax.f32 %v475, 0.0
      %v478 = vmax.f32 %v476, 0.0
      %v479 = vld [vmem:[%s4] sm:$0xff]
      %v480 = vld [vmem:[%s5] sm:$0xff]
      %482 = vset.pattern.permute.xlu0 0
      %483 = vperm.xlu0 %482, %v480
      %v484 = vpop.permute.xlu0 %483
      %v487 = vsel %vm421, %v479, 0
      %v490 = vsel %vm425, %v478, 0
      %492 = vmatpush.msra.mxu0 0.0
      %493 = vmatpush.msra.mxu0 0.0
      %494 = vmatpush.msra.mxu0 0.0
      %495 = vmatpush.msra.mxu0 0.0
      %496 = vmatpush.msra.mxu0 0.0
      %497 = vmatpush.msra.mxu0 0.0
      %498 = vmatpush.msra.mxu0 0.0
      %499 = vmatpush.msra.mxu0 0.0
      %500 = vmatpush.msra.mxu0 0.0
      %501 = vmatpush.msra.mxu0 0.0
      %502 = vmatpush.msra.mxu0 0.0
      %503 = vmatpush.msra.mxu0 0.0
      %504 = vmatpush.msra.mxu0 0.0
      %505 = vmatpush.msra.mxu0 0.0
      %506 = vmatpush.msra.mxu0 %v490
      %507 = vmatpush.msra.mxu0 %v477
      %508 = vmatmul.f32.gmra.mxu0 %v487
      %v509 = vpop.f32.mrf.mxu0
      %v510 = vadd.f32 %v484, %v509
      %511 = vdwg.mxu0
      %v512 = vmax.f32 %v510, 0.0
      %514 = vrot.lane.b32.xlu0 %v512, 9
      %v515 = vpop.permute.xlu0 %514
      %vm517 = vcmask 72704
      %v518 = vsel %vm517, 0.0, %v515
      %vm519 = vcmask 596992
      %v520 = vsel %vm519, %v518, 0.0
      %v521 = vld [vmem:[%s1] sm:$0x3]
      %v522 = vperm.slane %v521, 0
      %v523 = vmul.f32 %v520, %v522
      %v524 = vperm.slane %v521, 1
      %526 = vrot.lane.b32.xlu0 %v524, 2
      %v527 = vpop.permute.xlu0 %526
      %v529 = vmul.f32 %v520, %v527
      %531 = vrot.lane.b32.xlu0 %v522, 8
      %v532 = vpop.permute.xlu0 %531
      %v534 = vmul.f32 %v520, %v532
      %535 = vrot.lane.b32.xlu0 %v524, 10
      %v536 = vpop.permute.xlu0 %535
      %v538 = vmul.f32 %v520, %v536
      %539 = vrot.lane.b32.xlu0 %v522, 16
      %v540 = vpop.permute.xlu0 %539
      %v542 = vmul.f32 %v520, %v540
      %543 = vrot.lane.b32.xlu0 %v524, 18
      %v544 = vpop.permute.xlu0 %543
      %v546 = vmul.f32 %v520, %v544
      %548 = vrot.lane.b32.xlu0 %v520, 127
      %v549 = vpop.permute.xlu0 %548
      %552 = vrot.lane.b32.xlu0 %v529, 126
      %v553 = vpop.permute.xlu0 %552
      %556 = vrot.lane.b32.xlu0 %v534, 120
      %v557 = vpop.permute.xlu0 %556
      %560 = vrot.lane.b32.xlu0 %v538, 118
      %v561 = vpop.permute.xlu0 %560
      %564 = vrot.lane.b32.xlu0 %v542, 112
      %v565 = vpop.permute.xlu0 %564
      %567 = vrot.lane.b32.xlu0 %v520, 111
      %v568 = vpop.permute.xlu0 %567
      %571 = vrot.lane.b32.xlu0 %v546, 110
      %v572 = vpop.permute.xlu0 %571
      %v574 = vld [vmem:[%s6] sm:$0xff]
      %v575 = vld [vmem:[%s7] sm:$0xff]
      %577 = vset.pattern.permute.xlu0 0
      %578 = vperm.xlu0 %577, %v575
      %v579 = vpop.permute.xlu0 %578
      %vm581 = vcmask 588800
      %v583 = vsel %vm581, %v574, 0
      %585 = vmatpush.msra.mxu0 0.0
      %586 = vmatpush.msra.mxu0 0.0
      %587 = vmatpush.msra.mxu0 0.0
      %588 = vmatpush.msra.mxu0 0.0
      %589 = vmatpush.msra.mxu0 0.0
      %590 = vmatpush.msra.mxu0 0.0
      %591 = vmatpush.msra.mxu0 0.0
      %592 = vmatpush.msra.mxu0 %v572
      %593 = vmatpush.msra.mxu0 %v568
      %594 = vmatpush.msra.mxu0 %v565
      %595 = vmatpush.msra.mxu0 %v561
      %596 = vmatpush.msra.mxu0 %v512
      %597 = vmatpush.msra.mxu0 %v557
      %598 = vmatpush.msra.mxu0 %v553
      %599 = vmatpush.msra.mxu0 %v549
      %600 = vmatpush.msra.mxu0 %v523
      %601 = vmatmul.f32.gmra.mxu0 %v583
      %v602 = vpop.f32.mrf.mxu0
      %v603 = vadd.f32 %v579, %v602
      %604 = vdwg.mxu0
      %v605 = vmax.f32 %v603, 0.0
      %v606 = vld [vmem:[%s8] sm:$0xff]
      %v607 = vld [vmem:[%s9] sm:$0xff]
      %609 = vset.pattern.permute.xlu0 0
      %610 = vperm.xlu0 %609, %v607
      %v611 = vpop.permute.xlu0 %610
      %vm613 = vcmask 64512
      %v615 = vsel %vm613, %v606, 0
      %617 = vmatpush.msra.mxu0 0.0
      %618 = vmatpush.msra.mxu0 0.0
      %619 = vmatpush.msra.mxu0 0.0
      %620 = vmatpush.msra.mxu0 0.0
      %621 = vmatpush.msra.mxu0 0.0
      %622 = vmatpush.msra.mxu0 0.0
      %623 = vmatpush.msra.mxu0 0.0
      %624 = vmatpush.msra.mxu0 0.0
      %625 = vmatpush.msra.mxu0 0.0
      %626 = vmatpush.msra.mxu0 0.0
      %627 = vmatpush.msra.mxu0 0.0
      %628 = vmatpush.msra.mxu0 0.0
      %629 = vmatpush.msra.mxu0 0.0
      %630 = vmatpush.msra.mxu0 0.0
      %631 = vmatpush.msra.mxu0 0.0
      %632 = vmatpush.msra.mxu0 %v605
      %633 = vmatmul.f32.gmra.mxu0 %v615
      %v634 = vpop.f32.mrf.mxu0
      %v635 = vadd.f32 %v611, %v634
      %636 = vdwg.mxu0
      %v637 = vadd.f32 %v635, %v447
      %vm638 = vcmask 523264
      %639 = vst.msk [vmem:[%s411] sm:$0xff] %vm638, %v637
      %p640 = scmp.lt.s32.totalorder %s23, 1
      %s641 = scalar_select %p640, %s23, 1
      %s642 = smul.addr %s641, 8
      %s643 = scalar_lea.vmem %s12, %s642
      // Predicated region
      $region69: #{_lambda_.13} parent=67 // pred_check
        %p644 = pneg %p298
      $region70: #{_lambda_.13} parent=67 // pred_check_branch
        %646 = sbr.rel (%p644) target = $region72
      $region71: #{_lambda_.13} parent=67 // pred_region
        _
      $region72: #{_lambda_.13} parent=67 // pred_fallthru
        _
    $region68: #{_lambda_.13} parent=5 // pred_fallthru
      _
    %p647 = scmp.le.s32.totalorder 2, %s18
    // Predicated region
    $region73: #{_lambda_.13} parent=5 // pred_check
      %p648 = pneg %p647
    $region74: #{_lambda_.13} parent=5 // pred_check_branch
      %650 = sbr.rel (%p648) target = $region76
    $region75: #{_lambda_.13} parent=5 // pred_region
      %s651 = ssub.s32 %s18, 2
      // Predicated region
      $region77: #{_lambda_.13} parent=75 // pred_check
        %p652 = pneg %p304
      $region78: #{_lambda_.13} parent=75 // pred_check_branch
        %654 = sbr.rel (%p652) target = $region80
      $region79: #{_lambda_.13} parent=75 // pred_region
        %p655 = scmp.lt.s32.totalorder %s24, 1
        %s656 = scalar_select %p655, %s24, 1
        %s657 = smul.addr %s656, 8
        %s658 = scalar_lea.vmem %s12, %s657
      $region80: #{_lambda_.13} parent=75 // pred_fallthru
        _
    $region76: #{_lambda_.13} parent=5 // pred_fallthru
      _
  $region6: #{_lambda_.13} parent=0 // loop_footer
    %s22 = sadd.s32 1, %s18
  $region7: #{_lambda_.13} parent=0 // loop_footer_branch
    %17 = sbr.rel target = $region3
  $region8: #{_lambda_.13} parent=0 // loop_exit
    _

// kernel: _lambda_.9
$region0: #{_lambda_.9}
  #allocation0 [shape = 'u32[]', space=smem, size = 0x4, offset = 0x4, fixed_abs, tag = 'smem constant byte address 0x4 - core index']
  #allocation1 [shape = 'u32[72,128]{1,0:T(1,128)}', space=vmem, size = 0x9000, scoped, tag = 'internal scratch']
  %s0 = inlined_call_operand.vmem [shape: f32[2,12,64], index: 0, kind: input, shape index: {}]
  %s1 = inlined_call_operand.vmem [shape: f32[2,64], index: 1, kind: input, shape index: {}]
  %s2 = inlined_call_operand.vmem [shape: f32[12,1], index: 2, kind: input, shape index: {}]
  %s3 = inlined_call_operand.vmem [shape: f32[12,1], index: 3, kind: input, shape index: {}]
  %s4 = inlined_call_operand.vmem [shape: f32[8,12], index: 4, kind: input, shape index: {}]
  %s5 = inlined_call_operand.vmem [shape: f32[8,1], index: 5, kind: input, shape index: {}]
  %s6 = inlined_call_operand.vmem [shape: f32[8,72], index: 6, kind: input, shape index: {}]
  %s7 = inlined_call_operand.vmem [shape: f32[8,1], index: 7, kind: input, shape index: {}]
  %s8 = inlined_call_operand.vmem [shape: f32[12,8], index: 8, kind: input, shape index: {}]
  %s9 = inlined_call_operand.vmem [shape: f32[12,1], index: 9, kind: input, shape index: {}]
  %s10 = inlined_call_operand.vmem [shape: f32[2,12,64], index: 10, kind: output, shape index: {}]
  %s11 = sld [smem:[#allocation0]]
  $region73: #{_lambda_.9} parent=0
    _
  %s13 = ssub.s32 1, %s11
  %s14 = scalar_select 0, %s13, %s11
  loop: start=0, step=1, limit=4
  $region2: #{_lambda_.9} parent=0 // loop_pre_header
    _
  $region3: #{_lambda_.9} parent=0 // loop_header
    %s16 = sphi 0, %s20
    %p17 = scmp.ge.s32.totalorder %s16, 4
    %s26 = sphi 0, %s28
    %s29 = sphi 0, %s26
    %s30 = sphi 0, %s29
    %s46 = sphi 0, %s30
    %s50 = sphi 0, %s50
    %s52 = sphi 0, %s50
    %s53 = sphi 0, %s52
    %s67 = sphi 0, %s53
    %s71 = sphi 0, %s71
    %s73 = sphi 0, %s71
    %s74 = sphi 0, %s73
    %s88 = sphi 0, %s74
    %s92 = sphi 0, %s92
    %s94 = sphi 0, %s92
    %s95 = sphi 0, %s94
    %s109 = sphi 0, %s95
    %s113 = sphi 0, %s113
    %s115 = sphi 0, %s113
    %s116 = sphi 0, %s115
    %s130 = sphi 0, %s116
    %s134 = sphi 0, %s134
    %s136 = sphi 0, %s134
    %s137 = sphi 0, %s136
    %s151 = sphi 0, %s137
    %s155 = sphi 0, %s155
    %s157 = sphi 0, %s155
    %s158 = sphi 0, %s157
    %s172 = sphi 0, %s158
    %s176 = sphi 0, %s176
    %s178 = sphi 0, %s176
    %s179 = sphi 0, %s178
    %s193 = sphi 0, %s179
    %s197 = sphi 0, %s197
    %s199 = sphi 0, %s197
    %s200 = sphi 0, %s199
    %s214 = sphi 0, %s200
    %s218 = sphi 0, %s218
    %s220 = sphi 0, %s218
    %s221 = sphi 0, %s220
    %s235 = sphi 0, %s221
    %s241 = sphi 0, %s243
    %s244 = sphi 0, %s241
    %s245 = sphi 0, %s244
    %s261 = sphi 0, %s245
  $region4: #{_lambda_.9} parent=0 // loop_header_branch
    %19 = sbr.rel (%p17) target = $region8
  $region5: #{_lambda_.9} parent=0 // loop_body
    %s21 = ssub.s32 %s16, 1
    %s22 = ssub.s32 %s16, 2
    %s23 = sadd.s32 %s16, 1
    %s24 = ssub.s32 %s16, %s23
    %p25 = scmp.eq.s32.totalorder %s24, 0
    %s27 = sadd.s32 %s26, 1
    %s28 = scalar_select %p25, %s26, %s27
    %p31 = pneg %p25
    %p32 = scmp.eq.s32.totalorder %s16, 1
    %p33 = por %p31, %p32
    %p34 = scmp.ne.s32.totalorder %s26, %s29
    %p35 = scmp.eq.s32.totalorder %s16, 0
    %p36 = por %p34, %p35
    %p37 = scmp.ne.s32.totalorder %s26, %s29
    %p38 = scmp.eq.s32.totalorder %s21, 1
    %p39 = por %p37, %p38
    %p40 = scmp.ne.s32.totalorder %s29, %s30
    %p41 = scmp.eq.s32.totalorder %s21, 0
    %p42 = por %p40, %p41
    %p43 = scmp.ne.s32.totalorder %s29, %s30
    %p44 = scmp.eq.s32.totalorder %s22, 1
    %p45 = por %p43, %p44
    %p47 = scmp.ne.s32.totalorder %s30, %s46
    %p48 = scmp.eq.s32.totalorder %s22, 0
    %p49 = por %p47, %p48
    %s51 = sadd.s32 %s50, 1
    %p54 = scmp.eq.s32.totalorder %s16, 1
    %p55 = scmp.ne.s32.totalorder %s50, %s52
    %p56 = scmp.eq.s32.totalorder %s16, 0
    %p57 = por %p55, %p56
    %p58 = scmp.ne.s32.totalorder %s50, %s52
    %p59 = scmp.eq.s32.totalorder %s21, 1
    %p60 = por %p58, %p59
    %p61 = scmp.ne.s32.totalorder %s52, %s53
    %p62 = scmp.eq.s32.totalorder %s21, 0
    %p63 = por %p61, %p62
    %p64 = scmp.ne.s32.totalorder %s52, %s53
    %p65 = scmp.eq.s32.totalorder %s22, 1
    %p66 = por %p64, %p65
    %p68 = scmp.ne.s32.totalorder %s53, %s67
    %p69 = scmp.eq.s32.totalorder %s22, 0
    %p70 = por %p68, %p69
    %s72 = sadd.s32 %s71, 1
    %p75 = scmp.eq.s32.totalorder %s16, 1
    %p76 = scmp.ne.s32.totalorder %s71, %s73
    %p77 = scmp.eq.s32.totalorder %s16, 0
    %p78 = por %p76, %p77
    %p79 = scmp.ne.s32.totalorder %s71, %s73
    %p80 = scmp.eq.s32.totalorder %s21, 1
    %p81 = por %p79, %p80
    %p82 = scmp.ne.s32.totalorder %s73, %s74
    %p83 = scmp.eq.s32.totalorder %s21, 0
    %p84 = por %p82, %p83
    %p85 = scmp.ne.s32.totalorder %s73, %s74
    %p86 = scmp.eq.s32.totalorder %s22, 1
    %p87 = por %p85, %p86
    %p89 = scmp.ne.s32.totalorder %s74, %s88
    %p90 = scmp.eq.s32.totalorder %s22, 0
    %p91 = por %p89, %p90
    %s93 = sadd.s32 %s92, 1
    %p96 = scmp.eq.s32.totalorder %s16, 1
    %p97 = scmp.ne.s32.totalorder %s92, %s94
    %p98 = scmp.eq.s32.totalorder %s16, 0
    %p99 = por %p97, %p98
    %p100 = scmp.ne.s32.totalorder %s92, %s94
    %p101 = scmp.eq.s32.totalorder %s21, 1
    %p102 = por %p100, %p101
    %p103 = scmp.ne.s32.totalorder %s94, %s95
    %p104 = scmp.eq.s32.totalorder %s21, 0
    %p105 = por %p103, %p104
    %p106 = scmp.ne.s32.totalorder %s94, %s95
    %p107 = scmp.eq.s32.totalorder %s22, 1
    %p108 = por %p106, %p107
    %p110 = scmp.ne.s32.totalorder %s95, %s109
    %p111 = scmp.eq.s32.totalorder %s22, 0
    %p112 = por %p110, %p111
    %s114 = sadd.s32 %s113, 1
    %p117 = scmp.eq.s32.totalorder %s16, 1
    %p118 = scmp.ne.s32.totalorder %s113, %s115
    %p119 = scmp.eq.s32.totalorder %s16, 0
    %p120 = por %p118, %p119
    %p121 = scmp.ne.s32.totalorder %s113, %s115
    %p122 = scmp.eq.s32.totalorder %s21, 1
    %p123 = por %p121, %p122
    %p124 = scmp.ne.s32.totalorder %s115, %s116
    %p125 = scmp.eq.s32.totalorder %s21, 0
    %p126 = por %p124, %p125
    %p127 = scmp.ne.s32.totalorder %s115, %s116
    %p128 = scmp.eq.s32.totalorder %s22, 1
    %p129 = por %p127, %p128
    %p131 = scmp.ne.s32.totalorder %s116, %s130
    %p132 = scmp.eq.s32.totalorder %s22, 0
    %p133 = por %p131, %p132
    %s135 = sadd.s32 %s134, 1
    %p138 = scmp.eq.s32.totalorder %s16, 1
    %p139 = scmp.ne.s32.totalorder %s134, %s136
    %p140 = scmp.eq.s32.totalorder %s16, 0
    %p141 = por %p139, %p140
    %p142 = scmp.ne.s32.totalorder %s134, %s136
    %p143 = scmp.eq.s32.totalorder %s21, 1
    %p144 = por %p142, %p143
    %p145 = scmp.ne.s32.totalorder %s136, %s137
    %p146 = scmp.eq.s32.totalorder %s21, 0
    %p147 = por %p145, %p146
    %p148 = scmp.ne.s32.totalorder %s136, %s137
    %p149 = scmp.eq.s32.totalorder %s22, 1
    %p150 = por %p148, %p149
    %p152 = scmp.ne.s32.totalorder %s137, %s151
    %p153 = scmp.eq.s32.totalorder %s22, 0
    %p154 = por %p152, %p153
    %s156 = sadd.s32 %s155, 1
    %p159 = scmp.eq.s32.totalorder %s16, 1
    %p160 = scmp.ne.s32.totalorder %s155, %s157
    %p161 = scmp.eq.s32.totalorder %s16, 0
    %p162 = por %p160, %p161
    %p163 = scmp.ne.s32.totalorder %s155, %s157
    %p164 = scmp.eq.s32.totalorder %s21, 1
    %p165 = por %p163, %p164
    %p166 = scmp.ne.s32.totalorder %s157, %s158
    %p167 = scmp.eq.s32.totalorder %s21, 0
    %p168 = por %p166, %p167
    %p169 = scmp.ne.s32.totalorder %s157, %s158
    %p170 = scmp.eq.s32.totalorder %s22, 1
    %p171 = por %p169, %p170
    %p173 = scmp.ne.s32.totalorder %s158, %s172
    %p174 = scmp.eq.s32.totalorder %s22, 0
    %p175 = por %p173, %p174
    %s177 = sadd.s32 %s176, 1
    %p180 = scmp.eq.s32.totalorder %s16, 1
    %p181 = scmp.ne.s32.totalorder %s176, %s178
    %p182 = scmp.eq.s32.totalorder %s16, 0
    %p183 = por %p181, %p182
    %p184 = scmp.ne.s32.totalorder %s176, %s178
    %p185 = scmp.eq.s32.totalorder %s21, 1
    %p186 = por %p184, %p185
    %p187 = scmp.ne.s32.totalorder %s178, %s179
    %p188 = scmp.eq.s32.totalorder %s21, 0
    %p189 = por %p187, %p188
    %p190 = scmp.ne.s32.totalorder %s178, %s179
    %p191 = scmp.eq.s32.totalorder %s22, 1
    %p192 = por %p190, %p191
    %p194 = scmp.ne.s32.totalorder %s179, %s193
    %p195 = scmp.eq.s32.totalorder %s22, 0
    %p196 = por %p194, %p195
    %s198 = sadd.s32 %s197, 1
    %p201 = scmp.eq.s32.totalorder %s16, 1
    %p202 = scmp.ne.s32.totalorder %s197, %s199
    %p203 = scmp.eq.s32.totalorder %s16, 0
    %p204 = por %p202, %p203
    %p205 = scmp.ne.s32.totalorder %s197, %s199
    %p206 = scmp.eq.s32.totalorder %s21, 1
    %p207 = por %p205, %p206
    %p208 = scmp.ne.s32.totalorder %s199, %s200
    %p209 = scmp.eq.s32.totalorder %s21, 0
    %p210 = por %p208, %p209
    %p211 = scmp.ne.s32.totalorder %s199, %s200
    %p212 = scmp.eq.s32.totalorder %s22, 1
    %p213 = por %p211, %p212
    %p215 = scmp.ne.s32.totalorder %s200, %s214
    %p216 = scmp.eq.s32.totalorder %s22, 0
    %p217 = por %p215, %p216
    %s219 = sadd.s32 %s218, 1
    %p222 = scmp.eq.s32.totalorder %s16, 1
    %p223 = scmp.ne.s32.totalorder %s218, %s220
    %p224 = scmp.eq.s32.totalorder %s16, 0
    %p225 = por %p223, %p224
    %p226 = scmp.ne.s32.totalorder %s218, %s220
    %p227 = scmp.eq.s32.totalorder %s21, 1
    %p228 = por %p226, %p227
    %p229 = scmp.ne.s32.totalorder %s220, %s221
    %p230 = scmp.eq.s32.totalorder %s21, 0
    %p231 = por %p229, %p230
    %p232 = scmp.ne.s32.totalorder %s220, %s221
    %p233 = scmp.eq.s32.totalorder %s22, 1
    %p234 = por %p232, %p233
    %p236 = scmp.ne.s32.totalorder %s221, %s235
    %p237 = scmp.eq.s32.totalorder %s22, 0
    %p238 = por %p236, %p237
    %s239 = ssub.s32 %s16, %s23
    %p240 = scmp.eq.s32.totalorder %s239, 0
    %s242 = sadd.s32 %s241, 1
    %s243 = scalar_select %p240, %s241, %s242
    %p246 = pneg %p240
    %p247 = scmp.eq.s32.totalorder %s16, 1
    %p248 = por %p246, %p247
    %p249 = scmp.ne.s32.totalorder %s241, %s244
    %p250 = scmp.eq.s32.totalorder %s16, 0
    %p251 = por %p249, %p250
    %p252 = scmp.ne.s32.totalorder %s241, %s244
    %p253 = scmp.eq.s32.totalorder %s21, 1
    %p254 = por %p252, %p253
    %p255 = scmp.ne.s32.totalorder %s244, %s245
    %p256 = scmp.eq.s32.totalorder %s21, 0
    %p257 = por %p255, %p256
    %p258 = scmp.ne.s32.totalorder %s244, %s245
    %p259 = scmp.eq.s32.totalorder %s22, 1
    %p260 = por %p258, %p259
    %p262 = scmp.ne.s32.totalorder %s245, %s261
    %p263 = scmp.eq.s32.totalorder %s22, 0
    %p264 = por %p262, %p263
    %p265 = scmp.le.s32.totalorder 1, %s16
    %p266 = scmp.lt.s32.totalorder %s16, 3
    %p267 = pnand %p265, %p266
    %p268 = pneg %p267
    // Predicated region
    $region9: #{_lambda_.9} parent=5 // pred_check
      _
    $region10: #{_lambda_.9} parent=5 // pred_check_branch
      %270 = sbr.rel (%p267) target = $region12
    $region11: #{_lambda_.9} parent=5 // pred_region
      %s271 = ssub.s32 %s16, 1
      // Predicated region
      $region13: #{_lambda_.9} parent=11 // pred_check
        %p272 = pneg %p63
      $region14: #{_lambda_.9} parent=11 // pred_check_branch
        %274 = sbr.rel (%p272) target = $region16
      $region15: #{_lambda_.9} parent=11 // pred_region
        _
      $region16: #{_lambda_.9} parent=11 // pred_fallthru
        _
      // Predicated region
      $region17: #{_lambda_.9} parent=11 // pred_check
        %p275 = pneg %p84
      $region18: #{_lambda_.9} parent=11 // pred_check_branch
        %277 = sbr.rel (%p275) target = $region20
      $region19: #{_lambda_.9} parent=11 // pred_region
        _
      $region20: #{_lambda_.9} parent=11 // pred_fallthru
        _
      // Predicated region
      $region21: #{_lambda_.9} parent=11 // pred_check
        %p278 = pneg %p105
      $region22: #{_lambda_.9} parent=11 // pred_check_branch
        %280 = sbr.rel (%p278) target = $region24
      $region23: #{_lambda_.9} parent=11 // pred_region
        _
      $region24: #{_lambda_.9} parent=11 // pred_fallthru
        _
      // Predicated region
      $region25: #{_lambda_.9} parent=11 // pred_check
        %p281 = pneg %p126
      $region26: #{_lambda_.9} parent=11 // pred_check_branch
        %283 = sbr.rel (%p281) target = $region28
      $region27: #{_lambda_.9} parent=11 // pred_region
        _
      $region28: #{_lambda_.9} parent=11 // pred_fallthru
        _
      // Predicated region
      $region29: #{_lambda_.9} parent=11 // pred_check
        %p284 = pneg %p147
      $region30: #{_lambda_.9} parent=11 // pred_check_branch
        %286 = sbr.rel (%p284) target = $region32
      $region31: #{_lambda_.9} parent=11 // pred_region
        _
      $region32: #{_lambda_.9} parent=11 // pred_fallthru
        _
      // Predicated region
      $region33: #{_lambda_.9} parent=11 // pred_check
        %p287 = pneg %p168
      $region34: #{_lambda_.9} parent=11 // pred_check_branch
        %289 = sbr.rel (%p287) target = $region36
      $region35: #{_lambda_.9} parent=11 // pred_region
        _
      $region36: #{_lambda_.9} parent=11 // pred_fallthru
        _
      // Predicated region
      $region37: #{_lambda_.9} parent=11 // pred_check
        %p290 = pneg %p189
      $region38: #{_lambda_.9} parent=11 // pred_check_branch
        %292 = sbr.rel (%p290) target = $region40
      $region39: #{_lambda_.9} parent=11 // pred_region
        _
      $region40: #{_lambda_.9} parent=11 // pred_fallthru
        _
      // Predicated region
      $region41: #{_lambda_.9} parent=11 // pred_check
        %p293 = pneg %p210
      $region42: #{_lambda_.9} parent=11 // pred_check_branch
        %295 = sbr.rel (%p293) target = $region44
      $region43: #{_lambda_.9} parent=11 // pred_region
        _
      $region44: #{_lambda_.9} parent=11 // pred_fallthru
        _
      // Predicated region
      $region45: #{_lambda_.9} parent=11 // pred_check
        %p296 = pneg %p231
      $region46: #{_lambda_.9} parent=11 // pred_check_branch
        %298 = sbr.rel (%p296) target = $region48
      $region47: #{_lambda_.9} parent=11 // pred_region
        _
      $region48: #{_lambda_.9} parent=11 // pred_fallthru
        _
    $region12: #{_lambda_.9} parent=5 // pred_fallthru
      _
    %p299 = scmp.lt.s32.totalorder %s16, 2
    // Predicated region
    $region49: #{_lambda_.9} parent=5 // pred_check
      %p300 = pneg %p299
    $region50: #{_lambda_.9} parent=5 // pred_check_branch
      %302 = sbr.rel (%p300) target = $region52
    $region51: #{_lambda_.9} parent=5 // pred_region
      // Predicated region
      $region53: #{_lambda_.9} parent=51 // pred_check
        %p303 = pneg %p36
      $region54: #{_lambda_.9} parent=51 // pred_check_branch
        %305 = sbr.rel (%p303) target = $region56
      $region55: #{_lambda_.9} parent=51 // pred_region
        %p306 = scmp.lt.s32.totalorder %s16, 1
        %s307 = scalar_select %p306, %s16, 1
        %s308 = smul.addr %s307, 2
        %s309 = smul.addr %s308, 8
        %s310 = scalar_lea.vmem %s0, %s309
      $region56: #{_lambda_.9} parent=51 // pred_fallthru
        _
    $region52: #{_lambda_.9} parent=5 // pred_fallthru
      _
    %p311 = scmp.le.s32.totalorder 1, %s16
    %p312 = scmp.lt.s32.totalorder %s16, 3
    %p313 = pnand %p311, %p312
    %p314 = pneg %p313
    // Predicated region
    $region57: #{_lambda_.9} parent=5 // pred_check
      _
    $region58: #{_lambda_.9} parent=5 // pred_check_branch
      %316 = sbr.rel (%p313) target = $region60
    $region59: #{_lambda_.9} parent=5 // pred_region
      %s317 = ssub.s32 %s16, 1
      %p318 = scmp.lt.s32.totalorder %s21, 1
      %s319 = scalar_select %p318, %s21, 1
      %s320 = smul.addr %s319, 2
      %s321 = smul.addr %s320, 8
      %s322 = scalar_lea.vmem %s0, %s321
      %p323 = pneg %p42
      %p324 = pneg %p39
      %p325 = pneg %p63
      %p326 = pneg %p60
      %p327 = pneg %p84
      %p328 = pneg %p81
      %p329 = pneg %p105
      %p330 = pneg %p102
      %p331 = pneg %p126
      %p332 = pneg %p123
      %p333 = pneg %p147
      %p334 = pneg %p144
      %p335 = pneg %p168
      %p336 = pneg %p165
      %p337 = pneg %p189
      %p338 = pneg %p186
      %p339 = pneg %p210
      %p340 = pneg %p207
      %p341 = pneg %p231
      %p342 = pneg %p228
      %p343 = pneg %p257
      %p344 = pneg %p254
      %p345 = scmp.lt.s32.totalorder %s21, 1
      %s346 = scalar_select %p345, %s21, 1
      %s347 = smul.addr %s346, 2
      %s348 = smul.addr %s347, 8
      %s349 = scalar_lea.vmem %s10, %s348
      %p350 = scmp.lt.s32.totalorder %s21, 1
      %s351 = scalar_select %p350, %s21, 1
      %s352 = smul.addr %s351, 2
      %s353 = smul.addr %s352, 8
      %s354 = scalar_lea.vmem %s0, %s353
      %p355 = scmp.lt.s32.totalorder %s21, 1
      %s356 = scalar_select %p355, %s21, 1
      %s357 = smul.addr %s356, 2
      %s358 = smul.addr %s357, 8
      %s359 = scalar_lea.vmem %s10, %s358
      %v360 = vld [vmem:[%s354] sm:$0xff]
      %v361 = vld [vmem:[%s354 + $0x8] sm:$0xf]
      %v362 = vld [vmem:[%s2] sm:$0xff]
      %v363 = vld [vmem:[%s2 + $0x8] sm:$0xf]
      %365 = vset.pattern.permute.xlu0 0
      %366 = vperm.xlu0 %365, %v362
      %v367 = vpop.permute.xlu0 %366
      %370 = vset.pattern.permute.xlu0 0
      %371 = vperm.xlu0 %370, %v363
      %v372 = vpop.permute.xlu0 %371
      %v374 = vmul.f32 %v360, %v367
      %v375 = vmul.f32 %v361, %v372
      %v376 = vld [vmem:[%s3] sm:$0xff]
      %v377 = vld [vmem:[%s3 + $0x8] sm:$0xf]
      %379 = vset.pattern.permute.xlu0 0
      %380 = vperm.xlu0 %379, %v376
      %v381 = vpop.permute.xlu0 %380
      %384 = vset.pattern.permute.xlu0 0
      %385 = vperm.xlu0 %384, %v377
      %v386 = vpop.permute.xlu0 %385
      %v388 = vadd.f32 %v374, %v381
      %v389 = vadd.f32 %v375, %v386
      %v390 = vmax.f32 %v388, 0.0
      %v391 = vmax.f32 %v389, 0.0
      %v392 = vld [vmem:[%s4] sm:$0xff]
      %v393 = vld [vmem:[%s5] sm:$0xff]
      %395 = vset.pattern.permute.xlu0 0
      %396 = vperm.xlu0 %395, %v393
      %v397 = vpop.permute.xlu0 %396
      %vm399 = vcmask 97280
      %v401 = vsel %vm399, %v392, 0
      %vm403 = vcmask 1043456
      %v405 = vsel %vm403, %v391, 0
      %407 = vmatpush.msra.mxu0 0.0
      %408 = vmatpush.msra.mxu0 0.0
      %409 = vmatpush.msra.mxu0 0.0
      %410 = vmatpush.msra.mxu0 0.0
      %411 = vmatpush.msra.mxu0 0.0
      %412 = vmatpush.msra.mxu0 0.0
      %413 = vmatpush.msra.mxu0 0.0
      %414 = vmatpush.msra.mxu0 0.0
      %415 = vmatpush.msra.mxu0 0.0
      %416 = vmatpush.msra.mxu0 0.0
      %417 = vmatpush.msra.mxu0 0.0
      %418 = vmatpush.msra.mxu0 0.0
      %419 = vmatpush.msra.mxu0 0.0
      %420 = vmatpush.msra.mxu0 0.0
      %421 = vmatpush.msra.mxu0 %v405
      %422 = vmatpush.msra.mxu0 %v390
      %423 = vmatmul.f32.gmra.mxu0 %v401
      %v424 = vpop.f32.mrf.mxu0
      %v425 = vadd.f32 %v397, %v424
      %426 = vdwg.mxu0
      %v427 = vmax.f32 %v425, 0.0
      %429 = vrot.lane.b32.xlu0 %v427, 9
      %v430 = vpop.permute.xlu0 %429
      %vm432 = vcmask 72704
      %v433 = vsel %vm432, 0.0, %v430
      %vm434 = vcmask 596992
      %v435 = vsel %vm434, %v433, 0.0
      %v436 = vld [vmem:[%s1] sm:$0x3]
      %v437 = vperm.slane %v436, 0
      %v438 = vmul.f32 %v435, %v437
      %v439 = vperm.slane %v436, 1
      %441 = vrot.lane.b32.xlu0 %v439, 2
      %v442 = vpop.permute.xlu0 %441
      %v444 = vmul.f32 %v435, %v442
      %446 = vrot.lane.b32.xlu0 %v437, 8
      %v447 = vpop.permute.xlu0 %446
      %v449 = vmul.f32 %v435, %v447
      %450 = vrot.lane.b32.xlu0 %v439, 10
      %v451 = vpop.permute.xlu0 %450
      %v453 = vmul.f32 %v435, %v451
      %454 = vrot.lane.b32.xlu0 %v437, 16
      %v455 = vpop.permute.xlu0 %454
      %v457 = vmul.f32 %v435, %v455
      %458 = vrot.lane.b32.xlu0 %v439, 18
      %v459 = vpop.permute.xlu0 %458
      %v461 = vmul.f32 %v435, %v459
      %463 = vrot.lane.b32.xlu0 %v435, 127
      %v464 = vpop.permute.xlu0 %463
      %467 = vrot.lane.b32.xlu0 %v444, 126
      %v468 = vpop.permute.xlu0 %467
      %471 = vrot.lane.b32.xlu0 %v449, 120
      %v472 = vpop.permute.xlu0 %471
      %475 = vrot.lane.b32.xlu0 %v453, 118
      %v476 = vpop.permute.xlu0 %475
      %479 = vrot.lane.b32.xlu0 %v457, 112
      %v480 = vpop.permute.xlu0 %479
      %482 = vrot.lane.b32.xlu0 %v435, 111
      %v483 = vpop.permute.xlu0 %482
      %486 = vrot.lane.b32.xlu0 %v461, 110
      %v487 = vpop.permute.xlu0 %486
      %v489 = vld [vmem:[%s6] sm:$0xff]
      %v490 = vld [vmem:[%s7] sm:$0xff]
      %492 = vset.pattern.permute.xlu0 0
      %493 = vperm.xlu0 %492, %v490
      %v494 = vpop.permute.xlu0 %493
      %vm496 = vcmask 588800
      %v498 = vsel %vm496, %v489, 0
      %500 = vmatpush.msra.mxu0 0.0
      %501 = vmatpush.msra.mxu0 0.0
      %502 = vmatpush.msra.mxu0 0.0
      %503 = vmatpush.msra.mxu0 0.0
      %504 = vmatpush.msra.mxu0 0.0
      %505 = vmatpush.msra.mxu0 0.0
      %506 = vmatpush.msra.mxu0 0.0
      %507 = vmatpush.msra.mxu0 %v487
      %508 = vmatpush.msra.mxu0 %v483
      %509 = vmatpush.msra.mxu0 %v480
      %510 = vmatpush.msra.mxu0 %v476
      %511 = vmatpush.msra.mxu0 %v427
      %512 = vmatpush.msra.mxu0 %v472
      %513 = vmatpush.msra.mxu0 %v468
      %514 = vmatpush.msra.mxu0 %v464
      %515 = vmatpush.msra.mxu0 %v438
      %516 = vmatmul.f32.gmra.mxu0 %v498
      %v517 = vpop.f32.mrf.mxu0
      %v518 = vadd.f32 %v494, %v517
      %519 = vdwg.mxu0
      %v520 = vmax.f32 %v518, 0.0
      %v521 = vld [vmem:[%s8] sm:$0xff]
      %v522 = vld [vmem:[%s8 + $0x8] sm:$0xf]
      %v523 = vld [vmem:[%s9] sm:$0xff]
      %v524 = vld [vmem:[%s9 + $0x8] sm:$0xf]
      %526 = vset.pattern.permute.xlu0 0
      %527 = vperm.xlu0 %526, %v523
      %v528 = vpop.permute.xlu0 %527
      %531 = vset.pattern.permute.xlu0 0
      %532 = vperm.xlu0 %531, %v524
      %v533 = vpop.permute.xlu0 %532
      %vm535 = vcmask 64512
      %v537 = vsel %vm535, %v521, 0
      %v540 = vsel %vm535, %v522, 0
      %542 = vmatpush.msra.mxu0 0.0
      %543 = vmatpush.msra.mxu0 0.0
      %544 = vmatpush.msra.mxu0 0.0
      %545 = vmatpush.msra.mxu0 0.0
      %546 = vmatpush.msra.mxu0 0.0
      %547 = vmatpush.msra.mxu0 0.0
      %548 = vmatpush.msra.mxu0 0.0
      %549 = vmatpush.msra.mxu0 0.0
      %550 = vmatpush.msra.mxu0 0.0
      %551 = vmatpush.msra.mxu0 0.0
      %552 = vmatpush.msra.mxu0 0.0
      %553 = vmatpush.msra.mxu0 0.0
      %554 = vmatpush.msra.mxu0 0.0
      %555 = vmatpush.msra.mxu0 0.0
      %556 = vmatpush.msra.mxu0 0.0
      %557 = vmatpush.msra.mxu0 %v520
      %558 = vmatmul.f32.gmra.mxu0 %v537
      %v559 = vpop.f32.mrf.mxu0
      %v560 = vadd.f32 %v528, %v559
      %561 = vmatmul.f32.gmra.mxu0 %v540
      %v562 = vpop.f32.mrf.mxu0
      %v563 = vadd.f32 %v533, %v562
      %564 = vdwg.mxu0
      %v565 = vadd.f32 %v560, %v360
      %v566 = vadd.f32 %v563, %v361
      %vm567 = vcmask 523264
      %568 = vst.msk [vmem:[%s359] sm:$0xff] %vm567, %v565
      %vm569 = vcmask 519168
      %570 = vst.msk [vmem:[%s359 + $0x8] sm:$0xf] %vm569, %v566
      %p571 = scmp.lt.s32.totalorder %s21, 1
      %s572 = scalar_select %p571, %s21, 1
      %s573 = smul.addr %s572, 2
      %s574 = smul.addr %s573, 8
      %s575 = scalar_lea.vmem %s10, %s574
      // Predicated region
      $region61: #{_lambda_.9} parent=59 // pred_check
        %p576 = pneg %p254
      $region62: #{_lambda_.9} parent=59 // pred_check_branch
        %578 = sbr.rel (%p576) target = $region64
      $region63: #{_lambda_.9} parent=59 // pred_region
        _
      $region64: #{_lambda_.9} parent=59 // pred_fallthru
        _
    $region60: #{_lambda_.9} parent=5 // pred_fallthru
      _
    %p579 = scmp.le.s32.totalorder 2, %s16
    // Predicated region
    $region65: #{_lambda_.9} parent=5 // pred_check
      %p580 = pneg %p579
    $region66: #{_lambda_.9} parent=5 // pred_check_branch
      %582 = sbr.rel (%p580) target = $region68
    $region67: #{_lambda_.9} parent=5 // pred_region
      %s583 = ssub.s32 %s16, 2
      // Predicated region
      $region69: #{_lambda_.9} parent=67 // pred_check
        %p584 = pneg %p260
      $region70: #{_lambda_.9} parent=67 // pred_check_branch
        %586 = sbr.rel (%p584) target = $region72
      $region71: #{_lambda_.9} parent=67 // pred_region
        %p587 = scmp.lt.s32.totalorder %s22, 1
        %s588 = scalar_select %p587, %s22, 1
        %s589 = smul.addr %s588, 2
        %s590 = smul.addr %s589, 8
        %s591 = scalar_lea.vmem %s10, %s590
      $region72: #{_lambda_.9} parent=67 // pred_fallthru
        _
    $region68: #{_lambda_.9} parent=5 // pred_fallthru
      _
  $region6: #{_lambda_.9} parent=0 // loop_footer
    %s20 = sadd.s32 1, %s16
  $region7: #{_lambda_.9} parent=0 // loop_footer_branch
    %15 = sbr.rel target = $region3
  $region8: #{_lambda_.9} parent=0 // loop_exit
    _

// kernel: _lambda_.7
$region0: #{_lambda_.7}
  #allocation0 [shape = 'u32[]', space=smem, size = 0x4, offset = 0x4, fixed_abs, tag = 'smem constant byte address 0x4 - core index']
  #allocation1 [shape = 'u32[72,128]{1,0:T(1,128)}', space=vmem, size = 0x9000, scoped, tag = 'internal scratch']
  %s0 = inlined_call_operand.vmem [shape: f32[2,8,256], index: 0, kind: input, shape index: {}]
  %s1 = inlined_call_operand.vmem [shape: f32[2,256], index: 1, kind: input, shape index: {}]
  %s2 = inlined_call_operand.vmem [shape: f32[8,1], index: 2, kind: input, shape index: {}]
  %s3 = inlined_call_operand.vmem [shape: f32[8,1], index: 3, kind: input, shape index: {}]
  %s4 = inlined_call_operand.vmem [shape: f32[8,8], index: 4, kind: input, shape index: {}]
  %s5 = inlined_call_operand.vmem [shape: f32[8,1], index: 5, kind: input, shape index: {}]
  %s6 = inlined_call_operand.vmem [shape: f32[8,72], index: 6, kind: input, shape index: {}]
  %s7 = inlined_call_operand.vmem [shape: f32[8,1], index: 7, kind: input, shape index: {}]
  %s8 = inlined_call_operand.vmem [shape: f32[8,8], index: 8, kind: input, shape index: {}]
  %s9 = inlined_call_operand.vmem [shape: f32[8,1], index: 9, kind: input, shape index: {}]
  %s10 = inlined_call_operand.vmem [shape: f32[2,8,256], index: 10, kind: output, shape index: {}]
  %s11 = sld [smem:[#allocation0]]
  $region73: #{_lambda_.7} parent=0
    _
  %s13 = ssub.s32 1, %s11
  %s14 = scalar_select 0, %s13, %s11
  loop: start=0, step=1, limit=4
  $region2: #{_lambda_.7} parent=0 // loop_pre_header
    _
  $region3: #{_lambda_.7} parent=0 // loop_header
    %s16 = sphi 0, %s20
    %p17 = scmp.ge.s32.totalorder %s16, 4
    %s26 = sphi 0, %s28
    %s29 = sphi 0, %s26
    %s30 = sphi 0, %s29
    %s46 = sphi 0, %s30
    %s50 = sphi 0, %s50
    %s52 = sphi 0, %s50
    %s53 = sphi 0, %s52
    %s67 = sphi 0, %s53
    %s71 = sphi 0, %s71
    %s73 = sphi 0, %s71
    %s74 = sphi 0, %s73
    %s88 = sphi 0, %s74
    %s92 = sphi 0, %s92
    %s94 = sphi 0, %s92
    %s95 = sphi 0, %s94
    %s109 = sphi 0, %s95
    %s113 = sphi 0, %s113
    %s115 = sphi 0, %s113
    %s116 = sphi 0, %s115
    %s130 = sphi 0, %s116
    %s134 = sphi 0, %s134
    %s136 = sphi 0, %s134
    %s137 = sphi 0, %s136
    %s151 = sphi 0, %s137
    %s155 = sphi 0, %s155
    %s157 = sphi 0, %s155
    %s158 = sphi 0, %s157
    %s172 = sphi 0, %s158
    %s176 = sphi 0, %s176
    %s178 = sphi 0, %s176
    %s179 = sphi 0, %s178
    %s193 = sphi 0, %s179
    %s197 = sphi 0, %s197
    %s199 = sphi 0, %s197
    %s200 = sphi 0, %s199
    %s214 = sphi 0, %s200
    %s218 = sphi 0, %s218
    %s220 = sphi 0, %s218
    %s221 = sphi 0, %s220
    %s235 = sphi 0, %s221
    %s241 = sphi 0, %s243
    %s244 = sphi 0, %s241
    %s245 = sphi 0, %s244
    %s261 = sphi 0, %s245
  $region4: #{_lambda_.7} parent=0 // loop_header_branch
    %19 = sbr.rel (%p17) target = $region8
  $region5: #{_lambda_.7} parent=0 // loop_body
    %s21 = ssub.s32 %s16, 1
    %s22 = ssub.s32 %s16, 2
    %s23 = sadd.s32 %s16, 1
    %s24 = ssub.s32 %s16, %s23
    %p25 = scmp.eq.s32.totalorder %s24, 0
    %s27 = sadd.s32 %s26, 1
    %s28 = scalar_select %p25, %s26, %s27
    %p31 = pneg %p25
    %p32 = scmp.eq.s32.totalorder %s16, 1
    %p33 = por %p31, %p32
    %p34 = scmp.ne.s32.totalorder %s26, %s29
    %p35 = scmp.eq.s32.totalorder %s16, 0
    %p36 = por %p34, %p35
    %p37 = scmp.ne.s32.totalorder %s26, %s29
    %p38 = scmp.eq.s32.totalorder %s21, 1
    %p39 = por %p37, %p38
    %p40 = scmp.ne.s32.totalorder %s29, %s30
    %p41 = scmp.eq.s32.totalorder %s21, 0
    %p42 = por %p40, %p41
    %p43 = scmp.ne.s32.totalorder %s29, %s30
    %p44 = scmp.eq.s32.totalorder %s22, 1
    %p45 = por %p43, %p44
    %p47 = scmp.ne.s32.totalorder %s30, %s46
    %p48 = scmp.eq.s32.totalorder %s22, 0
    %p49 = por %p47, %p48
    %s51 = sadd.s32 %s50, 1
    %p54 = scmp.eq.s32.totalorder %s16, 1
    %p55 = scmp.ne.s32.totalorder %s50, %s52
    %p56 = scmp.eq.s32.totalorder %s16, 0
    %p57 = por %p55, %p56
    %p58 = scmp.ne.s32.totalorder %s50, %s52
    %p59 = scmp.eq.s32.totalorder %s21, 1
    %p60 = por %p58, %p59
    %p61 = scmp.ne.s32.totalorder %s52, %s53
    %p62 = scmp.eq.s32.totalorder %s21, 0
    %p63 = por %p61, %p62
    %p64 = scmp.ne.s32.totalorder %s52, %s53
    %p65 = scmp.eq.s32.totalorder %s22, 1
    %p66 = por %p64, %p65
    %p68 = scmp.ne.s32.totalorder %s53, %s67
    %p69 = scmp.eq.s32.totalorder %s22, 0
    %p70 = por %p68, %p69
    %s72 = sadd.s32 %s71, 1
    %p75 = scmp.eq.s32.totalorder %s16, 1
    %p76 = scmp.ne.s32.totalorder %s71, %s73
    %p77 = scmp.eq.s32.totalorder %s16, 0
    %p78 = por %p76, %p77
    %p79 = scmp.ne.s32.totalorder %s71, %s73
    %p80 = scmp.eq.s32.totalorder %s21, 1
    %p81 = por %p79, %p80
    %p82 = scmp.ne.s32.totalorder %s73, %s74
    %p83 = scmp.eq.s32.totalorder %s21, 0
    %p84 = por %p82, %p83
    %p85 = scmp.ne.s32.totalorder %s73, %s74
    %p86 = scmp.eq.s32.totalorder %s22, 1
    %p87 = por %p85, %p86
    %p89 = scmp.ne.s32.totalorder %s74, %s88
    %p90 = scmp.eq.s32.totalorder %s22, 0
    %p91 = por %p89, %p90
    %s93 = sadd.s32 %s92, 1
    %p96 = scmp.eq.s32.totalorder %s16, 1
    %p97 = scmp.ne.s32.totalorder %s92, %s94
    %p98 = scmp.eq.s32.totalorder %s16, 0
    %p99 = por %p97, %p98
    %p100 = scmp.ne.s32.totalorder %s92, %s94
    %p101 = scmp.eq.s32.totalorder %s21, 1
    %p102 = por %p100, %p101
    %p103 = scmp.ne.s32.totalorder %s94, %s95
    %p104 = scmp.eq.s32.totalorder %s21, 0
    %p105 = por %p103, %p104
    %p106 = scmp.ne.s32.totalorder %s94, %s95
    %p107 = scmp.eq.s32.totalorder %s22, 1
    %p108 = por %p106, %p107
    %p110 = scmp.ne.s32.totalorder %s95, %s109
    %p111 = scmp.eq.s32.totalorder %s22, 0
    %p112 = por %p110, %p111
    %s114 = sadd.s32 %s113, 1
    %p117 = scmp.eq.s32.totalorder %s16, 1
    %p118 = scmp.ne.s32.totalorder %s113, %s115
    %p119 = scmp.eq.s32.totalorder %s16, 0
    %p120 = por %p118, %p119
    %p121 = scmp.ne.s32.totalorder %s113, %s115
    %p122 = scmp.eq.s32.totalorder %s21, 1
    %p123 = por %p121, %p122
    %p124 = scmp.ne.s32.totalorder %s115, %s116
    %p125 = scmp.eq.s32.totalorder %s21, 0
    %p126 = por %p124, %p125
    %p127 = scmp.ne.s32.totalorder %s115, %s116
    %p128 = scmp.eq.s32.totalorder %s22, 1
    %p129 = por %p127, %p128
    %p131 = scmp.ne.s32.totalorder %s116, %s130
    %p132 = scmp.eq.s32.totalorder %s22, 0
    %p133 = por %p131, %p132
    %s135 = sadd.s32 %s134, 1
    %p138 = scmp.eq.s32.totalorder %s16, 1
    %p139 = scmp.ne.s32.totalorder %s134, %s136
    %p140 = scmp.eq.s32.totalorder %s16, 0
    %p141 = por %p139, %p140
    %p142 = scmp.ne.s32.totalorder %s134, %s136
    %p143 = scmp.eq.s32.totalorder %s21, 1
    %p144 = por %p142, %p143
    %p145 = scmp.ne.s32.totalorder %s136, %s137
    %p146 = scmp.eq.s32.totalorder %s21, 0
    %p147 = por %p145, %p146
    %p148 = scmp.ne.s32.totalorder %s136, %s137
    %p149 = scmp.eq.s32.totalorder %s22, 1
    %p150 = por %p148, %p149
    %p152 = scmp.ne.s32.totalorder %s137, %s151
    %p153 = scmp.eq.s32.totalorder %s22, 0
    %p154 = por %p152, %p153
    %s156 = sadd.s32 %s155, 1
    %p159 = scmp.eq.s32.totalorder %s16, 1
    %p160 = scmp.ne.s32.totalorder %s155, %s157
    %p161 = scmp.eq.s32.totalorder %s16, 0
    %p162 = por %p160, %p161
    %p163 = scmp.ne.s32.totalorder %s155, %s157
    %p164 = scmp.eq.s32.totalorder %s21, 1
    %p165 = por %p163, %p164
    %p166 = scmp.ne.s32.totalorder %s157, %s158
    %p167 = scmp.eq.s32.totalorder %s21, 0
    %p168 = por %p166, %p167
    %p169 = scmp.ne.s32.totalorder %s157, %s158
    %p170 = scmp.eq.s32.totalorder %s22, 1
    %p171 = por %p169, %p170
    %p173 = scmp.ne.s32.totalorder %s158, %s172
    %p174 = scmp.eq.s32.totalorder %s22, 0
    %p175 = por %p173, %p174
    %s177 = sadd.s32 %s176, 1
    %p180 = scmp.eq.s32.totalorder %s16, 1
    %p181 = scmp.ne.s32.totalorder %s176, %s178
    %p182 = scmp.eq.s32.totalorder %s16, 0
    %p183 = por %p181, %p182
    %p184 = scmp.ne.s32.totalorder %s176, %s178
    %p185 = scmp.eq.s32.totalorder %s21, 1
    %p186 = por %p184, %p185
    %p187 = scmp.ne.s32.totalorder %s178, %s179
    %p188 = scmp.eq.s32.totalorder %s21, 0
    %p189 = por %p187, %p188
    %p190 = scmp.ne.s32.totalorder %s178, %s179
    %p191 = scmp.eq.s32.totalorder %s22, 1
    %p192 = por %p190, %p191
    %p194 = scmp.ne.s32.totalorder %s179, %s193
    %p195 = scmp.eq.s32.totalorder %s22, 0
    %p196 = por %p194, %p195
    %s198 = sadd.s32 %s197, 1
    %p201 = scmp.eq.s32.totalorder %s16, 1
    %p202 = scmp.ne.s32.totalorder %s197, %s199
    %p203 = scmp.eq.s32.totalorder %s16, 0
    %p204 = por %p202, %p203
    %p205 = scmp.ne.s32.totalorder %s197, %s199
    %p206 = scmp.eq.s32.totalorder %s21, 1
    %p207 = por %p205, %p206
    %p208 = scmp.ne.s32.totalorder %s199, %s200
    %p209 = scmp.eq.s32.totalorder %s21, 0
    %p210 = por %p208, %p209
    %p211 = scmp.ne.s32.totalorder %s199, %s200
    %p212 = scmp.eq.s32.totalorder %s22, 1
    %p213 = por %p211, %p212
    %p215 = scmp.ne.s32.totalorder %s200, %s214
    %p216 = scmp.eq.s32.totalorder %s22, 0
    %p217 = por %p215, %p216
    %s219 = sadd.s32 %s218, 1
    %p222 = scmp.eq.s32.totalorder %s16, 1
    %p223 = scmp.ne.s32.totalorder %s218, %s220
    %p224 = scmp.eq.s32.totalorder %s16, 0
    %p225 = por %p223, %p224
    %p226 = scmp.ne.s32.totalorder %s218, %s220
    %p227 = scmp.eq.s32.totalorder %s21, 1
    %p228 = por %p226, %p227
    %p229 = scmp.ne.s32.totalorder %s220, %s221
    %p230 = scmp.eq.s32.totalorder %s21, 0
    %p231 = por %p229, %p230
    %p232 = scmp.ne.s32.totalorder %s220, %s221
    %p233 = scmp.eq.s32.totalorder %s22, 1
    %p234 = por %p232, %p233
    %p236 = scmp.ne.s32.totalorder %s221, %s235
    %p237 = scmp.eq.s32.totalorder %s22, 0
    %p238 = por %p236, %p237
    %s239 = ssub.s32 %s16, %s23
    %p240 = scmp.eq.s32.totalorder %s239, 0
    %s242 = sadd.s32 %s241, 1
    %s243 = scalar_select %p240, %s241, %s242
    %p246 = pneg %p240
    %p247 = scmp.eq.s32.totalorder %s16, 1
    %p248 = por %p246, %p247
    %p249 = scmp.ne.s32.totalorder %s241, %s244
    %p250 = scmp.eq.s32.totalorder %s16, 0
    %p251 = por %p249, %p250
    %p252 = scmp.ne.s32.totalorder %s241, %s244
    %p253 = scmp.eq.s32.totalorder %s21, 1
    %p254 = por %p252, %p253
    %p255 = scmp.ne.s32.totalorder %s244, %s245
    %p256 = scmp.eq.s32.totalorder %s21, 0
    %p257 = por %p255, %p256
    %p258 = scmp.ne.s32.totalorder %s244, %s245
    %p259 = scmp.eq.s32.totalorder %s22, 1
    %p260 = por %p258, %p259
    %p262 = scmp.ne.s32.totalorder %s245, %s261
    %p263 = scmp.eq.s32.totalorder %s22, 0
    %p264 = por %p262, %p263
    %p265 = scmp.le.s32.totalorder 1, %s16
    %p266 = scmp.lt.s32.totalorder %s16, 3
    %p267 = pnand %p265, %p266
    %p268 = pneg %p267
    // Predicated region
    $region9: #{_lambda_.7} parent=5 // pred_check
      _
    $region10: #{_lambda_.7} parent=5 // pred_check_branch
      %270 = sbr.rel (%p267) target = $region12
    $region11: #{_lambda_.7} parent=5 // pred_region
      %s271 = ssub.s32 %s16, 1
      // Predicated region
      $region13: #{_lambda_.7} parent=11 // pred_check
        %p272 = pneg %p63
      $region14: #{_lambda_.7} parent=11 // pred_check_branch
        %274 = sbr.rel (%p272) target = $region16
      $region15: #{_lambda_.7} parent=11 // pred_region
        _
      $region16: #{_lambda_.7} parent=11 // pred_fallthru
        _
      // Predicated region
      $region17: #{_lambda_.7} parent=11 // pred_check
        %p275 = pneg %p84
      $region18: #{_lambda_.7} parent=11 // pred_check_branch
        %277 = sbr.rel (%p275) target = $region20
      $region19: #{_lambda_.7} parent=11 // pred_region
        _
      $region20: #{_lambda_.7} parent=11 // pred_fallthru
        _
      // Predicated region
      $region21: #{_lambda_.7} parent=11 // pred_check
        %p278 = pneg %p105
      $region22: #{_lambda_.7} parent=11 // pred_check_branch
        %280 = sbr.rel (%p278) target = $region24
      $region23: #{_lambda_.7} parent=11 // pred_region
        _
      $region24: #{_lambda_.7} parent=11 // pred_fallthru
        _
      // Predicated region
      $region25: #{_lambda_.7} parent=11 // pred_check
        %p281 = pneg %p126
      $region26: #{_lambda_.7} parent=11 // pred_check_branch
        %283 = sbr.rel (%p281) target = $region28
      $region27: #{_lambda_.7} parent=11 // pred_region
        _
      $region28: #{_lambda_.7} parent=11 // pred_fallthru
        _
      // Predicated region
      $region29: #{_lambda_.7} parent=11 // pred_check
        %p284 = pneg %p147
      $region30: #{_lambda_.7} parent=11 // pred_check_branch
        %286 = sbr.rel (%p284) target = $region32
      $region31: #{_lambda_.7} parent=11 // pred_region
        _
      $region32: #{_lambda_.7} parent=11 // pred_fallthru
        _
      // Predicated region
      $region33: #{_lambda_.7} parent=11 // pred_check
        %p287 = pneg %p168
      $region34: #{_lambda_.7} parent=11 // pred_check_branch
        %289 = sbr.rel (%p287) target = $region36
      $region35: #{_lambda_.7} parent=11 // pred_region
        _
      $region36: #{_lambda_.7} parent=11 // pred_fallthru
        _
      // Predicated region
      $region37: #{_lambda_.7} parent=11 // pred_check
        %p290 = pneg %p189
      $region38: #{_lambda_.7} parent=11 // pred_check_branch
        %292 = sbr.rel (%p290) target = $region40
      $region39: #{_lambda_.7} parent=11 // pred_region
        _
      $region40: #{_lambda_.7} parent=11 // pred_fallthru
        _
      // Predicated region
      $region41: #{_lambda_.7} parent=11 // pred_check
        %p293 = pneg %p210
      $region42: #{_lambda_.7} parent=11 // pred_check_branch
        %295 = sbr.rel (%p293) target = $region44
      $region43: #{_lambda_.7} parent=11 // pred_region
        _
      $region44: #{_lambda_.7} parent=11 // pred_fallthru
        _
      // Predicated region
      $region45: #{_lambda_.7} parent=11 // pred_check
        %p296 = pneg %p231
      $region46: #{_lambda_.7} parent=11 // pred_check_branch
        %298 = sbr.rel (%p296) target = $region48
      $region47: #{_lambda_.7} parent=11 // pred_region
        _
      $region48: #{_lambda_.7} parent=11 // pred_fallthru
        _
    $region12: #{_lambda_.7} parent=5 // pred_fallthru
      _
    %p299 = scmp.lt.s32.totalorder %s16, 2
    // Predicated region
    $region49: #{_lambda_.7} parent=5 // pred_check
      %p300 = pneg %p299
    $region50: #{_lambda_.7} parent=5 // pred_check_branch
      %302 = sbr.rel (%p300) target = $region52
    $region51: #{_lambda_.7} parent=5 // pred_region
      // Predicated region
      $region53: #{_lambda_.7} parent=51 // pred_check
        %p303 = pneg %p36
      $region54: #{_lambda_.7} parent=51 // pred_check_branch
        %305 = sbr.rel (%p303) target = $region56
      $region55: #{_lambda_.7} parent=51 // pred_region
        %p306 = scmp.lt.s32.totalorder %s16, 1
        %s307 = scalar_select %p306, %s16, 1
        %s308 = smul.addr %s307, 2
        %s309 = smul.addr %s308, 8
        %s310 = scalar_lea.vmem %s0, %s309
      $region56: #{_lambda_.7} parent=51 // pred_fallthru
        _
    $region52: #{_lambda_.7} parent=5 // pred_fallthru
      _
    %p311 = scmp.le.s32.totalorder 1, %s16
    %p312 = scmp.lt.s32.totalorder %s16, 3
    %p313 = pnand %p311, %p312
    %p314 = pneg %p313
    // Predicated region
    $region57: #{_lambda_.7} parent=5 // pred_check
      _
    $region58: #{_lambda_.7} parent=5 // pred_check_branch
      %316 = sbr.rel (%p313) target = $region60
    $region59: #{_lambda_.7} parent=5 // pred_region
      %s317 = ssub.s32 %s16, 1
      %p318 = scmp.lt.s32.totalorder %s21, 1
      %s319 = scalar_select %p318, %s21, 1
      %s320 = smul.addr %s319, 2
      %s321 = smul.addr %s320, 8
      %s322 = scalar_lea.vmem %s0, %s321
      %p323 = pneg %p42
      %p324 = pneg %p39
      %p325 = pneg %p63
      %p326 = pneg %p60
      %p327 = pneg %p84
      %p328 = pneg %p81
      %p329 = pneg %p105
      %p330 = pneg %p102
      %p331 = pneg %p126
      %p332 = pneg %p123
      %p333 = pneg %p147
      %p334 = pneg %p144
      %p335 = pneg %p168
      %p336 = pneg %p165
      %p337 = pneg %p189
      %p338 = pneg %p186
      %p339 = pneg %p210
      %p340 = pneg %p207
      %p341 = pneg %p231
      %p342 = pneg %p228
      %p343 = pneg %p257
      %p344 = pneg %p254
      %p345 = scmp.lt.s32.totalorder %s21, 1
      %s346 = scalar_select %p345, %s21, 1
      %s347 = smul.addr %s346, 2
      %s348 = smul.addr %s347, 8
      %s349 = scalar_lea.vmem %s10, %s348
      %p350 = scmp.lt.s32.totalorder %s21, 1
      %s351 = scalar_select %p350, %s21, 1
      %s352 = smul.addr %s351, 2
      %s353 = smul.addr %s352, 8
      %s354 = scalar_lea.vmem %s0, %s353
      %p355 = scmp.lt.s32.totalorder %s21, 1
      %s356 = scalar_select %p355, %s21, 1
      %s357 = smul.addr %s356, 2
      %s358 = smul.addr %s357, 8
      %s359 = scalar_lea.vmem %s10, %s358
      %v360 = vld [vmem:[%s354] sm:$0xff]
      %v361 = vld [vmem:[%s354 + $0x8] sm:$0xff]
      %v362 = vld [vmem:[%s2] sm:$0xff]
      %364 = vset.pattern.permute.xlu0 0
      %365 = vperm.xlu0 %364, %v362
      %v366 = vpop.permute.xlu0 %365
      %v368 = vmul.f32 %v360, %v366
      %v369 = vmul.f32 %v361, %v366
      %v370 = vld [vmem:[%s3] sm:$0xff]
      %372 = vset.pattern.permute.xlu0 0
      %373 = vperm.xlu0 %372, %v370
      %v374 = vpop.permute.xlu0 %373
      %v376 = vadd.f32 %v368, %v374
      %v377 = vadd.f32 %v369, %v374
      %v378 = vmax.f32 %v376, 0.0
      %v379 = vmax.f32 %v377, 0.0
      %v380 = vld [vmem:[%s4] sm:$0xff]
      %v381 = vld [vmem:[%s5] sm:$0xff]
      %383 = vset.pattern.permute.xlu0 0
      %384 = vperm.xlu0 %383, %v381
      %v385 = vpop.permute.xlu0 %384
      %vm387 = vcmask 64512
      %v389 = vsel %vm387, %v380, 0
      %391 = vmatpush.msra.mxu0 0.0
      %392 = vmatpush.msra.mxu0 0.0
      %393 = vmatpush.msra.mxu0 0.0
      %394 = vmatpush.msra.mxu0 0.0
      %395 = vmatpush.msra.mxu0 0.0
      %396 = vmatpush.msra.mxu0 0.0
      %397 = vmatpush.msra.mxu0 0.0
      %398 = vmatpush.msra.mxu0 0.0
      %399 = vmatpush.msra.mxu0 0.0
      %400 = vmatpush.msra.mxu0 0.0
      %401 = vmatpush.msra.mxu0 0.0
      %402 = vmatpush.msra.mxu0 0.0
      %403 = vmatpush.msra.mxu0 0.0
      %404 = vmatpush.msra.mxu0 0.0
      %405 = vmatpush.msra.mxu0 0.0
      %406 = vmatpush.msra.mxu0 %v378
      %407 = vmatmul.f32.gmra.mxu0 %v389
      %v408 = vpop.f32.mrf.mxu0
      %v409 = vadd.f32 %v385, %v408
      %410 = vdwg.mxu0
      %411 = vmatpush.msra.mxu0 0.0
      %412 = vmatpush.msra.mxu0 0.0
      %413 = vmatpush.msra.mxu0 0.0
      %414 = vmatpush.msra.mxu0 0.0
      %415 = vmatpush.msra.mxu0 0.0
      %416 = vmatpush.msra.mxu0 0.0
      %417 = vmatpush.msra.mxu0 0.0
      %418 = vmatpush.msra.mxu0 0.0
      %419 = vmatpush.msra.mxu0 0.0
      %420 = vmatpush.msra.mxu0 0.0
      %421 = vmatpush.msra.mxu0 0.0
      %422 = vmatpush.msra.mxu0 0.0
      %423 = vmatpush.msra.mxu0 0.0
      %424 = vmatpush.msra.mxu0 0.0
      %425 = vmatpush.msra.mxu0 0.0
      %426 = vmatpush.msra.mxu0 %v379
      %427 = vmatmul.f32.gmra.mxu0 %v389
      %v428 = vpop.f32.mrf.mxu0
      %v429 = vadd.f32 %v385, %v428
      %430 = vdwg.mxu0
      %v431 = vmax.f32 %v409, 0.0
      %v432 = vmax.f32 %v429, 0.0
      %435 = vrot.lane.b32.xlu0 %v431, 17
      %v436 = vpop.permute.xlu0 %435
      %437 = vrot.lane.b32.xlu0 %v432, 17
      %v438 = vpop.permute.xlu0 %437
      %vm439 = vcmask 138240
      %v440 = vsel %vm439, %v436, %v438
      %v444 = vsel %vm439, 0.0, %v436
      %v445 = vsel %vm439, %v438, 0.0
      %v446 = vld [vmem:[%s1] sm:$0xf]
      %v448 = vperm.slane %v446, 0
      %v449 = vperm.slane %v446, 2
      %v452 = vperm.slane %v448, 0
      %v453 = vperm.slane %v449, 0
      %v454 = vmul.f32 %v444, %v452
      %v455 = vmul.f32 %v440, %v453
      %v456 = vperm.slane %v446, 1
      %v457 = vperm.slane %v446, 3
      %v460 = vperm.slane %v456, 1
      %v461 = vperm.slane %v457, 1
      %464 = vrot.lane.b32.xlu0 %v460, 2
      %v465 = vpop.permute.xlu0 %464
      %466 = vrot.lane.b32.xlu0 %v461, 2
      %v467 = vpop.permute.xlu0 %466
      %vm468 = vcmask 15360
      %v469 = vsel %vm468, %v465, %v467
      %v473 = vmul.f32 %v444, %v465
      %v474 = vmul.f32 %v440, %v469
      %v475 = vmul.f32 %v445, %v467
      %478 = vrot.lane.b32.xlu0 %v452, 16
      %v479 = vpop.permute.xlu0 %478
      %480 = vrot.lane.b32.xlu0 %v453, 16
      %v481 = vpop.permute.xlu0 %480
      %vm482 = vcmask 130048
      %v483 = vsel %vm482, %v479, %v481
      %v487 = vmul.f32 %v444, %v479
      %v488 = vmul.f32 %v440, %v483
      %v489 = vmul.f32 %v445, %v481
      %490 = vrot.lane.b32.xlu0 %v460, 18
      %v491 = vpop.permute.xlu0 %490
      %492 = vrot.lane.b32.xlu0 %v461, 18
      %v493 = vpop.permute.xlu0 %492
      %vm494 = vcmask 146432
      %v495 = vsel %vm494, %v491, %v493
      %v499 = vmul.f32 %v444, %v491
      %v500 = vmul.f32 %v440, %v495
      %v501 = vmul.f32 %v445, %v493
      %502 = vrot.lane.b32.xlu0 %v452, 32
      %v503 = vpop.permute.xlu0 %502
      %504 = vrot.lane.b32.xlu0 %v453, 32
      %v505 = vpop.permute.xlu0 %504
      %vm506 = vcmask 261120
      %v507 = vsel %vm506, %v503, %v505
      %v511 = vmul.f32 %v444, %v503
      %v512 = vmul.f32 %v440, %v507
      %v513 = vmul.f32 %v445, %v505
      %514 = vrot.lane.b32.xlu0 %v460, 34
      %v515 = vpop.permute.xlu0 %514
      %516 = vrot.lane.b32.xlu0 %v461, 34
      %v517 = vpop.permute.xlu0 %516
      %vm518 = vcmask 277504
      %v519 = vsel %vm518, %v515, %v517
      %v523 = vmul.f32 %v444, %v515
      %v524 = vmul.f32 %v440, %v519
      %v525 = vmul.f32 %v445, %v517
      %528 = vrot.lane.b32.xlu0 %v444, 127
      %v529 = vpop.permute.xlu0 %528
      %530 = vrot.lane.b32.xlu0 %v440, 127
      %v531 = vpop.permute.xlu0 %530
      %532 = vrot.lane.b32.xlu0 %v445, 127
      %v533 = vpop.permute.xlu0 %532
      %vm534 = vcmask 1039360
      %v535 = vsel %vm534, %v529, %v531
      %v536 = vsel %vm534, %v531, %v533
      %542 = vrot.lane.b32.xlu0 %v473, 126
      %v543 = vpop.permute.xlu0 %542
      %544 = vrot.lane.b32.xlu0 %v474, 126
      %v545 = vpop.permute.xlu0 %544
      %546 = vrot.lane.b32.xlu0 %v475, 126
      %v547 = vpop.permute.xlu0 %546
      %vm548 = vcmask 1031168
      %v549 = vsel %vm548, %v543, %v545
      %v550 = vsel %vm548, %v545, %v547
      %556 = vrot.lane.b32.xlu0 %v487, 112
      %v557 = vpop.permute.xlu0 %556
      %558 = vrot.lane.b32.xlu0 %v488, 112
      %v559 = vpop.permute.xlu0 %558
      %560 = vrot.lane.b32.xlu0 %v489, 112
      %v561 = vpop.permute.xlu0 %560
      %vm562 = vcmask 916480
      %v563 = vsel %vm562, %v557, %v559
      %v564 = vsel %vm562, %v559, %v561
      %570 = vrot.lane.b32.xlu0 %v499, 110
      %v571 = vpop.permute.xlu0 %570
      %572 = vrot.lane.b32.xlu0 %v500, 110
      %v573 = vpop.permute.xlu0 %572
      %574 = vrot.lane.b32.xlu0 %v501, 110
      %v575 = vpop.permute.xlu0 %574
      %vm576 = vcmask 900096
      %v577 = vsel %vm576, %v571, %v573
      %v578 = vsel %vm576, %v573, %v575
      %584 = vrot.lane.b32.xlu0 %v511, 96
      %v585 = vpop.permute.xlu0 %584
      %586 = vrot.lane.b32.xlu0 %v512, 96
      %v587 = vpop.permute.xlu0 %586
      %588 = vrot.lane.b32.xlu0 %v513, 96
      %v589 = vpop.permute.xlu0 %588
      %vm590 = vcmask 785408
      %v591 = vsel %vm590, %v585, %v587
      %v592 = vsel %vm590, %v587, %v589
      %595 = vrot.lane.b32.xlu0 %v444, 95
      %v596 = vpop.permute.xlu0 %595
      %597 = vrot.lane.b32.xlu0 %v440, 95
      %v598 = vpop.permute.xlu0 %597
      %599 = vrot.lane.b32.xlu0 %v445, 95
      %v600 = vpop.permute.xlu0 %599
      %vm601 = vcmask 777216
      %v602 = vsel %vm601, %v596, %v598
      %v603 = vsel %vm601, %v598, %v600
      %609 = vrot.lane.b32.xlu0 %v523, 94
      %v610 = vpop.permute.xlu0 %609
      %611 = vrot.lane.b32.xlu0 %v524, 94
      %v612 = vpop.permute.xlu0 %611
      %613 = vrot.lane.b32.xlu0 %v525, 94
      %v614 = vpop.permute.xlu0 %613
      %vm615 = vcmask 769024
      %v616 = vsel %vm615, %v610, %v612
      %v617 = vsel %vm615, %v612, %v614
      %v620 = vld [vmem:[%s6] sm:$0xff]
      %v621 = vld [vmem:[%s7] sm:$0xff]
      %623 = vset.pattern.permute.xlu0 0
      %624 = vperm.xlu0 %623, %v621
      %v625 = vpop.permute.xlu0 %624
      %vm627 = vcmask 588800
      %v629 = vsel %vm627, %v620, 0
      %631 = vmatpush.msra.mxu0 0.0
      %632 = vmatpush.msra.mxu0 0.0
      %633 = vmatpush.msra.mxu0 0.0
      %634 = vmatpush.msra.mxu0 0.0
      %635 = vmatpush.msra.mxu0 0.0
      %636 = vmatpush.msra.mxu0 0.0
      %637 = vmatpush.msra.mxu0 0.0
      %638 = vmatpush.msra.mxu0 %v616
      %639 = vmatpush.msra.mxu0 %v602
      %640 = vmatpush.msra.mxu0 %v591
      %641 = vmatpush.msra.mxu0 %v577
      %642 = vmatpush.msra.mxu0 %v431
      %643 = vmatpush.msra.mxu0 %v563
      %644 = vmatpush.msra.mxu0 %v549
      %645 = vmatpush.msra.mxu0 %v535
      %646 = vmatpush.msra.mxu0 %v454
      %647 = vmatmul.f32.gmra.mxu0 %v629
      %v648 = vpop.f32.mrf.mxu0
      %v649 = vadd.f32 %v625, %v648
      %650 = vdwg.mxu0
      %651 = vmatpush.msra.mxu0 0.0
      %652 = vmatpush.msra.mxu0 0.0
      %653 = vmatpush.msra.mxu0 0.0
      %654 = vmatpush.msra.mxu0 0.0
      %655 = vmatpush.msra.mxu0 0.0
      %656 = vmatpush.msra.mxu0 0.0
      %657 = vmatpush.msra.mxu0 0.0
      %658 = vmatpush.msra.mxu0 %v617
      %659 = vmatpush.msra.mxu0 %v603
      %660 = vmatpush.msra.mxu0 %v592
      %661 = vmatpush.msra.mxu0 %v578
      %662 = vmatpush.msra.mxu0 %v432
      %663 = vmatpush.msra.mxu0 %v564
      %664 = vmatpush.msra.mxu0 %v550
      %665 = vmatpush.msra.mxu0 %v536
      %666 = vmatpush.msra.mxu0 %v455
      %667 = vmatmul.f32.gmra.mxu0 %v629
      %v668 = vpop.f32.mrf.mxu0
      %v669 = vadd.f32 %v625, %v668
      %670 = vdwg.mxu0
      %v671 = vmax.f32 %v649, 0.0
      %v672 = vmax.f32 %v669, 0.0
      %v673 = vld [vmem:[%s8] sm:$0xff]
      %v674 = vld [vmem:[%s9] sm:$0xff]
      %676 = vset.pattern.permute.xlu0 0
      %677 = vperm.xlu0 %676, %v674
      %v678 = vpop.permute.xlu0 %677
      %v681 = vsel %vm387, %v673, 0
      %683 = vmatpush.msra.mxu0 0.0
      %684 = vmatpush.msra.mxu0 0.0
      %685 = vmatpush.msra.mxu0 0.0
      %686 = vmatpush.msra.mxu0 0.0
      %687 = vmatpush.msra.mxu0 0.0
      %688 = vmatpush.msra.mxu0 0.0
      %689 = vmatpush.msra.mxu0 0.0
      %690 = vmatpush.msra.mxu0 0.0
      %691 = vmatpush.msra.mxu0 0.0
      %692 = vmatpush.msra.mxu0 0.0
      %693 = vmatpush.msra.mxu0 0.0
      %694 = vmatpush.msra.mxu0 0.0
      %695 = vmatpush.msra.mxu0 0.0
      %696 = vmatpush.msra.mxu0 0.0
      %697 = vmatpush.msra.mxu0 0.0
      %698 = vmatpush.msra.mxu0 %v671
      %699 = vmatmul.f32.gmra.mxu0 %v681
      %v700 = vpop.f32.mrf.mxu0
      %v701 = vadd.f32 %v678, %v700
      %702 = vdwg.mxu0
      %703 = vmatpush.msra.mxu0 0.0
      %704 = vmatpush.msra.mxu0 0.0
      %705 = vmatpush.msra.mxu0 0.0
      %706 = vmatpush.msra.mxu0 0.0
      %707 = vmatpush.msra.mxu0 0.0
      %708 = vmatpush.msra.mxu0 0.0
      %709 = vmatpush.msra.mxu0 0.0
      %710 = vmatpush.msra.mxu0 0.0
      %711 = vmatpush.msra.mxu0 0.0
      %712 = vmatpush.msra.mxu0 0.0
      %713 = vmatpush.msra.mxu0 0.0
      %714 = vmatpush.msra.mxu0 0.0
      %715 = vmatpush.msra.mxu0 0.0
      %716 = vmatpush.msra.mxu0 0.0
      %717 = vmatpush.msra.mxu0 0.0
      %718 = vmatpush.msra.mxu0 %v672
      %719 = vmatmul.f32.gmra.mxu0 %v681
      %v720 = vpop.f32.mrf.mxu0
      %v721 = vadd.f32 %v678, %v720
      %722 = vdwg.mxu0
      %v723 = vadd.f32 %v701, %v360
      %v724 = vadd.f32 %v721, %v361
      %725 = vst [vmem:[%s359] sm:$0xff] %v723
      %726 = vst [vmem:[%s359 + $0x8] sm:$0xff] %v724
      %p727 = scmp.lt.s32.totalorder %s21, 1
      %s728 = scalar_select %p727, %s21, 1
      %s729 = smul.addr %s728, 2
      %s730 = smul.addr %s729, 8
      %s731 = scalar_lea.vmem %s10, %s730
      // Predicated region
      $region61: #{_lambda_.7} parent=59 // pred_check
        %p732 = pneg %p254
      $region62: #{_lambda_.7} parent=59 // pred_check_branch
        %734 = sbr.rel (%p732) target = $region64
      $region63: #{_lambda_.7} parent=59 // pred_region
        _
      $region64: #{_lambda_.7} parent=59 // pred_fallthru
        _
    $region60: #{_lambda_.7} parent=5 // pred_fallthru
      _
    %p735 = scmp.le.s32.totalorder 2, %s16
    // Predicated region
    $region65: #{_lambda_.7} parent=5 // pred_check
      %p736 = pneg %p735
    $region66: #{_lambda_.7} parent=5 // pred_check_branch
      %738 = sbr.rel (%p736) target = $region68
    $region67: #{_lambda_.7} parent=5 // pred_region
      %s739 = ssub.s32 %s16, 2
      // Predicated region
      $region69: #{_lambda_.7} parent=67 // pred_check
        %p740 = pneg %p260
      $region70: #{_lambda_.7} parent=67 // pred_check_branch
        %742 = sbr.rel (%p740) target = $region72
      $region71: #{_lambda_.7} parent=67 // pred_region
        %p743 = scmp.lt.s32.totalorder %s22, 1
        %s744 = scalar_select %p743, %s22, 1
        %s745 = smul.addr %s744, 2
        %s746 = smul.addr %s745, 8
        %s747 = scalar_lea.vmem %s10, %s746
      $region72: #{_lambda_.7} parent=67 // pred_fallthru
        _
    $region68: #{_lambda_.7} parent=5 // pred_fallthru
      _
  $region6: #{_lambda_.7} parent=0 // loop_footer
    %s20 = sadd.s32 1, %s16
  $region7: #{_lambda_.7} parent=0 // loop_footer_branch
    %15 = sbr.rel target = $region3
  $region8: #{_lambda_.7} parent=0 // loop_exit
    _

</llo_original>
